<compile_context>
chip_gen: v7x
topology: tpu7x:2x2x1
jax: 0.10.0
libtpu: 0.0.40
codegen_flags: <defaults>
</compile_context>

<pallas_src>
import jax
import jax.numpy as jnp
from jax import lax
from jax.experimental import pallas as pl
from jax.experimental.pallas import tpu as pltpu


def gru_net_kernel(x_ref,                 # (T*B, I)   bf16, t-major rows
                   wih1_ref,              # (I, 3H)    bf16
                   bgx1_ref,              # (1, 3H)    f32   = bih1 + [bhh1_r, bhh1_z, 0]
                   wpk_ref,               # (2H, 7H)   bf16  packed recurrent weight
                   bpk_ref,               # (1, 7H)    f32   packed recurrent bias
                   wfc_ref,               # (H, Op)    bf16  fc weight, lane-padded
                   bfc_ref,               # (1, Op)    f32
                   out_ref,               # (B, Op)    f32
                   gx1_scr):              # VMEM (T*B, 3H) f32 scratch
    f32 = jnp.float32
    bf16 = jnp.bfloat16
    H = wpk_ref.shape[0] // 2
    B = out_ref.shape[0]
    T = x_ref.shape[0] // B

    # Hoisted layer-0 input projection for ALL timesteps (no sequential dependence):
    # one big MXU matmul, result staged in VMEM scratch so it is not a giant live
    # value across the unrolled recurrence.
    gx1_scr[...] = (jnp.dot(x_ref[...], wih1_ref[...], preferred_element_type=f32)
                    + bgx1_ref[...])

    # Hidden states live in vregs (value carries).
    h1 = jnp.zeros((B, H), f32)
    h2 = jnp.zeros((B, H), f32)
    # gh1(0) = h1(-1) @ Whh1 + [0, 0, bhh1_n] = bias only (h1(-1) = 0).
    gh1 = jnp.zeros((B, 3 * H), f32) + bpk_ref[...][:, :3 * H]

    # T is small and static -> fully unrolled straight-line code with constant,
    # tile-aligned slices.  (For long T: lax.fori_loop(..., unroll=4) over gx1_scr.)
    for t in range(T):
        # ---- layer 0 gates for step t (gh1 was produced by step t-1's fused matmul)
        gx1 = gx1_scr[t * B:(t + 1) * B, :]                         # (B, 3H) aligned vld
        rz1 = jax.nn.sigmoid(gx1[:, :2 * H] + gh1[:, :2 * H])       # one (B, 2H) EUP group
        n1 = jnp.tanh(gx1[:, 2 * H:] + rz1[:, :H] * gh1[:, 2 * H:])
        z1 = rz1[:, H:]
        h1 = (1.0 - z1) * n1 + z1 * h1

        # TODO(synk): inter-layer dropout (p=0.2) applies only in training mode;
        # eval-mode forward omits it.

        # ---- ONE fused matmul: [gh1(t+1) | layer-1 gates g2(t)] -------------------
        u = jnp.concatenate([h1, h2], axis=-1).astype(bf16)         # (B, 2H)
        fused = (jnp.dot(u, wpk_ref[...], preferred_element_type=f32)
                 + bpk_ref[...])                                    # (B, 7H)
        gh1 = fused[:, :3 * H]                                      # layer-0 h-path, step t+1
        g2 = fused[:, 3 * H:]                                       # (B, 4H) = [r, z, n_x, n_h]

        rz2 = jax.nn.sigmoid(g2[:, :2 * H])
        n2 = jnp.tanh(g2[:, 2 * H:3 * H] + rz2[:, :H] * g2[:, 3 * H:])
        z2 = rz2[:, H:]
        h2 = (1.0 - z2) * n2 + z2 * h2

    # Final linear head on the last step's layer-1 hidden state (lane-dense store).
    out_ref[...] = (jnp.dot(h2.astype(bf16), wfc_ref[...], preferred_element_type=f32)
                    + bfc_ref[...]).astype(out_ref.dtype)


def _pack_weights(params):
    """Pack layer-0 hidden path + both layer-1 paths into ONE (2H, 7H) operand.

    Per-step LHS is u = [h1(t), h2(t-1)]:
      rows [0:H)  -> h1(t),   rows [H:2H) -> h2(t-1)
    Columns:
      [0:3H)   gh1(t+1) = h1(t) @ Whh1                bias [0, 0, bhh1_n]
      [3H:4H)  layer-1 r (x+h paths summed)           bias bih2_r + bhh2_r
      [4H:5H)  layer-1 z (x+h paths summed)           bias bih2_z + bhh2_z
      [5H:6H)  layer-1 n, x-path                      bias bih2_n
      [6H:7H)  layer-1 n, h-path                      bias bhh2_n
    so n2 = tanh(g[5H:6H] + r2 * g[6H:7H]) reproduces PyTorch exactly.
    """
    H = params["whh1_T"].shape[0]
    f32 = jnp.float32
    whh1 = params["whh1_T"]                          # (H, 3H)  [r|z|n]
    wih2, whh2 = params["wih2_T"], params["whh2_T"]  # (H, 3H) each
    zH = jnp.zeros((H, H), f32)

    top = jnp.concatenate([whh1, wih2, zH], axis=1)                      # (H, 7H)
    bot = jnp.concatenate([jnp.zeros((H, 3 * H), f32),
                           whh2[:, :2 * H], zH, whh2[:, 2 * H:]], axis=1)  # (H, 7H)
    wpk = jnp.concatenate([top, bot], axis=0)                            # (2H, 7H)

    bpk = jnp.concatenate([jnp.zeros((1, 2 * H), f32),
                           params["bhh1"][:, 2 * H:],
                           params["bih2"][:, :2 * H] + params["bhh2"][:, :2 * H],
                           params["bih2"][:, 2 * H:],
                           params["bhh2"][:, 2 * H:]], axis=1)           # (1, 7H)
    return wpk, bpk


def gru_net_forward(x, params):
    B, T, I = x.shape
    H = params["whh1_T"].shape[0]
    O = params["wfc_T"].shape[1]
    Op = ((O + 127) // 128) * 128                    # lane-dense padded head width
    f32, bf16 = jnp.float32, jnp.bfloat16

    # t-major flatten (plain XLA) so in-kernel per-step slices are static and
    # sublane-tile aligned (B rows per step).
    x_tb = jnp.transpose(x, (1, 0, 2)).reshape(T * B, I).astype(bf16)

    wpk, bpk = _pack_weights(params)
    # Fold the r/z halves of bhh1 into the hoisted input-projection bias (the n-gate
    # half must stay inside the r1 * (...) term).
    bgx1 = params["bih1"] + jnp.concatenate(
        [params["bhh1"][:, :2 * H], jnp.zeros((1, H), f32)], axis=1)

    wfc_p = jnp.zeros((H, Op), f32).at[:, :O].set(params["wfc_T"]).astype(bf16)
    bfc_p = jnp.zeros((1, Op), f32).at[:, :O].set(params["bfc"])

    full = lambda shape: pl.BlockSpec(shape, lambda i, _s=shape: (0,) * len(_s))

    out_p = pl.pallas_call(
        gru_net_kernel,
        out_shape=jax.ShapeDtypeStruct((B, Op), f32),
        grid_spec=pltpu.PrefetchScalarGridSpec(
            num_scalar_prefetch=0,
            grid=(1,),                               # whole sequence in one invocation
            in_specs=[
                full((T * B, I)),
                full((I, 3 * H)), full((1, 3 * H)),
                full((2 * H, 7 * H)), full((1, 7 * H)),
                full((H, Op)), full((1, Op)),
            ],
            out_specs=pl.BlockSpec((B, Op), lambda i: (0, 0)),
            scratch_shapes=[pltpu.VMEM((T * B, 3 * H), f32)],
        ),
        compiler_params=pltpu.CompilerParams(dimension_semantics=("arbitrary",)),
    )(x_tb,
      params["wih1_T"].astype(bf16), bgx1,
      wpk.astype(bf16), bpk,
      wfc_p, bfc_p)
    return out_p[:, :O]


def init_params(key, input_size, hidden_size, output_size):
    """Deterministic init mirroring PyTorch's uniform(-1/sqrt(H), 1/sqrt(H)) scheme."""
    ks = jax.random.split(key, 10)
    H, I, O = hidden_size, input_size, output_size
    s = 1.0 / jnp.sqrt(H)
    u = lambda k, shape: jax.random.uniform(k, shape, jnp.float32, -s, s)
    return {
        # layer 0 (input_size -> H), gate order [r|z|n], stored transposed
        "wih1_T": u(ks[0], (I, 3 * H)),
        "whh1_T": u(ks[1], (H, 3 * H)),
        "bih1":   u(ks[2], (1, 3 * H)),
        "bhh1":   u(ks[3], (1, 3 * H)),
        # layer 1 (H -> H)
        "wih2_T": u(ks[4], (H, 3 * H)),
        "whh2_T": u(ks[5], (H, 3 * H)),
        "bih2":   u(ks[6], (1, 3 * H)),
        "bhh2":   u(ks[7], (1, 3 * H)),
        # fc head (H -> O)
        "wfc_T":  u(ks[8], (H, O)),
        "bfc":    u(ks[9], (1, O)),
    }


def gru_net_reference(x, params):
    """Pure-JAX f32 reference (lax.scan) with identical PyTorch GRU semantics."""
    B, T, I = x.shape
    H = params["whh1_T"].shape[0]

    def cell(x_t, h, wih_T, whh_T, bih, bhh):
        gx = x_t @ wih_T + bih
        gh = h @ whh_T + bhh
        r = jax.nn.sigmoid(gx[:, :H] + gh[:, :H])
        z = jax.nn.sigmoid(gx[:, H:2 * H] + gh[:, H:2 * H])
        n = jnp.tanh(gx[:, 2 * H:] + r * gh[:, 2 * H:])
        return (1.0 - z) * n + z * h

    def step(carry, x_t):
        h1, h2 = carry
        h1 = cell(x_t, h1, params["wih1_T"], params["whh1_T"], params["bih1"], params["bhh1"])
        h2 = cell(h1, h2, params["wih2_T"], params["whh2_T"], params["bih2"], params["bhh2"])
        return (h1, h2), None

    h0 = (jnp.zeros((B, H), jnp.float32), jnp.zeros((B, H), jnp.float32))
    (h1, h2), _ = lax.scan(step, h0, jnp.transpose(x, (1, 0, 2)))
    return h2 @ params["wfc_T"] + params["bfc"]


if __name__ == "__main__":
    # H = 128, O = 12 match the PyTorch module defaults; B = 8 keeps per-step
    # slices sublane-tile aligned.
    B, T, I, H, O = 8, 8, 16, 128, 12

    key = jax.random.PRNGKey(0)
    kx, kp = jax.random.split(key)
    x = jax.random.normal(kx, (B, T, I), jnp.float32)
    params = init_params(kp, I, H, O)

    out = gru_net_forward(x, params)
    out = jax.block_until_ready(out)

    ref = gru_net_reference(x, params)
    assert out.shape == (B, O), out.shape
    # bf16 MXU operands (f32 accumulation) + fused/packed weights reorder and round
    # the accumulation relative to the pure-f32 reference -> ~1e-2 tolerance.
    assert jnp.allclose(out, ref, rtol=2e-2, atol=2e-2), (
        f"max abs diff = {jnp.max(jnp.abs(out - ref))}")

    print("KERNEL_OK")
</pallas_src>

<mosaic_0001>
module attributes {stable_mosaic.version = 11 : i64} {
  func.func @gru_net_kernel(%arg0: i32, %arg1: memref<64x16xbf16, #tpu.memory_space<vmem>>, %arg2: memref<16x384xbf16, #tpu.memory_space<vmem>>, %arg3: memref<1x384xf32, #tpu.memory_space<vmem>>, %arg4: memref<256x896xbf16, #tpu.memory_space<vmem>>, %arg5: memref<1x896xf32, #tpu.memory_space<vmem>>, %arg6: memref<128x128xbf16, #tpu.memory_space<vmem>>, %arg7: memref<1x128xf32, #tpu.memory_space<vmem>>, %arg8: memref<8x128xf32, #tpu.memory_space<vmem>>, %arg9: memref<64x384xf32, #tpu.memory_space<vmem>>) attributes {dimension_semantics = [#tpu.dimension_semantics<arbitrary>], iteration_bounds = array<i64: 1>, scalar_prefetch = 0 : i64, scratch_operands = 1 : i64, tpu.core_type = #tpu.core_type<tc>, window_params = [{pipeline_mode = #tpu.pipeline_mode<synchronous>, transform_indices = @transform_0, window_bounds = array<i64: 64, 16>}, {pipeline_mode = #tpu.pipeline_mode<synchronous>, transform_indices = @transform_1, window_bounds = array<i64: 16, 384>}, {pipeline_mode = #tpu.pipeline_mode<synchronous>, transform_indices = @transform_2, window_bounds = array<i64: 1, 384>}, {pipeline_mode = #tpu.pipeline_mode<synchronous>, transform_indices = @transform_3, window_bounds = array<i64: 256, 896>}, {pipeline_mode = #tpu.pipeline_mode<synchronous>, transform_indices = @transform_4, window_bounds = array<i64: 1, 896>}, {pipeline_mode = #tpu.pipeline_mode<synchronous>, transform_indices = @transform_5, window_bounds = array<i64: 128, 128>}, {pipeline_mode = #tpu.pipeline_mode<synchronous>, transform_indices = @transform_6, window_bounds = array<i64: 1, 128>}, {pipeline_mode = #tpu.pipeline_mode<synchronous>, transform_indices = @transform_7, window_bounds = array<i64: 8, 128>}]} {
    %c0 = arith.constant 0 : index
    %c0_0 = arith.constant 0 : index
    %0 = vector.load %arg1[%c0, %c0_0] : memref<64x16xbf16, #tpu.memory_space<vmem>>, vector<64x16xbf16>
    %c0_1 = arith.constant 0 : index
    %c0_2 = arith.constant 0 : index
    %1 = vector.load %arg2[%c0_1, %c0_2] : memref<16x384xbf16, #tpu.memory_space<vmem>>, vector<16x384xbf16>
    %cst = arith.constant dense<0.000000e+00> : vector<64x384xf32>
    %2 = tpu.matmul %0, %1, %cst {dimension_numbers = #tpu.dot_dimension_numbers<[1], [0], [0], [1], [0, 0, 1, 1], [], []>} : vector<64x16xbf16>, vector<16x384xbf16>, vector<64x384xf32> -> vector<64x384xf32>
    %c0_3 = arith.constant 0 : index
    %c0_4 = arith.constant 0 : index
    %3 = vector.load %arg3[%c0_3, %c0_4] : memref<1x384xf32, #tpu.memory_space<vmem>>, vector<1x384xf32>
    %4 = vector.broadcast %3 : vector<1x384xf32> to vector<64x384xf32>
    %5 = arith.addf %2, %4 : vector<64x384xf32>
    %c0_5 = arith.constant 0 : index
    %c0_6 = arith.constant 0 : index
    %6 = vector.load %arg9[%c0_5, %c0_6] : memref<64x384xf32, #tpu.memory_space<vmem>>, vector<64x384xf32>
    tpu.vector_store %arg9[%c0_5, %c0_6], %5 {strides = array<i32>} : memref<64x384xf32, #tpu.memory_space<vmem>>, vector<64x384xf32>,
    %cst_7 = arith.constant 0.000000e+00 : f32
    %7 = vector.broadcast %cst_7 : f32 to vector<8x128xf32>
    %cst_8 = arith.constant 0.000000e+00 : f32
    %8 = vector.broadcast %cst_8 : f32 to vector<8x128xf32>
    %cst_9 = arith.constant 0.000000e+00 : f32
    %9 = vector.broadcast %cst_9 : f32 to vector<8x384xf32>
    %c0_10 = arith.constant 0 : index
    %c0_11 = arith.constant 0 : index
    %10 = vector.load %arg5[%c0_10, %c0_11] : memref<1x896xf32, #tpu.memory_space<vmem>>, vector<1x896xf32>
    %11 = vector.extract_strided_slice %10 {offsets = [0, 0], sizes = [1, 384], strides = [1, 1]} : vector<1x896xf32> to vector<1x384xf32>
    %12 = vector.broadcast %11 : vector<1x384xf32> to vector<8x384xf32>
    %13 = arith.addf %9, %12 : vector<8x384xf32>
    %c0_12 = arith.constant 0 : index
    %c0_13 = arith.constant 0 : index
    %14 = vector.load %arg9[%c0_12, %c0_13] : memref<64x384xf32, #tpu.memory_space<vmem>>, vector<8x384xf32>
    %15 = vector.extract_strided_slice %14 {offsets = [0, 0], sizes = [8, 256], strides = [1, 1]} : vector<8x384xf32> to vector<8x256xf32>
    %16 = vector.extract_strided_slice %13 {offsets = [0, 0], sizes = [8, 256], strides = [1, 1]} : vector<8x384xf32> to vector<8x256xf32>
    %17 = arith.addf %15, %16 : vector<8x256xf32>
    %18 = arith.negf %17 : vector<8x256xf32>
    %19 = math.exp %18 : vector<8x256xf32>
    %cst_14 = arith.constant 1.000000e+00 : f32
    %20 = vector.broadcast %cst_14 : f32 to vector<8x256xf32>
    %21 = arith.addf %20, %19 : vector<8x256xf32>
    %22 = arith.divf %20, %21 : vector<8x256xf32>
    %23 = vector.extract_strided_slice %14 {offsets = [0, 256], sizes = [8, 128], strides = [1, 1]} : vector<8x384xf32> to vector<8x128xf32>
    %24 = vector.extract_strided_slice %22 {offsets = [0, 0], sizes = [8, 128], strides = [1, 1]} : vector<8x256xf32> to vector<8x128xf32>
    %25 = vector.extract_strided_slice %13 {offsets = [0, 256], sizes = [8, 128], strides = [1, 1]} : vector<8x384xf32> to vector<8x128xf32>
    %26 = arith.mulf %24, %25 : vector<8x128xf32>
    %27 = arith.addf %23, %26 : vector<8x128xf32>
    %28 = math.tanh %27 : vector<8x128xf32>
    %29 = vector.extract_strided_slice %22 {offsets = [0, 128], sizes = [8, 128], strides = [1, 1]} : vector<8x256xf32> to vector<8x128xf32>
    %cst_15 = arith.constant 1.000000e+00 : f32
    %30 = vector.broadcast %cst_15 : f32 to vector<8x128xf32>
    %31 = arith.subf %30, %29 : vector<8x128xf32>
    %32 = arith.mulf %31, %28 : vector<8x128xf32>
    %33 = arith.mulf %29, %7 : vector<8x128xf32>
    %34 = arith.addf %32, %33 : vector<8x128xf32>
    %35 = tpu.concatenate %34, %8 in 1 : vector<8x128xf32>, vector<8x128xf32> -> vector<8x256xf32>
    %36 = arith.truncf %35 : vector<8x256xf32> to vector<8x256xbf16>
    %c0_16 = arith.constant 0 : index
    %c0_17 = arith.constant 0 : index
    %37 = vector.load %arg4[%c0_16, %c0_17] : memref<256x896xbf16, #tpu.memory_space<vmem>>, vector<256x896xbf16>
    %cst_18 = arith.constant dense<0.000000e+00> : vector<8x896xf32>
    %38 = tpu.matmul %36, %37, %cst_18 {dimension_numbers = #tpu.dot_dimension_numbers<[1], [0], [0], [1], [0, 0, 1, 1], [], []>} : vector<8x256xbf16>, vector<256x896xbf16>, vector<8x896xf32> -> vector<8x896xf32>
    %c0_19 = arith.constant 0 : index
    %c0_20 = arith.constant 0 : index
    %39 = vector.load %arg5[%c0_19, %c0_20] : memref<1x896xf32, #tpu.memory_space<vmem>>, vector<1x896xf32>
    %40 = vector.broadcast %39 : vector<1x896xf32> to vector<8x896xf32>
    %41 = arith.addf %38, %40 : vector<8x896xf32>
    %42 = vector.extract_strided_slice %41 {offsets = [0, 0], sizes = [8, 384], strides = [1, 1]} : vector<8x896xf32> to vector<8x384xf32>
    %43 = vector.extract_strided_slice %41 {offsets = [0, 384], sizes = [8, 512], strides = [1, 1]} : vector<8x896xf32> to vector<8x512xf32>
    %44 = vector.extract_strided_slice %43 {offsets = [0, 0], sizes = [8, 256], strides = [1, 1]} : vector<8x512xf32> to vector<8x256xf32>
    %45 = arith.negf %44 : vector<8x256xf32>
    %46 = math.exp %45 : vector<8x256xf32>
    %cst_21 = arith.constant 1.000000e+00 : f32
    %47 = vector.broadcast %cst_21 : f32 to vector<8x256xf32>
    %48 = arith.addf %47, %46 : vector<8x256xf32>
    %49 = arith.divf %47, %48 : vector<8x256xf32>
    %50 = vector.extract_strided_slice %43 {offsets = [0, 256], sizes = [8, 128], strides = [1, 1]} : vector<8x512xf32> to vector<8x128xf32>
    %51 = vector.extract_strided_slice %49 {offsets = [0, 0], sizes = [8, 128], strides = [1, 1]} : vector<8x256xf32> to vector<8x128xf32>
    %52 = vector.extract_strided_slice %43 {offsets = [0, 384], sizes = [8, 128], strides = [1, 1]} : vector<8x512xf32> to vector<8x128xf32>
    %53 = arith.mulf %51, %52 : vector<8x128xf32>
    %54 = arith.addf %50, %53 : vector<8x128xf32>
    %55 = math.tanh %54 : vector<8x128xf32>
    %56 = vector.extract_strided_slice %49 {offsets = [0, 128], sizes = [8, 128], strides = [1, 1]} : vector<8x256xf32> to vector<8x128xf32>
    %cst_22 = arith.constant 1.000000e+00 : f32
    %57 = vector.broadcast %cst_22 : f32 to vector<8x128xf32>
    %58 = arith.subf %57, %56 : vector<8x128xf32>
    %59 = arith.mulf %58, %55 : vector<8x128xf32>
    %60 = arith.mulf %56, %8 : vector<8x128xf32>
    %61 = arith.addf %59, %60 : vector<8x128xf32>
    %c8 = arith.constant 8 : index
    %c0_23 = arith.constant 0 : index
    %62 = vector.load %arg9[%c8, %c0_23] : memref<64x384xf32, #tpu.memory_space<vmem>>, vector<8x384xf32>
    %63 = vector.extract_strided_slice %62 {offsets = [0, 0], sizes = [8, 256], strides = [1, 1]} : vector<8x384xf32> to vector<8x256xf32>
    %64 = vector.extract_strided_slice %42 {offsets = [0, 0], sizes = [8, 256], strides = [1, 1]} : vector<8x384xf32> to vector<8x256xf32>
    %65 = arith.addf %63, %64 : vector<8x256xf32>
    %66 = arith.negf %65 : vector<8x256xf32>
    %67 = math.exp %66 : vector<8x256xf32>
    %cst_24 = arith.constant 1.000000e+00 : f32
    %68 = vector.broadcast %cst_24 : f32 to vector<8x256xf32>
    %69 = arith.addf %68, %67 : vector<8x256xf32>
    %70 = arith.divf %68, %69 : vector<8x256xf32>
    %71 = vector.extract_strided_slice %62 {offsets = [0, 256], sizes = [8, 128], strides = [1, 1]} : vector<8x384xf32> to vector<8x128xf32>
    %72 = vector.extract_strided_slice %70 {offsets = [0, 0], sizes = [8, 128], strides = [1, 1]} : vector<8x256xf32> to vector<8x128xf32>
    %73 = vector.extract_strided_slice %42 {offsets = [0, 256], sizes = [8, 128], strides = [1, 1]} : vector<8x384xf32> to vector<8x128xf32>
    %74 = arith.mulf %72, %73 : vector<8x128xf32>
    %75 = arith.addf %71, %74 : vector<8x128xf32>
    %76 = math.tanh %75 : vector<8x128xf32>
    %77 = vector.extract_strided_slice %70 {offsets = [0, 128], sizes = [8, 128], strides = [1, 1]} : vector<8x256xf32> to vector<8x128xf32>
    %cst_25 = arith.constant 1.000000e+00 : f32
    %78 = vector.broadcast %cst_25 : f32 to vector<8x128xf32>
    %79 = arith.subf %78, %77 : vector<8x128xf32>
    %80 = arith.mulf %79, %76 : vector<8x128xf32>
    %81 = arith.mulf %77, %34 : vector<8x128xf32>
    %82 = arith.addf %80, %81 : vector<8x128xf32>
    %83 = tpu.concatenate %82, %61 in 1 : vector<8x128xf32>, vector<8x128xf32> -> vector<8x256xf32>
    %84 = arith.truncf %83 : vector<8x256xf32> to vector<8x256xbf16>
    %c0_26 = arith.constant 0 : index
    %c0_27 = arith.constant 0 : index
    %85 = vector.load %arg4[%c0_26, %c0_27] : memref<256x896xbf16, #tpu.memory_space<vmem>>, vector<256x896xbf16>
    %cst_28 = arith.constant dense<0.000000e+00> : vector<8x896xf32>
    %86 = tpu.matmul %84, %85, %cst_28 {dimension_numbers = #tpu.dot_dimension_numbers<[1], [0], [0], [1], [0, 0, 1, 1], [], []>} : vector<8x256xbf16>, vector<256x896xbf16>, vector<8x896xf32> -> vector<8x896xf32>
    %c0_29 = arith.constant 0 : index
    %c0_30 = arith.constant 0 : index
    %87 = vector.load %arg5[%c0_29, %c0_30] : memref<1x896xf32, #tpu.memory_space<vmem>>, vector<1x896xf32>
    %88 = vector.broadcast %87 : vector<1x896xf32> to vector<8x896xf32>
    %89 = arith.addf %86, %88 : vector<8x896xf32>
    %90 = vector.extract_strided_slice %89 {offsets = [0, 0], sizes = [8, 384], strides = [1, 1]} : vector<8x896xf32> to vector<8x384xf32>
    %91 = vector.extract_strided_slice %89 {offsets = [0, 384], sizes = [8, 512], strides = [1, 1]} : vector<8x896xf32> to vector<8x512xf32>
    %92 = vector.extract_strided_slice %91 {offsets = [0, 0], sizes = [8, 256], strides = [1, 1]} : vector<8x512xf32> to vector<8x256xf32>
    %93 = arith.negf %92 : vector<8x256xf32>
    %94 = math.exp %93 : vector<8x256xf32>
    %cst_31 = arith.constant 1.000000e+00 : f32
    %95 = vector.broadcast %cst_31 : f32 to vector<8x256xf32>
    %96 = arith.addf %95, %94 : vector<8x256xf32>
    %97 = arith.divf %95, %96 : vector<8x256xf32>
    %98 = vector.extract_strided_slice %91 {offsets = [0, 256], sizes = [8, 128], strides = [1, 1]} : vector<8x512xf32> to vector<8x128xf32>
    %99 = vector.extract_strided_slice %97 {offsets = [0, 0], sizes = [8, 128], strides = [1, 1]} : vector<8x256xf32> to vector<8x128xf32>
    %100 = vector.extract_strided_slice %91 {offsets = [0, 384], sizes = [8, 128], strides = [1, 1]} : vector<8x512xf32> to vector<8x128xf32>
    %101 = arith.mulf %99, %100 : vector<8x128xf32>
    %102 = arith.addf %98, %101 : vector<8x128xf32>
    %103 = math.tanh %102 : vector<8x128xf32>
    %104 = vector.extract_strided_slice %97 {offsets = [0, 128], sizes = [8, 128], strides = [1, 1]} : vector<8x256xf32> to vector<8x128xf32>
    %cst_32 = arith.constant 1.000000e+00 : f32
    %105 = vector.broadcast %cst_32 : f32 to vector<8x128xf32>
    %106 = arith.subf %105, %104 : vector<8x128xf32>
    %107 = arith.mulf %106, %103 : vector<8x128xf32>
    %108 = arith.mulf %104, %61 : vector<8x128xf32>
    %109 = arith.addf %107, %108 : vector<8x128xf32>
    %c16 = arith.constant 16 : index
    %c0_33 = arith.constant 0 : index
    %110 = vector.load %arg9[%c16, %c0_33] : memref<64x384xf32, #tpu.memory_space<vmem>>, vector<8x384xf32>
    %111 = vector.extract_strided_slice %110 {offsets = [0, 0], sizes = [8, 256], strides = [1, 1]} : vector<8x384xf32> to vector<8x256xf32>
    %112 = vector.extract_strided_slice %90 {offsets = [0, 0], sizes = [8, 256], strides = [1, 1]} : vector<8x384xf32> to vector<8x256xf32>
    %113 = arith.addf %111, %112 : vector<8x256xf32>
    %114 = arith.negf %113 : vector<8x256xf32>
    %115 = math.exp %114 : vector<8x256xf32>
    %cst_34 = arith.constant 1.000000e+00 : f32
    %116 = vector.broadcast %cst_34 : f32 to vector<8x256xf32>
    %117 = arith.addf %116, %115 : vector<8x256xf32>
    %118 = arith.divf %116, %117 : vector<8x256xf32>
    %119 = vector.extract_strided_slice %110 {offsets = [0, 256], sizes = [8, 128], strides = [1, 1]} : vector<8x384xf32> to vector<8x128xf32>
    %120 = vector.extract_strided_slice %118 {offsets = [0, 0], sizes = [8, 128], strides = [1, 1]} : vector<8x256xf32> to vector<8x128xf32>
    %121 = vector.extract_strided_slice %90 {offsets = [0, 256], sizes = [8, 128], strides = [1, 1]} : vector<8x384xf32> to vector<8x128xf32>
    %122 = arith.mulf %120, %121 : vector<8x128xf32>
    %123 = arith.addf %119, %122 : vector<8x128xf32>
    %124 = math.tanh %123 : vector<8x128xf32>
    %125 = vector.extract_strided_slice %118 {offsets = [0, 128], sizes = [8, 128], strides = [1, 1]} : vector<8x256xf32> to vector<8x128xf32>
    %cst_35 = arith.constant 1.000000e+00 : f32
    %126 = vector.broadcast %cst_35 : f32 to vector<8x128xf32>
    %127 = arith.subf %126, %125 : vector<8x128xf32>
    %128 = arith.mulf %127, %124 : vector<8x128xf32>
    %129 = arith.mulf %125, %82 : vector<8x128xf32>
    %130 = arith.addf %128, %129 : vector<8x128xf32>
    %131 = tpu.concatenate %130, %109 in 1 : vector<8x128xf32>, vector<8x128xf32> -> vector<8x256xf32>
    %132 = arith.truncf %131 : vector<8x256xf32> to vector<8x256xbf16>
    %c0_36 = arith.constant 0 : index
    %c0_37 = arith.constant 0 : index
    %133 = vector.load %arg4[%c0_36, %c0_37] : memref<256x896xbf16, #tpu.memory_space<vmem>>, vector<256x896xbf16>
    %cst_38 = arith.constant dense<0.000000e+00> : vector<8x896xf32>
    %134 = tpu.matmul %132, %133, %cst_38 {dimension_numbers = #tpu.dot_dimension_numbers<[1], [0], [0], [1], [0, 0, 1, 1], [], []>} : vector<8x256xbf16>, vector<256x896xbf16>, vector<8x896xf32> -> vector<8x896xf32>
    %c0_39 = arith.constant 0 : index
    %c0_40 = arith.constant 0 : index
    %135 = vector.load %arg5[%c0_39, %c0_40] : memref<1x896xf32, #tpu.memory_space<vmem>>, vector<1x896xf32>
    %136 = vector.broadcast %135 : vector<1x896xf32> to vector<8x896xf32>
    %137 = arith.addf %134, %136 : vector<8x896xf32>
    %138 = vector.extract_strided_slice %137 {offsets = [0, 0], sizes = [8, 384], strides = [1, 1]} : vector<8x896xf32> to vector<8x384xf32>
    %139 = vector.extract_strided_slice %137 {offsets = [0, 384], sizes = [8, 512], strides = [1, 1]} : vector<8x896xf32> to vector<8x512xf32>
    %140 = vector.extract_strided_slice %139 {offsets = [0, 0], sizes = [8, 256], strides = [1, 1]} : vector<8x512xf32> to vector<8x256xf32>
    %141 = arith.negf %140 : vector<8x256xf32>
    %142 = math.exp %141 : vector<8x256xf32>
    %cst_41 = arith.constant 1.000000e+00 : f32
    %143 = vector.broadcast %cst_41 : f32 to vector<8x256xf32>
    %144 = arith.addf %143, %142 : vector<8x256xf32>
    %145 = arith.divf %143, %144 : vector<8x256xf32>
    %146 = vector.extract_strided_slice %139 {offsets = [0, 256], sizes = [8, 128], strides = [1, 1]} : vector<8x512xf32> to vector<8x128xf32>
    %147 = vector.extract_strided_slice %145 {offsets = [0, 0], sizes = [8, 128], strides = [1, 1]} : vector<8x256xf32> to vector<8x128xf32>
    %148 = vector.extract_strided_slice %139 {offsets = [0, 384], sizes = [8, 128], strides = [1, 1]} : vector<8x512xf32> to vector<8x128xf32>
    %149 = arith.mulf %147, %148 : vector<8x128xf32>
    %150 = arith.addf %146, %149 : vector<8x128xf32>
    %151 = math.tanh %150 : vector<8x128xf32>
    %152 = vector.extract_strided_slice %145 {offsets = [0, 128], sizes = [8, 128], strides = [1, 1]} : vector<8x256xf32> to vector<8x128xf32>
    %cst_42 = arith.constant 1.000000e+00 : f32
    %153 = vector.broadcast %cst_42 : f32 to vector<8x128xf32>
    %154 = arith.subf %153, %152 : vector<8x128xf32>
    %155 = arith.mulf %154, %151 : vector<8x128xf32>
    %156 = arith.mulf %152, %109 : vector<8x128xf32>
    %157 = arith.addf %155, %156 : vector<8x128xf32>
    %c24 = arith.constant 24 : index
    %c0_43 = arith.constant 0 : index
    %158 = vector.load %arg9[%c24, %c0_43] : memref<64x384xf32, #tpu.memory_space<vmem>>, vector<8x384xf32>
    %159 = vector.extract_strided_slice %158 {offsets = [0, 0], sizes = [8, 256], strides = [1, 1]} : vector<8x384xf32> to vector<8x256xf32>
    %160 = vector.extract_strided_slice %138 {offsets = [0, 0], sizes = [8, 256], strides = [1, 1]} : vector<8x384xf32> to vector<8x256xf32>
    %161 = arith.addf %159, %160 : vector<8x256xf32>
    %162 = arith.negf %161 : vector<8x256xf32>
    %163 = math.exp %162 : vector<8x256xf32>
    %cst_44 = arith.constant 1.000000e+00 : f32
    %164 = vector.broadcast %cst_44 : f32 to vector<8x256xf32>
    %165 = arith.addf %164, %163 : vector<8x256xf32>
    %166 = arith.divf %164, %165 : vector<8x256xf32>
    %167 = vector.extract_strided_slice %158 {offsets = [0, 256], sizes = [8, 128], strides = [1, 1]} : vector<8x384xf32> to vector<8x128xf32>
    %168 = vector.extract_strided_slice %166 {offsets = [0, 0], sizes = [8, 128], strides = [1, 1]} : vector<8x256xf32> to vector<8x128xf32>
    %169 = vector.extract_strided_slice %138 {offsets = [0, 256], sizes = [8, 128], strides = [1, 1]} : vector<8x384xf32> to vector<8x128xf32>
    %170 = arith.mulf %168, %169 : vector<8x128xf32>
    %171 = arith.addf %167, %170 : vector<8x128xf32>
    %172 = math.tanh %171 : vector<8x128xf32>
    %173 = vector.extract_strided_slice %166 {offsets = [0, 128], sizes = [8, 128], strides = [1, 1]} : vector<8x256xf32> to vector<8x128xf32>
    %cst_45 = arith.constant 1.000000e+00 : f32
    %174 = vector.broadcast %cst_45 : f32 to vector<8x128xf32>
    %175 = arith.subf %174, %173 : vector<8x128xf32>
    %176 = arith.mulf %175, %172 : vector<8x128xf32>
    %177 = arith.mulf %173, %130 : vector<8x128xf32>
    %178 = arith.addf %176, %177 : vector<8x128xf32>
    %179 = tpu.concatenate %178, %157 in 1 : vector<8x128xf32>, vector<8x128xf32> -> vector<8x256xf32>
    %180 = arith.truncf %179 : vector<8x256xf32> to vector<8x256xbf16>
    %c0_46 = arith.constant 0 : index
    %c0_47 = arith.constant 0 : index
    %181 = vector.load %arg4[%c0_46, %c0_47] : memref<256x896xbf16, #tpu.memory_space<vmem>>, vector<256x896xbf16>
    %cst_48 = arith.constant dense<0.000000e+00> : vector<8x896xf32>
    %182 = tpu.matmul %180, %181, %cst_48 {dimension_numbers = #tpu.dot_dimension_numbers<[1], [0], [0], [1], [0, 0, 1, 1], [], []>} : vector<8x256xbf16>, vector<256x896xbf16>, vector<8x896xf32> -> vector<8x896xf32>
    %c0_49 = arith.constant 0 : index
    %c0_50 = arith.constant 0 : index
    %183 = vector.load %arg5[%c0_49, %c0_50] : memref<1x896xf32, #tpu.memory_space<vmem>>, vector<1x896xf32>
    %184 = vector.broadcast %183 : vector<1x896xf32> to vector<8x896xf32>
    %185 = arith.addf %182, %184 : vector<8x896xf32>
    %186 = vector.extract_strided_slice %185 {offsets = [0, 0], sizes = [8, 384], strides = [1, 1]} : vector<8x896xf32> to vector<8x384xf32>
    %187 = vector.extract_strided_slice %185 {offsets = [0, 384], sizes = [8, 512], strides = [1, 1]} : vector<8x896xf32> to vector<8x512xf32>
    %188 = vector.extract_strided_slice %187 {offsets = [0, 0], sizes = [8, 256], strides = [1, 1]} : vector<8x512xf32> to vector<8x256xf32>
    %189 = arith.negf %188 : vector<8x256xf32>
    %190 = math.exp %189 : vector<8x256xf32>
    %cst_51 = arith.constant 1.000000e+00 : f32
    %191 = vector.broadcast %cst_51 : f32 to vector<8x256xf32>
    %192 = arith.addf %191, %190 : vector<8x256xf32>
    %193 = arith.divf %191, %192 : vector<8x256xf32>
    %194 = vector.extract_strided_slice %187 {offsets = [0, 256], sizes = [8, 128], strides = [1, 1]} : vector<8x512xf32> to vector<8x128xf32>
    %195 = vector.extract_strided_slice %193 {offsets = [0, 0], sizes = [8, 128], strides = [1, 1]} : vector<8x256xf32> to vector<8x128xf32>
    %196 = vector.extract_strided_slice %187 {offsets = [0, 384], sizes = [8, 128], strides = [1, 1]} : vector<8x512xf32> to vector<8x128xf32>
    %197 = arith.mulf %195, %196 : vector<8x128xf32>
    %198 = arith.addf %194, %197 : vector<8x128xf32>
    %199 = math.tanh %198 : vector<8x128xf32>
    %200 = vector.extract_strided_slice %193 {offsets = [0, 128], sizes = [8, 128], strides = [1, 1]} : vector<8x256xf32> to vector<8x128xf32>
    %cst_52 = arith.constant 1.000000e+00 : f32
    %201 = vector.broadcast %cst_52 : f32 to vector<8x128xf32>
    %202 = arith.subf %201, %200 : vector<8x128xf32>
    %203 = arith.mulf %202, %199 : vector<8x128xf32>
    %204 = arith.mulf %200, %157 : vector<8x128xf32>
    %205 = arith.addf %203, %204 : vector<8x128xf32>
    %c32 = arith.constant 32 : index
    %c0_53 = arith.constant 0 : index
    %206 = vector.load %arg9[%c32, %c0_53] : memref<64x384xf32, #tpu.memory_space<vmem>>, vector<8x384xf32>
    %207 = vector.extract_strided_slice %206 {offsets = [0, 0], sizes = [8, 256], strides = [1, 1]} : vector<8x384xf32> to vector<8x256xf32>
    %208 = vector.extract_strided_slice %186 {offsets = [0, 0], sizes = [8, 256], strides = [1, 1]} : vector<8x384xf32> to vector<8x256xf32>
    %209 = arith.addf %207, %208 : vector<8x256xf32>
    %210 = arith.negf %209 : vector<8x256xf32>
    %211 = math.exp %210 : vector<8x256xf32>
    %cst_54 = arith.constant 1.000000e+00 : f32
    %212 = vector.broadcast %cst_54 : f32 to vector<8x256xf32>
    %213 = arith.addf %212, %211 : vector<8x256xf32>
    %214 = arith.divf %212, %213 : vector<8x256xf32>
    %215 = vector.extract_strided_slice %206 {offsets = [0, 256], sizes = [8, 128], strides = [1, 1]} : vector<8x384xf32> to vector<8x128xf32>
    %216 = vector.extract_strided_slice %214 {offsets = [0, 0], sizes = [8, 128], strides = [1, 1]} : vector<8x256xf32> to vector<8x128xf32>
    %217 = vector.extract_strided_slice %186 {offsets = [0, 256], sizes = [8, 128], strides = [1, 1]} : vector<8x384xf32> to vector<8x128xf32>
    %218 = arith.mulf %216, %217 : vector<8x128xf32>
    %219 = arith.addf %215, %218 : vector<8x128xf32>
    %220 = math.tanh %219 : vector<8x128xf32>
    %221 = vector.extract_strided_slice %214 {offsets = [0, 128], sizes = [8, 128], strides = [1, 1]} : vector<8x256xf32> to vector<8x128xf32>
    %cst_55 = arith.constant 1.000000e+00 : f32
    %222 = vector.broadcast %cst_55 : f32 to vector<8x128xf32>
    %223 = arith.subf %222, %221 : vector<8x128xf32>
    %224 = arith.mulf %223, %220 : vector<8x128xf32>
    %225 = arith.mulf %221, %178 : vector<8x128xf32>
    %226 = arith.addf %224, %225 : vector<8x128xf32>
    %227 = tpu.concatenate %226, %205 in 1 : vector<8x128xf32>, vector<8x128xf32> -> vector<8x256xf32>
    %228 = arith.truncf %227 : vector<8x256xf32> to vector<8x256xbf16>
    %c0_56 = arith.constant 0 : index
    %c0_57 = arith.constant 0 : index
    %229 = vector.load %arg4[%c0_56, %c0_57] : memref<256x896xbf16, #tpu.memory_space<vmem>>, vector<256x896xbf16>
    %cst_58 = arith.constant dense<0.000000e+00> : vector<8x896xf32>
    %230 = tpu.matmul %228, %229, %cst_58 {dimension_numbers = #tpu.dot_dimension_numbers<[1], [0], [0], [1], [0, 0, 1, 1], [], []>} : vector<8x256xbf16>, vector<256x896xbf16>, vector<8x896xf32> -> vector<8x896xf32>
    %c0_59 = arith.constant 0 : index
    %c0_60 = arith.constant 0 : index
    %231 = vector.load %arg5[%c0_59, %c0_60] : memref<1x896xf32, #tpu.memory_space<vmem>>, vector<1x896xf32>
    %232 = vector.broadcast %231 : vector<1x896xf32> to vector<8x896xf32>
    %233 = arith.addf %230, %232 : vector<8x896xf32>
    %234 = vector.extract_strided_slice %233 {offsets = [0, 0], sizes = [8, 384], strides = [1, 1]} : vector<8x896xf32> to vector<8x384xf32>
    %235 = vector.extract_strided_slice %233 {offsets = [0, 384], sizes = [8, 512], strides = [1, 1]} : vector<8x896xf32> to vector<8x512xf32>
    %236 = vector.extract_strided_slice %235 {offsets = [0, 0], sizes = [8, 256], strides = [1, 1]} : vector<8x512xf32> to vector<8x256xf32>
    %237 = arith.negf %236 : vector<8x256xf32>
    %238 = math.exp %237 : vector<8x256xf32>
    %cst_61 = arith.constant 1.000000e+00 : f32
    %239 = vector.broadcast %cst_61 : f32 to vector<8x256xf32>
    %240 = arith.addf %239, %238 : vector<8x256xf32>
    %241 = arith.divf %239, %240 : vector<8x256xf32>
    %242 = vector.extract_strided_slice %235 {offsets = [0, 256], sizes = [8, 128], strides = [1, 1]} : vector<8x512xf32> to vector<8x128xf32>
    %243 = vector.extract_strided_slice %241 {offsets = [0, 0], sizes = [8, 128], strides = [1, 1]} : vector<8x256xf32> to vector<8x128xf32>
    %244 = vector.extract_strided_slice %235 {offsets = [0, 384], sizes = [8, 128], strides = [1, 1]} : vector<8x512xf32> to vector<8x128xf32>
    %245 = arith.mulf %243, %244 : vector<8x128xf32>
    %246 = arith.addf %242, %245 : vector<8x128xf32>
    %247 = math.tanh %246 : vector<8x128xf32>
    %248 = vector.extract_strided_slice %241 {offsets = [0, 128], sizes = [8, 128], strides = [1, 1]} : vector<8x256xf32> to vector<8x128xf32>
    %cst_62 = arith.constant 1.000000e+00 : f32
    %249 = vector.broadcast %cst_62 : f32 to vector<8x128xf32>
    %250 = arith.subf %249, %248 : vector<8x128xf32>
    %251 = arith.mulf %250, %247 : vector<8x128xf32>
    %252 = arith.mulf %248, %205 : vector<8x128xf32>
    %253 = arith.addf %251, %252 : vector<8x128xf32>
    %c40 = arith.constant 40 : index
    %c0_63 = arith.constant 0 : index
    %254 = vector.load %arg9[%c40, %c0_63] : memref<64x384xf32, #tpu.memory_space<vmem>>, vector<8x384xf32>
    %255 = vector.extract_strided_slice %254 {offsets = [0, 0], sizes = [8, 256], strides = [1, 1]} : vector<8x384xf32> to vector<8x256xf32>
    %256 = vector.extract_strided_slice %234 {offsets = [0, 0], sizes = [8, 256], strides = [1, 1]} : vector<8x384xf32> to vector<8x256xf32>
    %257 = arith.addf %255, %256 : vector<8x256xf32>
    %258 = arith.negf %257 : vector<8x256xf32>
    %259 = math.exp %258 : vector<8x256xf32>
    %cst_64 = arith.constant 1.000000e+00 : f32
    %260 = vector.broadcast %cst_64 : f32 to vector<8x256xf32>
    %261 = arith.addf %260, %259 : vector<8x256xf32>
    %262 = arith.divf %260, %261 : vector<8x256xf32>
    %263 = vector.extract_strided_slice %254 {offsets = [0, 256], sizes = [8, 128], strides = [1, 1]} : vector<8x384xf32> to vector<8x128xf32>
    %264 = vector.extract_strided_slice %262 {offsets = [0, 0], sizes = [8, 128], strides = [1, 1]} : vector<8x256xf32> to vector<8x128xf32>
    %265 = vector.extract_strided_slice %234 {offsets = [0, 256], sizes = [8, 128], strides = [1, 1]} : vector<8x384xf32> to vector<8x128xf32>
    %266 = arith.mulf %264, %265 : vector<8x128xf32>
    %267 = arith.addf %263, %266 : vector<8x128xf32>
    %268 = math.tanh %267 : vector<8x128xf32>
    %269 = vector.extract_strided_slice %262 {offsets = [0, 128], sizes = [8, 128], strides = [1, 1]} : vector<8x256xf32> to vector<8x128xf32>
    %cst_65 = arith.constant 1.000000e+00 : f32
    %270 = vector.broadcast %cst_65 : f32 to vector<8x128xf32>
    %271 = arith.subf %270, %269 : vector<8x128xf32>
    %272 = arith.mulf %271, %268 : vector<8x128xf32>
    %273 = arith.mulf %269, %226 : vector<8x128xf32>
    %274 = arith.addf %272, %273 : vector<8x128xf32>
    %275 = tpu.concatenate %274, %253 in 1 : vector<8x128xf32>, vector<8x128xf32> -> vector<8x256xf32>
    %276 = arith.truncf %275 : vector<8x256xf32> to vector<8x256xbf16>
    %c0_66 = arith.constant 0 : index
    %c0_67 = arith.constant 0 : index
    %277 = vector.load %arg4[%c0_66, %c0_67] : memref<256x896xbf16, #tpu.memory_space<vmem>>, vector<256x896xbf16>
    %cst_68 = arith.constant dense<0.000000e+00> : vector<8x896xf32>
    %278 = tpu.matmul %276, %277, %cst_68 {dimension_numbers = #tpu.dot_dimension_numbers<[1], [0], [0], [1], [0, 0, 1, 1], [], []>} : vector<8x256xbf16>, vector<256x896xbf16>, vector<8x896xf32> -> vector<8x896xf32>
    %c0_69 = arith.constant 0 : index
    %c0_70 = arith.constant 0 : index
    %279 = vector.load %arg5[%c0_69, %c0_70] : memref<1x896xf32, #tpu.memory_space<vmem>>, vector<1x896xf32>
    %280 = vector.broadcast %279 : vector<1x896xf32> to vector<8x896xf32>
    %281 = arith.addf %278, %280 : vector<8x896xf32>
    %282 = vector.extract_strided_slice %281 {offsets = [0, 0], sizes = [8, 384], strides = [1, 1]} : vector<8x896xf32> to vector<8x384xf32>
    %283 = vector.extract_strided_slice %281 {offsets = [0, 384], sizes = [8, 512], strides = [1, 1]} : vector<8x896xf32> to vector<8x512xf32>
    %284 = vector.extract_strided_slice %283 {offsets = [0, 0], sizes = [8, 256], strides = [1, 1]} : vector<8x512xf32> to vector<8x256xf32>
    %285 = arith.negf %284 : vector<8x256xf32>
    %286 = math.exp %285 : vector<8x256xf32>
    %cst_71 = arith.constant 1.000000e+00 : f32
    %287 = vector.broadcast %cst_71 : f32 to vector<8x256xf32>
    %288 = arith.addf %287, %286 : vector<8x256xf32>
    %289 = arith.divf %287, %288 : vector<8x256xf32>
    %290 = vector.extract_strided_slice %283 {offsets = [0, 256], sizes = [8, 128], strides = [1, 1]} : vector<8x512xf32> to vector<8x128xf32>
    %291 = vector.extract_strided_slice %289 {offsets = [0, 0], sizes = [8, 128], strides = [1, 1]} : vector<8x256xf32> to vector<8x128xf32>
    %292 = vector.extract_strided_slice %283 {offsets = [0, 384], sizes = [8, 128], strides = [1, 1]} : vector<8x512xf32> to vector<8x128xf32>
    %293 = arith.mulf %291, %292 : vector<8x128xf32>
    %294 = arith.addf %290, %293 : vector<8x128xf32>
    %295 = math.tanh %294 : vector<8x128xf32>
    %296 = vector.extract_strided_slice %289 {offsets = [0, 128], sizes = [8, 128], strides = [1, 1]} : vector<8x256xf32> to vector<8x128xf32>
    %cst_72 = arith.constant 1.000000e+00 : f32
    %297 = vector.broadcast %cst_72 : f32 to vector<8x128xf32>
    %298 = arith.subf %297, %296 : vector<8x128xf32>
    %299 = arith.mulf %298, %295 : vector<8x128xf32>
    %300 = arith.mulf %296, %253 : vector<8x128xf32>
    %301 = arith.addf %299, %300 : vector<8x128xf32>
    %c48 = arith.constant 48 : index
    %c0_73 = arith.constant 0 : index
    %302 = vector.load %arg9[%c48, %c0_73] : memref<64x384xf32, #tpu.memory_space<vmem>>, vector<8x384xf32>
    %303 = vector.extract_strided_slice %302 {offsets = [0, 0], sizes = [8, 256], strides = [1, 1]} : vector<8x384xf32> to vector<8x256xf32>
    %304 = vector.extract_strided_slice %282 {offsets = [0, 0], sizes = [8, 256], strides = [1, 1]} : vector<8x384xf32> to vector<8x256xf32>
    %305 = arith.addf %303, %304 : vector<8x256xf32>
    %306 = arith.negf %305 : vector<8x256xf32>
    %307 = math.exp %306 : vector<8x256xf32>
    %cst_74 = arith.constant 1.000000e+00 : f32
    %308 = vector.broadcast %cst_74 : f32 to vector<8x256xf32>
    %309 = arith.addf %308, %307 : vector<8x256xf32>
    %310 = arith.divf %308, %309 : vector<8x256xf32>
    %311 = vector.extract_strided_slice %302 {offsets = [0, 256], sizes = [8, 128], strides = [1, 1]} : vector<8x384xf32> to vector<8x128xf32>
    %312 = vector.extract_strided_slice %310 {offsets = [0, 0], sizes = [8, 128], strides = [1, 1]} : vector<8x256xf32> to vector<8x128xf32>
    %313 = vector.extract_strided_slice %282 {offsets = [0, 256], sizes = [8, 128], strides = [1, 1]} : vector<8x384xf32> to vector<8x128xf32>
    %314 = arith.mulf %312, %313 : vector<8x128xf32>
    %315 = arith.addf %311, %314 : vector<8x128xf32>
    %316 = math.tanh %315 : vector<8x128xf32>
    %317 = vector.extract_strided_slice %310 {offsets = [0, 128], sizes = [8, 128], strides = [1, 1]} : vector<8x256xf32> to vector<8x128xf32>
    %cst_75 = arith.constant 1.000000e+00 : f32
    %318 = vector.broadcast %cst_75 : f32 to vector<8x128xf32>
    %319 = arith.subf %318, %317 : vector<8x128xf32>
    %320 = arith.mulf %319, %316 : vector<8x128xf32>
    %321 = arith.mulf %317, %274 : vector<8x128xf32>
    %322 = arith.addf %320, %321 : vector<8x128xf32>
    %323 = tpu.concatenate %322, %301 in 1 : vector<8x128xf32>, vector<8x128xf32> -> vector<8x256xf32>
    %324 = arith.truncf %323 : vector<8x256xf32> to vector<8x256xbf16>
    %c0_76 = arith.constant 0 : index
    %c0_77 = arith.constant 0 : index
    %325 = vector.load %arg4[%c0_76, %c0_77] : memref<256x896xbf16, #tpu.memory_space<vmem>>, vector<256x896xbf16>
    %cst_78 = arith.constant dense<0.000000e+00> : vector<8x896xf32>
    %326 = tpu.matmul %324, %325, %cst_78 {dimension_numbers = #tpu.dot_dimension_numbers<[1], [0], [0], [1], [0, 0, 1, 1], [], []>} : vector<8x256xbf16>, vector<256x896xbf16>, vector<8x896xf32> -> vector<8x896xf32>
    %c0_79 = arith.constant 0 : index
    %c0_80 = arith.constant 0 : index
    %327 = vector.load %arg5[%c0_79, %c0_80] : memref<1x896xf32, #tpu.memory_space<vmem>>, vector<1x896xf32>
    %328 = vector.broadcast %327 : vector<1x896xf32> to vector<8x896xf32>
    %329 = arith.addf %326, %328 : vector<8x896xf32>
    %330 = vector.extract_strided_slice %329 {offsets = [0, 0], sizes = [8, 384], strides = [1, 1]} : vector<8x896xf32> to vector<8x384xf32>
    %331 = vector.extract_strided_slice %329 {offsets = [0, 384], sizes = [8, 512], strides = [1, 1]} : vector<8x896xf32> to vector<8x512xf32>
    %332 = vector.extract_strided_slice %331 {offsets = [0, 0], sizes = [8, 256], strides = [1, 1]} : vector<8x512xf32> to vector<8x256xf32>
    %333 = arith.negf %332 : vector<8x256xf32>
    %334 = math.exp %333 : vector<8x256xf32>
    %cst_81 = arith.constant 1.000000e+00 : f32
    %335 = vector.broadcast %cst_81 : f32 to vector<8x256xf32>
    %336 = arith.addf %335, %334 : vector<8x256xf32>
    %337 = arith.divf %335, %336 : vector<8x256xf32>
    %338 = vector.extract_strided_slice %331 {offsets = [0, 256], sizes = [8, 128], strides = [1, 1]} : vector<8x512xf32> to vector<8x128xf32>
    %339 = vector.extract_strided_slice %337 {offsets = [0, 0], sizes = [8, 128], strides = [1, 1]} : vector<8x256xf32> to vector<8x128xf32>
    %340 = vector.extract_strided_slice %331 {offsets = [0, 384], sizes = [8, 128], strides = [1, 1]} : vector<8x512xf32> to vector<8x128xf32>
    %341 = arith.mulf %339, %340 : vector<8x128xf32>
    %342 = arith.addf %338, %341 : vector<8x128xf32>
    %343 = math.tanh %342 : vector<8x128xf32>
    %344 = vector.extract_strided_slice %337 {offsets = [0, 128], sizes = [8, 128], strides = [1, 1]} : vector<8x256xf32> to vector<8x128xf32>
    %cst_82 = arith.constant 1.000000e+00 : f32
    %345 = vector.broadcast %cst_82 : f32 to vector<8x128xf32>
    %346 = arith.subf %345, %344 : vector<8x128xf32>
    %347 = arith.mulf %346, %343 : vector<8x128xf32>
    %348 = arith.mulf %344, %301 : vector<8x128xf32>
    %349 = arith.addf %347, %348 : vector<8x128xf32>
    %c56 = arith.constant 56 : index
    %c0_83 = arith.constant 0 : index
    %350 = vector.load %arg9[%c56, %c0_83] : memref<64x384xf32, #tpu.memory_space<vmem>>, vector<8x384xf32>
    %351 = vector.extract_strided_slice %350 {offsets = [0, 0], sizes = [8, 256], strides = [1, 1]} : vector<8x384xf32> to vector<8x256xf32>
    %352 = vector.extract_strided_slice %330 {offsets = [0, 0], sizes = [8, 256], strides = [1, 1]} : vector<8x384xf32> to vector<8x256xf32>
    %353 = arith.addf %351, %352 : vector<8x256xf32>
    %354 = arith.negf %353 : vector<8x256xf32>
    %355 = math.exp %354 : vector<8x256xf32>
    %cst_84 = arith.constant 1.000000e+00 : f32
    %356 = vector.broadcast %cst_84 : f32 to vector<8x256xf32>
    %357 = arith.addf %356, %355 : vector<8x256xf32>
    %358 = arith.divf %356, %357 : vector<8x256xf32>
    %359 = vector.extract_strided_slice %350 {offsets = [0, 256], sizes = [8, 128], strides = [1, 1]} : vector<8x384xf32> to vector<8x128xf32>
    %360 = vector.extract_strided_slice %358 {offsets = [0, 0], sizes = [8, 128], strides = [1, 1]} : vector<8x256xf32> to vector<8x128xf32>
    %361 = vector.extract_strided_slice %330 {offsets = [0, 256], sizes = [8, 128], strides = [1, 1]} : vector<8x384xf32> to vector<8x128xf32>
    %362 = arith.mulf %360, %361 : vector<8x128xf32>
    %363 = arith.addf %359, %362 : vector<8x128xf32>
    %364 = math.tanh %363 : vector<8x128xf32>
    %365 = vector.extract_strided_slice %358 {offsets = [0, 128], sizes = [8, 128], strides = [1, 1]} : vector<8x256xf32> to vector<8x128xf32>
    %cst_85 = arith.constant 1.000000e+00 : f32
    %366 = vector.broadcast %cst_85 : f32 to vector<8x128xf32>
    %367 = arith.subf %366, %365 : vector<8x128xf32>
    %368 = arith.mulf %367, %364 : vector<8x128xf32>
    %369 = arith.mulf %365, %322 : vector<8x128xf32>
    %370 = arith.addf %368, %369 : vector<8x128xf32>
    %371 = tpu.concatenate %370, %349 in 1 : vector<8x128xf32>, vector<8x128xf32> -> vector<8x256xf32>
    %372 = arith.truncf %371 : vector<8x256xf32> to vector<8x256xbf16>
    %c0_86 = arith.constant 0 : index
    %c0_87 = arith.constant 0 : index
    %373 = vector.load %arg4[%c0_86, %c0_87] : memref<256x896xbf16, #tpu.memory_space<vmem>>, vector<256x896xbf16>
    %cst_88 = arith.constant dense<0.000000e+00> : vector<8x896xf32>
    %374 = tpu.matmul %372, %373, %cst_88 {dimension_numbers = #tpu.dot_dimension_numbers<[1], [0], [0], [1], [0, 0, 1, 1], [], []>} : vector<8x256xbf16>, vector<256x896xbf16>, vector<8x896xf32> -> vector<8x896xf32>
    %c0_89 = arith.constant 0 : index
    %c0_90 = arith.constant 0 : index
    %375 = vector.load %arg5[%c0_89, %c0_90] : memref<1x896xf32, #tpu.memory_space<vmem>>, vector<1x896xf32>
    %376 = vector.broadcast %375 : vector<1x896xf32> to vector<8x896xf32>
    %377 = arith.addf %374, %376 : vector<8x896xf32>
    %378 = vector.extract_strided_slice %377 {offsets = [0, 384], sizes = [8, 512], strides = [1, 1]} : vector<8x896xf32> to vector<8x512xf32>
    %379 = vector.extract_strided_slice %378 {offsets = [0, 0], sizes = [8, 256], strides = [1, 1]} : vector<8x512xf32> to vector<8x256xf32>
    %380 = arith.negf %379 : vector<8x256xf32>
    %381 = math.exp %380 : vector<8x256xf32>
    %cst_91 = arith.constant 1.000000e+00 : f32
    %382 = vector.broadcast %cst_91 : f32 to vector<8x256xf32>
    %383 = arith.addf %382, %381 : vector<8x256xf32>
    %384 = arith.divf %382, %383 : vector<8x256xf32>
    %385 = vector.extract_strided_slice %378 {offsets = [0, 256], sizes = [8, 128], strides = [1, 1]} : vector<8x512xf32> to vector<8x128xf32>
    %386 = vector.extract_strided_slice %384 {offsets = [0, 0], sizes = [8, 128], strides = [1, 1]} : vector<8x256xf32> to vector<8x128xf32>
    %387 = vector.extract_strided_slice %378 {offsets = [0, 384], sizes = [8, 128], strides = [1, 1]} : vector<8x512xf32> to vector<8x128xf32>
    %388 = arith.mulf %386, %387 : vector<8x128xf32>
    %389 = arith.addf %385, %388 : vector<8x128xf32>
    %390 = math.tanh %389 : vector<8x128xf32>
    %391 = vector.extract_strided_slice %384 {offsets = [0, 128], sizes = [8, 128], strides = [1, 1]} : vector<8x256xf32> to vector<8x128xf32>
    %cst_92 = arith.constant 1.000000e+00 : f32
    %392 = vector.broadcast %cst_92 : f32 to vector<8x128xf32>
    %393 = arith.subf %392, %391 : vector<8x128xf32>
    %394 = arith.mulf %393, %390 : vector<8x128xf32>
    %395 = arith.mulf %391, %349 : vector<8x128xf32>
    %396 = arith.addf %394, %395 : vector<8x128xf32>
    %397 = arith.truncf %396 : vector<8x128xf32> to vector<8x128xbf16>
    %c0_93 = arith.constant 0 : index
    %c0_94 = arith.constant 0 : index
    %398 = vector.load %arg6[%c0_93, %c0_94] : memref<128x128xbf16, #tpu.memory_space<vmem>>, vector<128x128xbf16>
    %cst_95 = arith.constant dense<0.000000e+00> : vector<8x128xf32>
    %399 = tpu.matmul %397, %398, %cst_95 {dimension_numbers = #tpu.dot_dimension_numbers<[1], [0], [0], [1], [0, 0, 1, 1], [], []>} : vector<8x128xbf16>, vector<128x128xbf16>, vector<8x128xf32> -> vector<8x128xf32>
    %c0_96 = arith.constant 0 : index
    %c0_97 = arith.constant 0 : index
    %400 = vector.load %arg7[%c0_96, %c0_97] : memref<1x128xf32, #tpu.memory_space<vmem>>, vector<1x128xf32>
    %401 = vector.broadcast %400 : vector<1x128xf32> to vector<8x128xf32>
    %402 = arith.addf %399, %401 : vector<8x128xf32>
    %c0_98 = arith.constant 0 : index
    %c0_99 = arith.constant 0 : index
    %403 = vector.load %arg8[%c0_98, %c0_99] : memref<8x128xf32, #tpu.memory_space<vmem>>, vector<8x128xf32>
    tpu.vector_store %arg8[%c0_98, %c0_99], %402 {strides = array<i32>} : memref<8x128xf32, #tpu.memory_space<vmem>>, vector<8x128xf32>,
    return
  }
  func.func @transform_0(%arg0: i32) -> (i32, i32) {
    %c0_i32 = arith.constant 0 : i32
    %c0_i32_0 = arith.constant 0 : i32
    %c0_i32_1 = arith.constant 0 : i32
    return %c0_i32, %c0_i32_0 : i32, i32
  }
  func.func @transform_1(%arg0: i32) -> (i32, i32) {
    %c0_i32 = arith.constant 0 : i32
    %c0_i32_0 = arith.constant 0 : i32
    %c0_i32_1 = arith.constant 0 : i32
    return %c0_i32, %c0_i32_0 : i32, i32
  }
  func.func @transform_2(%arg0: i32) -> (i32, i32) {
    %c0_i32 = arith.constant 0 : i32
    %c0_i32_0 = arith.constant 0 : i32
    %c0_i32_1 = arith.constant 0 : i32
    return %c0_i32, %c0_i32_0 : i32, i32
  }
  func.func @transform_3(%arg0: i32) -> (i32, i32) {
    %c0_i32 = arith.constant 0 : i32
    %c0_i32_0 = arith.constant 0 : i32
    %c0_i32_1 = arith.constant 0 : i32
    return %c0_i32, %c0_i32_0 : i32, i32
  }
  func.func @transform_4(%arg0: i32) -> (i32, i32) {
    %c0_i32 = arith.constant 0 : i32
    %c0_i32_0 = arith.constant 0 : i32
    %c0_i32_1 = arith.constant 0 : i32
    return %c0_i32, %c0_i32_0 : i32, i32
  }
  func.func @transform_5(%arg0: i32) -> (i32, i32) {
    %c0_i32 = arith.constant 0 : i32
    %c0_i32_0 = arith.constant 0 : i32
    %c0_i32_1 = arith.constant 0 : i32
    return %c0_i32, %c0_i32_0 : i32, i32
  }
  func.func @transform_6(%arg0: i32) -> (i32, i32) {
    %c0_i32 = arith.constant 0 : i32
    %c0_i32_0 = arith.constant 0 : i32
    %c0_i32_1 = arith.constant 0 : i32
    return %c0_i32, %c0_i32_0 : i32, i32
  }
  func.func @transform_7(%arg0: i32) -> (i32, i32) {
    %c0_i32 = arith.constant 0 : i32
    %c0_i32_0 = arith.constant 0 : i32
    %c0_i32_1 = arith.constant 0 : i32
    return %c0_i32, %c0_i32_0 : i32, i32
  }
}

</mosaic_0001>

<llo_original>
// kernel: tpu_custom_call.1
$region0: #{tpu_custom_call.1}
  #allocation0 [shape = 'u32[]', space=smem, size = 0x4, offset = 0x4, fixed_abs, tag = 'smem constant byte address 0x4 - core index']
  #allocation1 [shape = 'u32[144,128]{1,0:T(1,128)}', space=vmem, size = 0x12000, scoped, tag = 'internal scratch']
  #allocation2 [shape = 'f32[64,384]{1,0:T(8,128)}', space=vmem, size = 0x18000, scoped, tag = 'scratch operand']
  %s0 = inlined_call_operand.vmem [shape: bf16[64,16], index: 0, kind: input, shape index: {}]
  %s1 = inlined_call_operand.vmem [shape: bf16[16,384], index: 1, kind: input, shape index: {}]
  %s2 = inlined_call_operand.vmem [shape: f32[1,384], index: 2, kind: input, shape index: {}]
  %s3 = inlined_call_operand.hbm [shape: bf16[256,896], index: 3, kind: input, shape index: {}]
  %s4 = inlined_call_operand.vmem [shape: f32[1,896], index: 4, kind: input, shape index: {}]
  %s5 = inlined_call_operand.hbm [shape: bf16[128,128], index: 5, kind: input, shape index: {}]
  %s6 = inlined_call_operand.vmem [shape: f32[1,128], index: 6, kind: input, shape index: {}]
  %s7 = inlined_call_operand.hbm [shape: f32[8,128], index: 7, kind: output, shape index: {}]
  %s8 = sld [smem:[#allocation0]]
  $region46: #{tpu_custom_call.1} parent=0
    _
  %s10 = ssub.s32 1, %s8
  %s11 = scalar_select 0, %s10, %s8
  $region1: #{tpu_custom_call.1} parent=0
    #allocation3 [shape = 'u8[458752]{0}', space=vmem, size = 0x70000, scoped, tag = 'input window, operand 3, single buffered']
    #allocation4 [shape = 's32[1]{0}', space=sflag, size = 0x4, scoped, tag = 'scoped memory for tpu_custom_call.1']
    #allocation5 [shape = 's32[1]{0}', space=sflag, size = 0x4, scoped, tag = 'scoped memory for tpu_custom_call.1']
    #allocation6 [shape = 'u8[32768]{0}', space=vmem, size = 0x8000, scoped, tag = 'input window, operand 5, single buffered']
    #allocation7 [shape = 's32[1]{0}', space=sflag, size = 0x4, scoped, tag = 'scoped memory for tpu_custom_call.1']
    #allocation8 [shape = 'u8[4096]{0}', space=vmem, size = 0x1000, scoped, tag = 'output window, operand 0, single buffered']
    %12 = vsyncpa [#allocation4], 0
    %13 = vsyncpa [#allocation7], 0
    %14 = vsyncpa [#allocation5], 0
    // Predicated region
    $region2: #{tpu_custom_call.1} parent=1 // pred_check
      _
    $region3: #{tpu_custom_call.1} parent=1 // pred_check_branch
      %16 = sbr.rel (0) target = $region5
    $region4: #{tpu_custom_call.1} parent=1 // pred_region
      _
    $region5: #{tpu_custom_call.1} parent=1 // pred_fallthru
      _
    // Predicated region
    $region6: #{tpu_custom_call.1} parent=1 // pred_check
      _
    $region7: #{tpu_custom_call.1} parent=1 // pred_check_branch
      %18 = sbr.rel (0) target = $region9
    $region8: #{tpu_custom_call.1} parent=1 // pred_region
      _
    $region9: #{tpu_custom_call.1} parent=1 // pred_fallthru
      _
    // Predicated region
    $region10: #{tpu_custom_call.1} parent=1 // pred_check
      _
    $region11: #{tpu_custom_call.1} parent=1 // pred_check_branch
      %20 = sbr.rel (0) target = $region13
    $region12: #{tpu_custom_call.1} parent=1 // pred_region
      _
    $region13: #{tpu_custom_call.1} parent=1 // pred_fallthru
      _
    // Predicated region
    $region14: #{tpu_custom_call.1} parent=1 // pred_check
      _
    $region15: #{tpu_custom_call.1} parent=1 // pred_check_branch
      %22 = sbr.rel (0) target = $region17
    $region16: #{tpu_custom_call.1} parent=1 // pred_region
      %s24 = ssub.s32 14336, 14336
      %25 = vsyncadd [#allocation4], %s24
      %s26 = sshll.u32 [#allocation3], 4
      %s27 = int_to_ptr.vmem [resolvable:$true] %s26
      %32 = dma.hbm_to_vmem [thread:$0]  %s3, 14336, %s27, [#allocation4], 448, 448, 28
    $region17: #{tpu_custom_call.1} parent=1 // pred_fallthru
      _
    // Predicated region
    $region18: #{tpu_custom_call.1} parent=1 // pred_check
      _
    $region19: #{tpu_custom_call.1} parent=1 // pred_check_branch
      %34 = sbr.rel (0) target = $region21
    $region20: #{tpu_custom_call.1} parent=1 // pred_region
      _
    $region21: #{tpu_custom_call.1} parent=1 // pred_fallthru
      _
    // Predicated region
    $region22: #{tpu_custom_call.1} parent=1 // pred_check
      _
    $region23: #{tpu_custom_call.1} parent=1 // pred_check_branch
      %36 = sbr.rel (0) target = $region25
    $region24: #{tpu_custom_call.1} parent=1 // pred_region
      %s38 = ssub.s32 1024, 1024
      %39 = vsyncadd [#allocation7], %s38
      %s40 = sshll.u32 [#allocation6], 4
      %s41 = int_to_ptr.vmem [resolvable:$true] %s40
      %46 = dma.hbm_to_vmem [thread:$0]  %s5, 1024, %s41, [#allocation7], 64, 64, 4
    $region25: #{tpu_custom_call.1} parent=1 // pred_fallthru
      _
    // Predicated region
    $region26: #{tpu_custom_call.1} parent=1 // pred_check
      _
    $region27: #{tpu_custom_call.1} parent=1 // pred_check_branch
      %48 = sbr.rel (0) target = $region29
    $region28: #{tpu_custom_call.1} parent=1 // pred_region
      _
    $region29: #{tpu_custom_call.1} parent=1 // pred_fallthru
      _
    // Predicated region
    $region30: #{tpu_custom_call.1} parent=1 // pred_check
      _
    $region31: #{tpu_custom_call.1} parent=1 // pred_check_branch
      %50 = sbr.rel (0) target = $region33
    $region32: #{tpu_custom_call.1} parent=1 // pred_region
      %51 = dma.done [#allocation4], 14336
    $region33: #{tpu_custom_call.1} parent=1 // pred_fallthru
      _
    // Predicated region
    $region34: #{tpu_custom_call.1} parent=1 // pred_check
      _
    $region35: #{tpu_custom_call.1} parent=1 // pred_check_branch
      %53 = sbr.rel (0) target = $region37
    $region36: #{tpu_custom_call.1} parent=1 // pred_region
      %54 = dma.done [#allocation7], 1024
    $region37: #{tpu_custom_call.1} parent=1 // pred_fallthru
      _
    %v56 = vld [vmem:[%s0] sm:$0xf]
    %v57 = vld [vmem:[%s0 + $0x4] sm:$0xf]
    %v58 = vld [vmem:[%s0 + $0x8] sm:$0xf]
    %v59 = vld [vmem:[%s0 + $0xc] sm:$0xf]
    %v60 = vld [vmem:[%s0 + $0x10] sm:$0xf]
    %v61 = vld [vmem:[%s0 + $0x14] sm:$0xf]
    %v62 = vld [vmem:[%s0 + $0x18] sm:$0xf]
    %v63 = vld [vmem:[%s0 + $0x1c] sm:$0xf]
    %v64 = vld [vmem:[%s1] sm:$0xff]
    %v65 = vld [vmem:[%s1 + $0x8] sm:$0xf]
    %v66 = vld [vmem:[%s1 + $0xc] sm:$0xff]
    %v67 = vld [vmem:[%s1 + $0x14] sm:$0xf]
    %v68 = vld [vmem:[%s2] sm:$0x7]
    %v70 = vlaneseq
    %v71 = vshrl.u32 %v70, 7
    %v72 = vsub.s32 0, %v71
    %v73 = vrot.slane %v68, %v72
    %v74 = vlaneseq
    %v75 = vshrl.u32 %v74, 7
    %v76 = vsub.s32 1, %v75
    %v77 = vrot.slane %v68, %v76
    %v78 = vlaneseq
    %v79 = vshrl.u32 %v78, 7
    %v80 = vsub.s32 2, %v79
    %v81 = vrot.slane %v68, %v80
    %v93 = vunpack.c.l.b16 %v56
    %v94 = vunpack.c.l.b16 %v57
    %v95 = vunpack.c.l.b16 %v58
    %v96 = vunpack.c.l.b16 %v59
    %v97 = vunpack.c.l.b16 %v60
    %v98 = vunpack.c.l.b16 %v61
    %v99 = vunpack.c.l.b16 %v62
    %v100 = vunpack.c.l.b16 %v63
    %v101 = vpack.c.b16 %v94, %v93
    %v102 = vpack.c.b16 %v96, %v95
    %v103 = vpack.c.b16 %v98, %v97
    %v104 = vpack.c.b16 %v100, %v99
    %v109 = vunpack.c.l.b16 %v64
    %v110 = vunpack.c.h.b16 %v64
    %v111 = vunpack.c.l.b16 %v65
    %v112 = vunpack.c.l.b16 %v66
    %v113 = vunpack.c.h.b16 %v66
    %v114 = vunpack.c.l.b16 %v67
    %v115 = vpack.c.b16 %v112, %v109
    %v116 = vpack.c.b16 %v113, %v110
    %v117 = vpack.c.b16 %v114, %v111
    %vm121 = vcmask 130048
    %v123 = vsel %vm121, %v101, 0
    %v126 = vsel %vm121, %v102, 0
    %v129 = vsel %vm121, %v103, 0
    %v132 = vsel %vm121, %v104, 0
    %134 = vmatprep.subr.bf16.mxu0 %v116
    %135 = vmatpush1.bf16.msra.mxu0 %v115
    %136 = vmatprep.subr.bf16.mxu0 0
    %137 = vmatpush1.bf16.msra.mxu0 0
    %138 = vmatprep.subr.bf16.mxu0 0
    %139 = vmatpush1.bf16.msra.mxu0 0
    %140 = vmatprep.subr.bf16.mxu0 0
    %141 = vmatpush1.bf16.msra.mxu0 0
    %142 = vmatprep.subr.bf16.mxu0 0
    %143 = vmatpush1.bf16.msra.mxu0 0
    %144 = vmatprep.subr.bf16.mxu0 0
    %145 = vmatpush1.bf16.msra.mxu0 0
    %146 = vmatprep.subr.bf16.mxu0 0
    %147 = vmatpush1.bf16.msra.mxu0 0
    %148 = vmatprep.subr.bf16.mxu0 0
    %149 = vmatpush1.bf16.msra.mxu0 0
    %150 = vmatprep.subr.bf16.mxu0 0
    %151 = vmatpush1.bf16.msra.mxu0 0
    %152 = vmatprep.subr.bf16.mxu0 0
    %153 = vmatpush1.bf16.msra.mxu0 0
    %154 = vmatprep.subr.bf16.mxu0 0
    %155 = vmatpush1.bf16.msra.mxu0 0
    %156 = vmatprep.subr.bf16.mxu0 0
    %157 = vmatpush1.bf16.msra.mxu0 0
    %158 = vmatprep.subr.bf16.mxu0 0
    %159 = vmatpush1.bf16.msra.mxu0 0
    %160 = vmatprep.subr.bf16.mxu0 0
    %161 = vmatpush1.bf16.msra.mxu0 0
    %162 = vmatprep.subr.bf16.mxu0 0
    %163 = vmatpush1.bf16.msra.mxu0 0
    %164 = vmatprep.subr.bf16.mxu0 0
    %165 = vmatpush1.bf16.msra.mxu0 0
    %166 = vmatprep.mubr.bf16.mxu0 0
    %167 = vmatmul.mubr.bf16.gmra.mrb[0].mxu0 %v123
    %v168 = vpop.f32.mrb[0].mxu0
    %v169 = vadd.f32 %v73, %v168
    %v170 = vpop.f32.mrb[0].mxu0
    %v171 = vadd.f32 %v77, %v170
    %v172 = vpop.f32.mrb[0].mxu0
    %v173 = vadd.f32 %v73, %v172
    %v174 = vpop.f32.mrb[0].mxu0
    %v175 = vadd.f32 %v77, %v174
    %176 = vmatprep.mubr.bf16.mxu0 0
    %177 = vmatmul.mubr.bf16.gmra.mrb[0].mxu0 %v126
    %v178 = vpop.f32.mrb[0].mxu0
    %v179 = vadd.f32 %v73, %v178
    %v180 = vpop.f32.mrb[0].mxu0
    %v181 = vadd.f32 %v77, %v180
    %v182 = vpop.f32.mrb[0].mxu0
    %v183 = vadd.f32 %v73, %v182
    %v184 = vpop.f32.mrb[0].mxu0
    %v185 = vadd.f32 %v77, %v184
    %186 = vmatprep.mubr.bf16.mxu0 0
    %187 = vmatmul.mubr.bf16.gmra.mrb[0].mxu0 %v129
    %v188 = vpop.f32.mrb[0].mxu0
    %v189 = vadd.f32 %v73, %v188
    %v190 = vpop.f32.mrb[0].mxu0
    %v191 = vadd.f32 %v77, %v190
    %v192 = vpop.f32.mrb[0].mxu0
    %v193 = vadd.f32 %v73, %v192
    %v194 = vpop.f32.mrb[0].mxu0
    %v195 = vadd.f32 %v77, %v194
    %196 = vmatprep.mubr.bf16.mxu0 0
    %197 = vmatmul.mubr.bf16.gmra.mrb[0].mxu0 %v132
    %v198 = vpop.f32.mrb[0].mxu0
    %v199 = vadd.f32 %v73, %v198
    %v200 = vpop.f32.mrb[0].mxu0
    %v201 = vadd.f32 %v77, %v200
    %v202 = vpop.f32.mrb[0].mxu0
    %v203 = vadd.f32 %v73, %v202
    %v204 = vpop.f32.mrb[0].mxu0
    %v205 = vadd.f32 %v77, %v204
    %206 = vdwg.mxu0
    %207 = vmatprep.subr.bf16.mxu0 0
    %208 = vmatpush1.bf16.msra.mxu0 %v117
    %209 = vmatprep.subr.bf16.mxu0 0
    %210 = vmatpush1.bf16.msra.mxu0 0
    %211 = vmatprep.subr.bf16.mxu0 0
    %212 = vmatpush1.bf16.msra.mxu0 0
    %213 = vmatprep.subr.bf16.mxu0 0
    %214 = vmatpush1.bf16.msra.mxu0 0
    %215 = vmatprep.subr.bf16.mxu0 0
    %216 = vmatpush1.bf16.msra.mxu0 0
    %217 = vmatprep.subr.bf16.mxu0 0
    %218 = vmatpush1.bf16.msra.mxu0 0
    %219 = vmatprep.subr.bf16.mxu0 0
    %220 = vmatpush1.bf16.msra.mxu0 0
    %221 = vmatprep.subr.bf16.mxu0 0
    %222 = vmatpush1.bf16.msra.mxu0 0
    %223 = vmatprep.subr.bf16.mxu0 0
    %224 = vmatpush1.bf16.msra.mxu0 0
    %225 = vmatprep.subr.bf16.mxu0 0
    %226 = vmatpush1.bf16.msra.mxu0 0
    %227 = vmatprep.subr.bf16.mxu0 0
    %228 = vmatpush1.bf16.msra.mxu0 0
    %229 = vmatprep.subr.bf16.mxu0 0
    %230 = vmatpush1.bf16.msra.mxu0 0
    %231 = vmatprep.subr.bf16.mxu0 0
    %232 = vmatpush1.bf16.msra.mxu0 0
    %233 = vmatprep.subr.bf16.mxu0 0
    %234 = vmatpush1.bf16.msra.mxu0 0
    %235 = vmatprep.subr.bf16.mxu0 0
    %236 = vmatpush1.bf16.msra.mxu0 0
    %237 = vmatprep.subr.bf16.mxu0 0
    %238 = vmatpush1.bf16.msra.mxu0 0
    %239 = vmatprep.mubr.bf16.mxu0 0
    %240 = vmatmul.mubr.bf16.gmra.mrb[0].mxu0 %v123
    %v241 = vpop.f32.mrb[0].mxu0
    %v242 = vadd.f32 %v81, %v241
    %v243 = vpop.f32.mrb[0].mxu0
    %v244 = vpop.f32.mrb[0].mxu0
    %v245 = vadd.f32 %v81, %v244
    %v246 = vpop.f32.mrb[0].mxu0
    %247 = vmatprep.mubr.bf16.mxu0 0
    %248 = vmatmul.mubr.bf16.gmra.mrb[0].mxu0 %v126
    %v249 = vpop.f32.mrb[0].mxu0
    %v250 = vadd.f32 %v81, %v249
    %v251 = vpop.f32.mrb[0].mxu0
    %v252 = vpop.f32.mrb[0].mxu0
    %v253 = vadd.f32 %v81, %v252
    %v254 = vpop.f32.mrb[0].mxu0
    %255 = vmatprep.mubr.bf16.mxu0 0
    %256 = vmatmul.mubr.bf16.gmra.mrb[0].mxu0 %v129
    %v257 = vpop.f32.mrb[0].mxu0
    %v258 = vadd.f32 %v81, %v257
    %v259 = vpop.f32.mrb[0].mxu0
    %v260 = vpop.f32.mrb[0].mxu0
    %v261 = vadd.f32 %v81, %v260
    %v262 = vpop.f32.mrb[0].mxu0
    %263 = vmatprep.mubr.bf16.mxu0 0
    %264 = vmatmul.mubr.bf16.gmra.mrb[0].mxu0 %v132
    %v265 = vpop.f32.mrb[0].mxu0
    %v266 = vadd.f32 %v81, %v265
    %v267 = vpop.f32.mrb[0].mxu0
    %v268 = vpop.f32.mrb[0].mxu0
    %v269 = vadd.f32 %v81, %v268
    %v270 = vpop.f32.mrb[0].mxu0
    %271 = vdwg.mxu0
    %272 = vst [vmem:[#allocation2] sm:$0xff] %v169
    %273 = vst [vmem:[#allocation2 + $0x8] sm:$0xff] %v171
    %274 = vst [vmem:[#allocation2 + $0x10] sm:$0xff] %v242
    %275 = vst [vmem:[#allocation2 + $0x18] sm:$0xff] %v173
    %276 = vst [vmem:[#allocation2 + $0x20] sm:$0xff] %v175
    %277 = vst [vmem:[#allocation2 + $0x28] sm:$0xff] %v245
    %278 = vst [vmem:[#allocation2 + $0x30] sm:$0xff] %v179
    %279 = vst [vmem:[#allocation2 + $0x38] sm:$0xff] %v181
    %280 = vst [vmem:[#allocation2 + $0x40] sm:$0xff] %v250
    %281 = vst [vmem:[#allocation2 + $0x48] sm:$0xff] %v183
    %282 = vst [vmem:[#allocation2 + $0x50] sm:$0xff] %v185
    %283 = vst [vmem:[#allocation2 + $0x58] sm:$0xff] %v253
    %284 = vst [vmem:[#allocation2 + $0x60] sm:$0xff] %v189
    %285 = vst [vmem:[#allocation2 + $0x68] sm:$0xff] %v191
    %286 = vst [vmem:[#allocation2 + $0x70] sm:$0xff] %v258
    %287 = vst [vmem:[#allocation2 + $0x78] sm:$0xff] %v193
    %288 = vst [vmem:[#allocation2 + $0x80] sm:$0xff] %v195
    %289 = vst [vmem:[#allocation2 + $0x88] sm:$0xff] %v261
    %290 = vst [vmem:[#allocation2 + $0x90] sm:$0xff] %v199
    %291 = vst [vmem:[#allocation2 + $0x98] sm:$0xff] %v201
    %292 = vst [vmem:[#allocation2 + $0xa0] sm:$0xff] %v266
    %293 = vst [vmem:[#allocation2 + $0xa8] sm:$0xff] %v203
    %294 = vst [vmem:[#allocation2 + $0xb0] sm:$0xff] %v205
    %295 = vst [vmem:[#allocation2 + $0xb8] sm:$0xff] %v269
    %v296 = vld [vmem:[%s4] sm:$0xff]
    %v298 = vlaneseq
    %v299 = vshrl.u32 %v298, 7
    %v300 = vsub.s32 0, %v299
    %v301 = vrot.slane %v296, %v300
    %v302 = vlaneseq
    %v303 = vshrl.u32 %v302, 7
    %v304 = vsub.s32 1, %v303
    %v305 = vrot.slane %v296, %v304
    %v306 = vlaneseq
    %v307 = vshrl.u32 %v306, 7
    %v308 = vsub.s32 2, %v307
    %v309 = vrot.slane %v296, %v308
    %v313 = vadd.f32 %v301, 0.0
    %v314 = vadd.f32 %v305, 0.0
    %v315 = vadd.f32 %v309, 0.0
    %v316 = vld [vmem:[#allocation2] sm:$0xff]
    %v317 = vld [vmem:[#allocation2 + $0x8] sm:$0xff]
    %v318 = vld [vmem:[#allocation2 + $0x10] sm:$0xff]
    %v319 = vadd.f32 %v316, %v313
    %v320 = vadd.f32 %v317, %v314
    %v321 = vxor.u32 %v319, 2147483648
    %v322 = vxor.u32 %v320, 2147483648
    %v323 = vmul.f32 %v321, 1.442695
    %v324 = vpow.pop %v323
    %v325 = vmul.f32 %v322, 1.442695
    %v326 = vpow.pop %v325
    %v327 = vadd.f32 %v324, 1.0
    %v328 = vadd.f32 %v326, 1.0
    %v329 = vrcp.pop %v327
    %v330 = vmul.f32 1.0, %v329
    %v331 = vrcp.pop %v328
    %v332 = vmul.f32 1.0, %v331
    %v333 = vmul.f32 %v330, %v315
    %v334 = vadd.f32 %v318, %v333
    %v335 = vtanh.pop %v334
    %v336 = vsub.f32 1.0, %v332
    %v337 = vmul.f32 %v336, %v335
    %v338 = vmul.f32 %v332, 0.0
    %v339 = vadd.f32 %v337, %v338
    %v340 = vpack.c.bf16 %v339, %v339
    %v341 = vpack.c.bf16 0.0, 0.0
    %v342 = vld [vmem:[#allocation3] sm:$0xff]
    %v343 = vld [vmem:[#allocation3 + $0x8] sm:$0xff]
    %v344 = vld [vmem:[#allocation3 + $0x10] sm:$0xff]
    %v345 = vld [vmem:[#allocation3 + $0x18] sm:$0xf]
    %v346 = vld [vmem:[#allocation3 + $0x1c] sm:$0xff]
    %v347 = vld [vmem:[#allocation3 + $0x24] sm:$0xff]
    %v348 = vld [vmem:[#allocation3 + $0x2c] sm:$0xff]
    %v349 = vld [vmem:[#allocation3 + $0x34] sm:$0xf]
    %v350 = vld [vmem:[#allocation3 + $0x38] sm:$0xff]
    %v351 = vld [vmem:[#allocation3 + $0x40] sm:$0xff]
    %v352 = vld [vmem:[#allocation3 + $0x48] sm:$0xff]
    %v353 = vld [vmem:[#allocation3 + $0x50] sm:$0xf]
    %v354 = vld [vmem:[#allocation3 + $0x54] sm:$0xff]
    %v355 = vld [vmem:[#allocation3 + $0x5c] sm:$0xff]
    %v356 = vld [vmem:[#allocation3 + $0x64] sm:$0xff]
    %v357 = vld [vmem:[#allocation3 + $0x6c] sm:$0xf]
    %v358 = vld [vmem:[#allocation3 + $0x70] sm:$0xff]
    %v359 = vld [vmem:[#allocation3 + $0x78] sm:$0xff]
    %v360 = vld [vmem:[#allocation3 + $0x80] sm:$0xff]
    %v361 = vld [vmem:[#allocation3 + $0x88] sm:$0xf]
    %v362 = vld [vmem:[#allocation3 + $0x8c] sm:$0xff]
    %v363 = vld [vmem:[#allocation3 + $0x94] sm:$0xff]
    %v364 = vld [vmem:[#allocation3 + $0x9c] sm:$0xff]
    %v365 = vld [vmem:[#allocation3 + $0xa4] sm:$0xf]
    %v366 = vld [vmem:[#allocation3 + $0xa8] sm:$0xff]
    %v367 = vld [vmem:[#allocation3 + $0xb0] sm:$0xff]
    %v368 = vld [vmem:[#allocation3 + $0xb8] sm:$0xff]
    %v369 = vld [vmem:[#allocation3 + $0xc0] sm:$0xf]
    %v370 = vld [vmem:[#allocation3 + $0xc4] sm:$0xff]
    %v371 = vld [vmem:[#allocation3 + $0xcc] sm:$0xff]
    %v372 = vld [vmem:[#allocation3 + $0xd4] sm:$0xff]
    %v373 = vld [vmem:[#allocation3 + $0xdc] sm:$0xf]
    %v374 = vld [vmem:[#allocation3 + $0xe0] sm:$0xff]
    %v375 = vld [vmem:[#allocation3 + $0xe8] sm:$0xff]
    %v376 = vld [vmem:[#allocation3 + $0xf0] sm:$0xff]
    %v377 = vld [vmem:[#allocation3 + $0xf8] sm:$0xf]
    %v378 = vld [vmem:[#allocation3 + $0xfc] sm:$0xff]
    %v379 = vld [vmem:[#allocation3 + $0x104] sm:$0xff]
    %v380 = vld [vmem:[#allocation3 + $0x10c] sm:$0xff]
    %v381 = vld [vmem:[#allocation3 + $0x114] sm:$0xf]
    %v382 = vld [vmem:[#allocation3 + $0x118] sm:$0xff]
    %v383 = vld [vmem:[#allocation3 + $0x120] sm:$0xff]
    %v384 = vld [vmem:[#allocation3 + $0x128] sm:$0xff]
    %v385 = vld [vmem:[#allocation3 + $0x130] sm:$0xf]
    %v386 = vld [vmem:[#allocation3 + $0x134] sm:$0xff]
    %v387 = vld [vmem:[#allocation3 + $0x13c] sm:$0xff]
    %v388 = vld [vmem:[#allocation3 + $0x144] sm:$0xff]
    %v389 = vld [vmem:[#allocation3 + $0x14c] sm:$0xf]
    %v390 = vld [vmem:[#allocation3 + $0x150] sm:$0xff]
    %v391 = vld [vmem:[#allocation3 + $0x158] sm:$0xff]
    %v392 = vld [vmem:[#allocation3 + $0x160] sm:$0xff]
    %v393 = vld [vmem:[#allocation3 + $0x168] sm:$0xf]
    %v394 = vld [vmem:[#allocation3 + $0x16c] sm:$0xff]
    %v395 = vld [vmem:[#allocation3 + $0x174] sm:$0xff]
    %v396 = vld [vmem:[#allocation3 + $0x17c] sm:$0xff]
    %v397 = vld [vmem:[#allocation3 + $0x184] sm:$0xf]
    %v398 = vld [vmem:[#allocation3 + $0x188] sm:$0xff]
    %v399 = vld [vmem:[#allocation3 + $0x190] sm:$0xff]
    %v400 = vld [vmem:[#allocation3 + $0x198] sm:$0xff]
    %v401 = vld [vmem:[#allocation3 + $0x1a0] sm:$0xf]
    %v402 = vld [vmem:[#allocation3 + $0x1a4] sm:$0xff]
    %v403 = vld [vmem:[#allocation3 + $0x1ac] sm:$0xff]
    %v404 = vld [vmem:[#allocation3 + $0x1b4] sm:$0xff]
    %v405 = vld [vmem:[#allocation3 + $0x1bc] sm:$0xf]
    %v406 = vld [vmem:[#allocation3 + $0x1c0] sm:$0xff]
    %v407 = vld [vmem:[#allocation3 + $0x1c8] sm:$0xff]
    %v408 = vld [vmem:[#allocation3 + $0x1d0] sm:$0xff]
    %v409 = vld [vmem:[#allocation3 + $0x1d8] sm:$0xf]
    %v410 = vld [vmem:[#allocation3 + $0x1dc] sm:$0xff]
    %v411 = vld [vmem:[#allocation3 + $0x1e4] sm:$0xff]
    %v412 = vld [vmem:[#allocation3 + $0x1ec] sm:$0xff]
    %v413 = vld [vmem:[#allocation3 + $0x1f4] sm:$0xf]
    %v414 = vld [vmem:[#allocation3 + $0x1f8] sm:$0xff]
    %v415 = vld [vmem:[#allocation3 + $0x200] sm:$0xff]
    %v416 = vld [vmem:[#allocation3 + $0x208] sm:$0xff]
    %v417 = vld [vmem:[#allocation3 + $0x210] sm:$0xf]
    %v418 = vld [vmem:[#allocation3 + $0x214] sm:$0xff]
    %v419 = vld [vmem:[#allocation3 + $0x21c] sm:$0xff]
    %v420 = vld [vmem:[#allocation3 + $0x224] sm:$0xff]
    %v421 = vld [vmem:[#allocation3 + $0x22c] sm:$0xf]
    %v422 = vld [vmem:[#allocation3 + $0x230] sm:$0xff]
    %v423 = vld [vmem:[#allocation3 + $0x238] sm:$0xff]
    %v424 = vld [vmem:[#allocation3 + $0x240] sm:$0xff]
    %v425 = vld [vmem:[#allocation3 + $0x248] sm:$0xf]
    %v426 = vld [vmem:[#allocation3 + $0x24c] sm:$0xff]
    %v427 = vld [vmem:[#allocation3 + $0x254] sm:$0xff]
    %v428 = vld [vmem:[#allocation3 + $0x25c] sm:$0xff]
    %v429 = vld [vmem:[#allocation3 + $0x264] sm:$0xf]
    %v430 = vld [vmem:[#allocation3 + $0x268] sm:$0xff]
    %v431 = vld [vmem:[#allocation3 + $0x270] sm:$0xff]
    %v432 = vld [vmem:[#allocation3 + $0x278] sm:$0xff]
    %v433 = vld [vmem:[#allocation3 + $0x280] sm:$0xf]
    %v434 = vld [vmem:[#allocation3 + $0x284] sm:$0xff]
    %v435 = vld [vmem:[#allocation3 + $0x28c] sm:$0xff]
    %v436 = vld [vmem:[#allocation3 + $0x294] sm:$0xff]
    %v437 = vld [vmem:[#allocation3 + $0x29c] sm:$0xf]
    %v438 = vld [vmem:[#allocation3 + $0x2a0] sm:$0xff]
    %v439 = vld [vmem:[#allocation3 + $0x2a8] sm:$0xff]
    %v440 = vld [vmem:[#allocation3 + $0x2b0] sm:$0xff]
    %v441 = vld [vmem:[#allocation3 + $0x2b8] sm:$0xf]
    %v442 = vld [vmem:[#allocation3 + $0x2bc] sm:$0xff]
    %v443 = vld [vmem:[#allocation3 + $0x2c4] sm:$0xff]
    %v444 = vld [vmem:[#allocation3 + $0x2cc] sm:$0xff]
    %v445 = vld [vmem:[#allocation3 + $0x2d4] sm:$0xf]
    %v446 = vld [vmem:[#allocation3 + $0x2d8] sm:$0xff]
    %v447 = vld [vmem:[#allocation3 + $0x2e0] sm:$0xff]
    %v448 = vld [vmem:[#allocation3 + $0x2e8] sm:$0xff]
    %v449 = vld [vmem:[#allocation3 + $0x2f0] sm:$0xf]
    %v450 = vld [vmem:[#allocation3 + $0x2f4] sm:$0xff]
    %v451 = vld [vmem:[#allocation3 + $0x2fc] sm:$0xff]
    %v452 = vld [vmem:[#allocation3 + $0x304] sm:$0xff]
    %v453 = vld [vmem:[#allocation3 + $0x30c] sm:$0xf]
    %v454 = vld [vmem:[#allocation3 + $0x310] sm:$0xff]
    %v455 = vld [vmem:[#allocation3 + $0x318] sm:$0xff]
    %v456 = vld [vmem:[#allocation3 + $0x320] sm:$0xff]
    %v457 = vld [vmem:[#allocation3 + $0x328] sm:$0xf]
    %v458 = vld [vmem:[#allocation3 + $0x32c] sm:$0xff]
    %v459 = vld [vmem:[#allocation3 + $0x334] sm:$0xff]
    %v460 = vld [vmem:[#allocation3 + $0x33c] sm:$0xff]
    %v461 = vld [vmem:[#allocation3 + $0x344] sm:$0xf]
    %v462 = vld [vmem:[#allocation3 + $0x348] sm:$0xff]
    %v463 = vld [vmem:[#allocation3 + $0x350] sm:$0xff]
    %v464 = vld [vmem:[#allocation3 + $0x358] sm:$0xff]
    %v465 = vld [vmem:[#allocation3 + $0x360] sm:$0xf]
    %v466 = vld [vmem:[#allocation3 + $0x364] sm:$0xff]
    %v467 = vld [vmem:[#allocation3 + $0x36c] sm:$0xff]
    %v468 = vld [vmem:[#allocation3 + $0x374] sm:$0xff]
    %v469 = vld [vmem:[#allocation3 + $0x37c] sm:$0xf]
    %v470 = vlaneseq
    %v471 = vshrl.u32 %v470, 7
    %v472 = vsub.s32 3, %v471
    %v473 = vrot.slane %v296, %v472
    %v474 = vlaneseq
    %v475 = vshrl.u32 %v474, 7
    %v476 = vsub.s32 4, %v475
    %v477 = vrot.slane %v296, %v476
    %v478 = vlaneseq
    %v479 = vshrl.u32 %v478, 7
    %v480 = vsub.s32 5, %v479
    %v481 = vrot.slane %v296, %v480
    %v482 = vlaneseq
    %v483 = vshrl.u32 %v482, 7
    %v484 = vsub.s32 6, %v483
    %v485 = vrot.slane %v296, %v484
    %v618 = vunpack.c.l.b16 %v342
    %v619 = vunpack.c.h.b16 %v342
    %v620 = vunpack.c.l.b16 %v343
    %v621 = vunpack.c.h.b16 %v343
    %v622 = vunpack.c.l.b16 %v344
    %v623 = vunpack.c.h.b16 %v344
    %v624 = vunpack.c.l.b16 %v345
    %v625 = vunpack.c.l.b16 %v346
    %v626 = vunpack.c.h.b16 %v346
    %v627 = vunpack.c.l.b16 %v347
    %v628 = vunpack.c.h.b16 %v347
    %v629 = vunpack.c.l.b16 %v348
    %v630 = vunpack.c.h.b16 %v348
    %v631 = vunpack.c.l.b16 %v349
    %v632 = vunpack.c.l.b16 %v350
    %v633 = vunpack.c.h.b16 %v350
    %v634 = vunpack.c.l.b16 %v351
    %v635 = vunpack.c.h.b16 %v351
    %v636 = vunpack.c.l.b16 %v352
    %v637 = vunpack.c.h.b16 %v352
    %v638 = vunpack.c.l.b16 %v353
    %v639 = vunpack.c.l.b16 %v354
    %v640 = vunpack.c.h.b16 %v354
    %v641 = vunpack.c.l.b16 %v355
    %v642 = vunpack.c.h.b16 %v355
    %v643 = vunpack.c.l.b16 %v356
    %v644 = vunpack.c.h.b16 %v356
    %v645 = vunpack.c.l.b16 %v357
    %v646 = vunpack.c.l.b16 %v358
    %v647 = vunpack.c.h.b16 %v358
    %v648 = vunpack.c.l.b16 %v359
    %v649 = vunpack.c.h.b16 %v359
    %v650 = vunpack.c.l.b16 %v360
    %v651 = vunpack.c.h.b16 %v360
    %v652 = vunpack.c.l.b16 %v361
    %v653 = vunpack.c.l.b16 %v362
    %v654 = vunpack.c.h.b16 %v362
    %v655 = vunpack.c.l.b16 %v363
    %v656 = vunpack.c.h.b16 %v363
    %v657 = vunpack.c.l.b16 %v364
    %v658 = vunpack.c.h.b16 %v364
    %v659 = vunpack.c.l.b16 %v365
    %v660 = vunpack.c.l.b16 %v366
    %v661 = vunpack.c.h.b16 %v366
    %v662 = vunpack.c.l.b16 %v367
    %v663 = vunpack.c.h.b16 %v367
    %v664 = vunpack.c.l.b16 %v368
    %v665 = vunpack.c.h.b16 %v368
    %v666 = vunpack.c.l.b16 %v369
    %v667 = vunpack.c.l.b16 %v370
    %v668 = vunpack.c.h.b16 %v370
    %v669 = vunpack.c.l.b16 %v371
    %v670 = vunpack.c.h.b16 %v371
    %v671 = vunpack.c.l.b16 %v372
    %v672 = vunpack.c.h.b16 %v372
    %v673 = vunpack.c.l.b16 %v373
    %v674 = vunpack.c.l.b16 %v374
    %v675 = vunpack.c.h.b16 %v374
    %v676 = vunpack.c.l.b16 %v375
    %v677 = vunpack.c.h.b16 %v375
    %v678 = vunpack.c.l.b16 %v376
    %v679 = vunpack.c.h.b16 %v376
    %v680 = vunpack.c.l.b16 %v377
    %v681 = vunpack.c.l.b16 %v378
    %v682 = vunpack.c.h.b16 %v378
    %v683 = vunpack.c.l.b16 %v379
    %v684 = vunpack.c.h.b16 %v379
    %v685 = vunpack.c.l.b16 %v380
    %v686 = vunpack.c.h.b16 %v380
    %v687 = vunpack.c.l.b16 %v381
    %v688 = vunpack.c.l.b16 %v382
    %v689 = vunpack.c.h.b16 %v382
    %v690 = vunpack.c.l.b16 %v383
    %v691 = vunpack.c.h.b16 %v383
    %v692 = vunpack.c.l.b16 %v384
    %v693 = vunpack.c.h.b16 %v384
    %v694 = vunpack.c.l.b16 %v385
    %v695 = vunpack.c.l.b16 %v386
    %v696 = vunpack.c.h.b16 %v386
    %v697 = vunpack.c.l.b16 %v387
    %v698 = vunpack.c.h.b16 %v387
    %v699 = vunpack.c.l.b16 %v388
    %v700 = vunpack.c.h.b16 %v388
    %v701 = vunpack.c.l.b16 %v389
    %v702 = vunpack.c.l.b16 %v390
    %v703 = vunpack.c.h.b16 %v390
    %v704 = vunpack.c.l.b16 %v391
    %v705 = vunpack.c.h.b16 %v391
    %v706 = vunpack.c.l.b16 %v392
    %v707 = vunpack.c.h.b16 %v392
    %v708 = vunpack.c.l.b16 %v393
    %v709 = vunpack.c.l.b16 %v394
    %v710 = vunpack.c.h.b16 %v394
    %v711 = vunpack.c.l.b16 %v395
    %v712 = vunpack.c.h.b16 %v395
    %v713 = vunpack.c.l.b16 %v396
    %v714 = vunpack.c.h.b16 %v396
    %v715 = vunpack.c.l.b16 %v397
    %v716 = vunpack.c.l.b16 %v398
    %v717 = vunpack.c.h.b16 %v398
    %v718 = vunpack.c.l.b16 %v399
    %v719 = vunpack.c.h.b16 %v399
    %v720 = vunpack.c.l.b16 %v400
    %v721 = vunpack.c.h.b16 %v400
    %v722 = vunpack.c.l.b16 %v401
    %v723 = vunpack.c.l.b16 %v402
    %v724 = vunpack.c.h.b16 %v402
    %v725 = vunpack.c.l.b16 %v403
    %v726 = vunpack.c.h.b16 %v403
    %v727 = vunpack.c.l.b16 %v404
    %v728 = vunpack.c.h.b16 %v404
    %v729 = vunpack.c.l.b16 %v405
    %v730 = vunpack.c.l.b16 %v406
    %v731 = vunpack.c.h.b16 %v406
    %v732 = vunpack.c.l.b16 %v407
    %v733 = vunpack.c.h.b16 %v407
    %v734 = vunpack.c.l.b16 %v408
    %v735 = vunpack.c.h.b16 %v408
    %v736 = vunpack.c.l.b16 %v409
    %v737 = vunpack.c.l.b16 %v410
    %v738 = vunpack.c.h.b16 %v410
    %v739 = vunpack.c.l.b16 %v411
    %v740 = vunpack.c.h.b16 %v411
    %v741 = vunpack.c.l.b16 %v412
    %v742 = vunpack.c.h.b16 %v412
    %v743 = vunpack.c.l.b16 %v413
    %v744 = vunpack.c.l.b16 %v414
    %v745 = vunpack.c.h.b16 %v414
    %v746 = vunpack.c.l.b16 %v415
    %v747 = vunpack.c.h.b16 %v415
    %v748 = vunpack.c.l.b16 %v416
    %v749 = vunpack.c.h.b16 %v416
    %v750 = vunpack.c.l.b16 %v417
    %v751 = vunpack.c.l.b16 %v418
    %v752 = vunpack.c.h.b16 %v418
    %v753 = vunpack.c.l.b16 %v419
    %v754 = vunpack.c.h.b16 %v419
    %v755 = vunpack.c.l.b16 %v420
    %v756 = vunpack.c.h.b16 %v420
    %v757 = vunpack.c.l.b16 %v421
    %v758 = vunpack.c.l.b16 %v422
    %v759 = vunpack.c.h.b16 %v422
    %v760 = vunpack.c.l.b16 %v423
    %v761 = vunpack.c.h.b16 %v423
    %v762 = vunpack.c.l.b16 %v424
    %v763 = vunpack.c.h.b16 %v424
    %v764 = vunpack.c.l.b16 %v425
    %v765 = vunpack.c.l.b16 %v426
    %v766 = vunpack.c.h.b16 %v426
    %v767 = vunpack.c.l.b16 %v427
    %v768 = vunpack.c.h.b16 %v427
    %v769 = vunpack.c.l.b16 %v428
    %v770 = vunpack.c.h.b16 %v428
    %v771 = vunpack.c.l.b16 %v429
    %v772 = vunpack.c.l.b16 %v430
    %v773 = vunpack.c.h.b16 %v430
    %v774 = vunpack.c.l.b16 %v431
    %v775 = vunpack.c.h.b16 %v431
    %v776 = vunpack.c.l.b16 %v432
    %v777 = vunpack.c.h.b16 %v432
    %v778 = vunpack.c.l.b16 %v433
    %v779 = vunpack.c.l.b16 %v434
    %v780 = vunpack.c.h.b16 %v434
    %v781 = vunpack.c.l.b16 %v435
    %v782 = vunpack.c.h.b16 %v435
    %v783 = vunpack.c.l.b16 %v436
    %v784 = vunpack.c.h.b16 %v436
    %v785 = vunpack.c.l.b16 %v437
    %v786 = vunpack.c.l.b16 %v438
    %v787 = vunpack.c.h.b16 %v438
    %v788 = vunpack.c.l.b16 %v439
    %v789 = vunpack.c.h.b16 %v439
    %v790 = vunpack.c.l.b16 %v440
    %v791 = vunpack.c.h.b16 %v440
    %v792 = vunpack.c.l.b16 %v441
    %v793 = vunpack.c.l.b16 %v442
    %v794 = vunpack.c.h.b16 %v442
    %v795 = vunpack.c.l.b16 %v443
    %v796 = vunpack.c.h.b16 %v443
    %v797 = vunpack.c.l.b16 %v444
    %v798 = vunpack.c.h.b16 %v444
    %v799 = vunpack.c.l.b16 %v445
    %v800 = vunpack.c.l.b16 %v446
    %v801 = vunpack.c.h.b16 %v446
    %v802 = vunpack.c.l.b16 %v447
    %v803 = vunpack.c.h.b16 %v447
    %v804 = vunpack.c.l.b16 %v448
    %v805 = vunpack.c.h.b16 %v448
    %v806 = vunpack.c.l.b16 %v449
    %v807 = vunpack.c.l.b16 %v450
    %v808 = vunpack.c.h.b16 %v450
    %v809 = vunpack.c.l.b16 %v451
    %v810 = vunpack.c.h.b16 %v451
    %v811 = vunpack.c.l.b16 %v452
    %v812 = vunpack.c.h.b16 %v452
    %v813 = vunpack.c.l.b16 %v453
    %v814 = vunpack.c.l.b16 %v454
    %v815 = vunpack.c.h.b16 %v454
    %v816 = vunpack.c.l.b16 %v455
    %v817 = vunpack.c.h.b16 %v455
    %v818 = vunpack.c.l.b16 %v456
    %v819 = vunpack.c.h.b16 %v456
    %v820 = vunpack.c.l.b16 %v457
    %v821 = vunpack.c.l.b16 %v458
    %v822 = vunpack.c.h.b16 %v458
    %v823 = vunpack.c.l.b16 %v459
    %v824 = vunpack.c.h.b16 %v459
    %v825 = vunpack.c.l.b16 %v460
    %v826 = vunpack.c.h.b16 %v460
    %v827 = vunpack.c.l.b16 %v461
    %v828 = vunpack.c.l.b16 %v462
    %v829 = vunpack.c.h.b16 %v462
    %v830 = vunpack.c.l.b16 %v463
    %v831 = vunpack.c.h.b16 %v463
    %v832 = vunpack.c.l.b16 %v464
    %v833 = vunpack.c.h.b16 %v464
    %v834 = vunpack.c.l.b16 %v465
    %v835 = vunpack.c.l.b16 %v466
    %v836 = vunpack.c.h.b16 %v466
    %v837 = vunpack.c.l.b16 %v467
    %v838 = vunpack.c.h.b16 %v467
    %v839 = vunpack.c.l.b16 %v468
    %v840 = vunpack.c.h.b16 %v468
    %v841 = vunpack.c.l.b16 %v469
    %v842 = vpack.c.b16 %v625, %v618
    %v843 = vpack.c.b16 %v626, %v619
    %v844 = vpack.c.b16 %v627, %v620
    %v845 = vpack.c.b16 %v628, %v621
    %v846 = vpack.c.b16 %v629, %v622
    %v847 = vpack.c.b16 %v630, %v623
    %v848 = vpack.c.b16 %v631, %v624
    %v849 = vpack.c.b16 %v639, %v632
    %v850 = vpack.c.b16 %v640, %v633
    %v851 = vpack.c.b16 %v641, %v634
    %v852 = vpack.c.b16 %v642, %v635
    %v853 = vpack.c.b16 %v643, %v636
    %v854 = vpack.c.b16 %v644, %v637
    %v855 = vpack.c.b16 %v645, %v638
    %v856 = vpack.c.b16 %v653, %v646
    %v857 = vpack.c.b16 %v654, %v647
    %v858 = vpack.c.b16 %v655, %v648
    %v859 = vpack.c.b16 %v656, %v649
    %v860 = vpack.c.b16 %v657, %v650
    %v861 = vpack.c.b16 %v658, %v651
    %v862 = vpack.c.b16 %v659, %v652
    %v863 = vpack.c.b16 %v667, %v660
    %v864 = vpack.c.b16 %v668, %v661
    %v865 = vpack.c.b16 %v669, %v662
    %v866 = vpack.c.b16 %v670, %v663
    %v867 = vpack.c.b16 %v671, %v664
    %v868 = vpack.c.b16 %v672, %v665
    %v869 = vpack.c.b16 %v673, %v666
    %v870 = vpack.c.b16 %v681, %v674
    %v871 = vpack.c.b16 %v682, %v675
    %v872 = vpack.c.b16 %v683, %v676
    %v873 = vpack.c.b16 %v684, %v677
    %v874 = vpack.c.b16 %v685, %v678
    %v875 = vpack.c.b16 %v686, %v679
    %v876 = vpack.c.b16 %v687, %v680
    %v877 = vpack.c.b16 %v695, %v688
    %v878 = vpack.c.b16 %v696, %v689
    %v879 = vpack.c.b16 %v697, %v690
    %v880 = vpack.c.b16 %v698, %v691
    %v881 = vpack.c.b16 %v699, %v692
    %v882 = vpack.c.b16 %v700, %v693
    %v883 = vpack.c.b16 %v701, %v694
    %v884 = vpack.c.b16 %v709, %v702
    %v885 = vpack.c.b16 %v710, %v703
    %v886 = vpack.c.b16 %v711, %v704
    %v887 = vpack.c.b16 %v712, %v705
    %v888 = vpack.c.b16 %v713, %v706
    %v889 = vpack.c.b16 %v714, %v707
    %v890 = vpack.c.b16 %v715, %v708
    %v891 = vpack.c.b16 %v723, %v716
    %v892 = vpack.c.b16 %v724, %v717
    %v893 = vpack.c.b16 %v725, %v718
    %v894 = vpack.c.b16 %v726, %v719
    %v895 = vpack.c.b16 %v727, %v720
    %v896 = vpack.c.b16 %v728, %v721
    %v897 = vpack.c.b16 %v729, %v722
    %v898 = vpack.c.b16 %v737, %v730
    %v899 = vpack.c.b16 %v738, %v731
    %v900 = vpack.c.b16 %v739, %v732
    %v901 = vpack.c.b16 %v740, %v733
    %v902 = vpack.c.b16 %v741, %v734
    %v903 = vpack.c.b16 %v742, %v735
    %v904 = vpack.c.b16 %v743, %v736
    %v905 = vpack.c.b16 %v751, %v744
    %v906 = vpack.c.b16 %v752, %v745
    %v907 = vpack.c.b16 %v753, %v746
    %v908 = vpack.c.b16 %v754, %v747
    %v909 = vpack.c.b16 %v755, %v748
    %v910 = vpack.c.b16 %v756, %v749
    %v911 = vpack.c.b16 %v757, %v750
    %v912 = vpack.c.b16 %v765, %v758
    %v913 = vpack.c.b16 %v766, %v759
    %v914 = vpack.c.b16 %v767, %v760
    %v915 = vpack.c.b16 %v768, %v761
    %v916 = vpack.c.b16 %v769, %v762
    %v917 = vpack.c.b16 %v770, %v763
    %v918 = vpack.c.b16 %v771, %v764
    %v919 = vpack.c.b16 %v779, %v772
    %v920 = vpack.c.b16 %v780, %v773
    %v921 = vpack.c.b16 %v781, %v774
    %v922 = vpack.c.b16 %v782, %v775
    %v923 = vpack.c.b16 %v783, %v776
    %v924 = vpack.c.b16 %v784, %v777
    %v925 = vpack.c.b16 %v785, %v778
    %v926 = vpack.c.b16 %v793, %v786
    %v927 = vpack.c.b16 %v794, %v787
    %v928 = vpack.c.b16 %v795, %v788
    %v929 = vpack.c.b16 %v796, %v789
    %v930 = vpack.c.b16 %v797, %v790
    %v931 = vpack.c.b16 %v798, %v791
    %v932 = vpack.c.b16 %v799, %v792
    %v933 = vpack.c.b16 %v807, %v800
    %v934 = vpack.c.b16 %v808, %v801
    %v935 = vpack.c.b16 %v809, %v802
    %v936 = vpack.c.b16 %v810, %v803
    %v937 = vpack.c.b16 %v811, %v804
    %v938 = vpack.c.b16 %v812, %v805
    %v939 = vpack.c.b16 %v813, %v806
    %v940 = vpack.c.b16 %v821, %v814
    %v941 = vpack.c.b16 %v822, %v815
    %v942 = vpack.c.b16 %v823, %v816
    %v943 = vpack.c.b16 %v824, %v817
    %v944 = vpack.c.b16 %v825, %v818
    %v945 = vpack.c.b16 %v826, %v819
    %v946 = vpack.c.b16 %v827, %v820
    %v947 = vpack.c.b16 %v835, %v828
    %v948 = vpack.c.b16 %v836, %v829
    %v949 = vpack.c.b16 %v837, %v830
    %v950 = vpack.c.b16 %v838, %v831
    %v951 = vpack.c.b16 %v839, %v832
    %v952 = vpack.c.b16 %v840, %v833
    %v953 = vpack.c.b16 %v841, %v834
    %1066 = vmatprep.subr.bf16.mxu0 %v843
    %1067 = vmatpush1.bf16.msra.mxu0 %v842
    %1068 = vmatprep.subr.bf16.mxu0 %v850
    %1069 = vmatpush1.bf16.msra.mxu0 %v849
    %1070 = vmatprep.subr.bf16.mxu0 %v857
    %1071 = vmatpush1.bf16.msra.mxu0 %v856
    %1072 = vmatprep.subr.bf16.mxu0 %v864
    %1073 = vmatpush1.bf16.msra.mxu0 %v863
    %1074 = vmatprep.subr.bf16.mxu0 %v871
    %1075 = vmatpush1.bf16.msra.mxu0 %v870
    %1076 = vmatprep.subr.bf16.mxu0 %v878
    %1077 = vmatpush1.bf16.msra.mxu0 %v877
    %1078 = vmatprep.subr.bf16.mxu0 %v885
    %1079 = vmatpush1.bf16.msra.mxu0 %v884
    %1080 = vmatprep.subr.bf16.mxu0 %v892
    %1081 = vmatpush1.bf16.msra.mxu0 %v891
    %1082 = vmatprep.subr.bf16.mxu0 %v899
    %1083 = vmatpush1.bf16.msra.mxu0 %v898
    %1084 = vmatprep.subr.bf16.mxu0 %v906
    %1085 = vmatpush1.bf16.msra.mxu0 %v905
    %1086 = vmatprep.subr.bf16.mxu0 %v913
    %1087 = vmatpush1.bf16.msra.mxu0 %v912
    %1088 = vmatprep.subr.bf16.mxu0 %v920
    %1089 = vmatpush1.bf16.msra.mxu0 %v919
    %1090 = vmatprep.subr.bf16.mxu0 %v927
    %1091 = vmatpush1.bf16.msra.mxu0 %v926
    %1092 = vmatprep.subr.bf16.mxu0 %v934
    %1093 = vmatpush1.bf16.msra.mxu0 %v933
    %1094 = vmatprep.subr.bf16.mxu0 %v941
    %1095 = vmatpush1.bf16.msra.mxu0 %v940
    %1096 = vmatprep.subr.bf16.mxu0 %v948
    %1097 = vmatpush1.bf16.msra.mxu0 %v947
    %1098 = vmatprep.mubr.bf16.mxu0 %v341
    %1099 = vmatmul.mubr.bf16.gmra.mrb[0].mxu0 %v340
    %v1100 = vpop.f32.mrb[0].mxu0
    %v1101 = vadd.f32 %v301, %v1100
    %v1102 = vpop.f32.mrb[0].mxu0
    %v1103 = vadd.f32 %v305, %v1102
    %v1104 = vpop.f32.mrb[0].mxu0
    %v1105 = vpop.f32.mrb[0].mxu0
    %1106 = vdwg.mxu0
    %1107 = vmatprep.subr.bf16.mxu0 %v845
    %1108 = vmatpush1.bf16.msra.mxu0 %v844
    %1109 = vmatprep.subr.bf16.mxu0 %v852
    %1110 = vmatpush1.bf16.msra.mxu0 %v851
    %1111 = vmatprep.subr.bf16.mxu0 %v859
    %1112 = vmatpush1.bf16.msra.mxu0 %v858
    %1113 = vmatprep.subr.bf16.mxu0 %v866
    %1114 = vmatpush1.bf16.msra.mxu0 %v865
    %1115 = vmatprep.subr.bf16.mxu0 %v873
    %1116 = vmatpush1.bf16.msra.mxu0 %v872
    %1117 = vmatprep.subr.bf16.mxu0 %v880
    %1118 = vmatpush1.bf16.msra.mxu0 %v879
    %1119 = vmatprep.subr.bf16.mxu0 %v887
    %1120 = vmatpush1.bf16.msra.mxu0 %v886
    %1121 = vmatprep.subr.bf16.mxu0 %v894
    %1122 = vmatpush1.bf16.msra.mxu0 %v893
    %1123 = vmatprep.subr.bf16.mxu0 %v901
    %1124 = vmatpush1.bf16.msra.mxu0 %v900
    %1125 = vmatprep.subr.bf16.mxu0 %v908
    %1126 = vmatpush1.bf16.msra.mxu0 %v907
    %1127 = vmatprep.subr.bf16.mxu0 %v915
    %1128 = vmatpush1.bf16.msra.mxu0 %v914
    %1129 = vmatprep.subr.bf16.mxu0 %v922
    %1130 = vmatpush1.bf16.msra.mxu0 %v921
    %1131 = vmatprep.subr.bf16.mxu0 %v929
    %1132 = vmatpush1.bf16.msra.mxu0 %v928
    %1133 = vmatprep.subr.bf16.mxu0 %v936
    %1134 = vmatpush1.bf16.msra.mxu0 %v935
    %1135 = vmatprep.subr.bf16.mxu0 %v943
    %1136 = vmatpush1.bf16.msra.mxu0 %v942
    %1137 = vmatprep.subr.bf16.mxu0 %v950
    %1138 = vmatpush1.bf16.msra.mxu0 %v949
    %1139 = vmatprep.mubr.bf16.mxu0 %v341
    %1140 = vmatmul.mubr.bf16.gmra.mrb[0].mxu0 %v340
    %v1141 = vpop.f32.mrb[0].mxu0
    %v1142 = vadd.f32 %v309, %v1141
    %v1143 = vpop.f32.mrb[0].mxu0
    %v1144 = vadd.f32 %v473, %v1143
    %v1145 = vpop.f32.mrb[0].mxu0
    %v1146 = vpop.f32.mrb[0].mxu0
    %1147 = vdwg.mxu0
    %1148 = vmatprep.subr.bf16.mxu0 %v847
    %1149 = vmatpush1.bf16.msra.mxu0 %v846
    %1150 = vmatprep.subr.bf16.mxu0 %v854
    %1151 = vmatpush1.bf16.msra.mxu0 %v853
    %1152 = vmatprep.subr.bf16.mxu0 %v861
    %1153 = vmatpush1.bf16.msra.mxu0 %v860
    %1154 = vmatprep.subr.bf16.mxu0 %v868
    %1155 = vmatpush1.bf16.msra.mxu0 %v867
    %1156 = vmatprep.subr.bf16.mxu0 %v875
    %1157 = vmatpush1.bf16.msra.mxu0 %v874
    %1158 = vmatprep.subr.bf16.mxu0 %v882
    %1159 = vmatpush1.bf16.msra.mxu0 %v881
    %1160 = vmatprep.subr.bf16.mxu0 %v889
    %1161 = vmatpush1.bf16.msra.mxu0 %v888
    %1162 = vmatprep.subr.bf16.mxu0 %v896
    %1163 = vmatpush1.bf16.msra.mxu0 %v895
    %1164 = vmatprep.subr.bf16.mxu0 %v903
    %1165 = vmatpush1.bf16.msra.mxu0 %v902
    %1166 = vmatprep.subr.bf16.mxu0 %v910
    %1167 = vmatpush1.bf16.msra.mxu0 %v909
    %1168 = vmatprep.subr.bf16.mxu0 %v917
    %1169 = vmatpush1.bf16.msra.mxu0 %v916
    %1170 = vmatprep.subr.bf16.mxu0 %v924
    %1171 = vmatpush1.bf16.msra.mxu0 %v923
    %1172 = vmatprep.subr.bf16.mxu0 %v931
    %1173 = vmatpush1.bf16.msra.mxu0 %v930
    %1174 = vmatprep.subr.bf16.mxu0 %v938
    %1175 = vmatpush1.bf16.msra.mxu0 %v937
    %1176 = vmatprep.subr.bf16.mxu0 %v945
    %1177 = vmatpush1.bf16.msra.mxu0 %v944
    %1178 = vmatprep.subr.bf16.mxu0 %v952
    %1179 = vmatpush1.bf16.msra.mxu0 %v951
    %1180 = vmatprep.mubr.bf16.mxu0 %v341
    %1181 = vmatmul.mubr.bf16.gmra.mrb[0].mxu0 %v340
    %v1182 = vpop.f32.mrb[0].mxu0
    %v1183 = vadd.f32 %v477, %v1182
    %v1184 = vpop.f32.mrb[0].mxu0
    %v1185 = vadd.f32 %v481, %v1184
    %v1186 = vpop.f32.mrb[0].mxu0
    %v1187 = vpop.f32.mrb[0].mxu0
    %1188 = vdwg.mxu0
    %1189 = vmatprep.subr.bf16.mxu0 0
    %1190 = vmatpush1.bf16.msra.mxu0 %v848
    %1191 = vmatprep.subr.bf16.mxu0 0
    %1192 = vmatpush1.bf16.msra.mxu0 %v855
    %1193 = vmatprep.subr.bf16.mxu0 0
    %1194 = vmatpush1.bf16.msra.mxu0 %v862
    %1195 = vmatprep.subr.bf16.mxu0 0
    %1196 = vmatpush1.bf16.msra.mxu0 %v869
    %1197 = vmatprep.subr.bf16.mxu0 0
    %1198 = vmatpush1.bf16.msra.mxu0 %v876
    %1199 = vmatprep.subr.bf16.mxu0 0
    %1200 = vmatpush1.bf16.msra.mxu0 %v883
    %1201 = vmatprep.subr.bf16.mxu0 0
    %1202 = vmatpush1.bf16.msra.mxu0 %v890
    %1203 = vmatprep.subr.bf16.mxu0 0
    %1204 = vmatpush1.bf16.msra.mxu0 %v897
    %1205 = vmatprep.subr.bf16.mxu0 0
    %1206 = vmatpush1.bf16.msra.mxu0 %v904
    %1207 = vmatprep.subr.bf16.mxu0 0
    %1208 = vmatpush1.bf16.msra.mxu0 %v911
    %1209 = vmatprep.subr.bf16.mxu0 0
    %1210 = vmatpush1.bf16.msra.mxu0 %v918
    %1211 = vmatprep.subr.bf16.mxu0 0
    %1212 = vmatpush1.bf16.msra.mxu0 %v925
    %1213 = vmatprep.subr.bf16.mxu0 0
    %1214 = vmatpush1.bf16.msra.mxu0 %v932
    %1215 = vmatprep.subr.bf16.mxu0 0
    %1216 = vmatpush1.bf16.msra.mxu0 %v939
    %1217 = vmatprep.subr.bf16.mxu0 0
    %1218 = vmatpush1.bf16.msra.mxu0 %v946
    %1219 = vmatprep.subr.bf16.mxu0 0
    %1220 = vmatpush1.bf16.msra.mxu0 %v953
    %1221 = vmatprep.mubr.bf16.mxu0 %v341
    %1222 = vmatmul.mubr.bf16.gmra.mrb[0].mxu0 %v340
    %v1223 = vpop.f32.mrb[0].mxu0
    %v1224 = vadd.f32 %v485, %v1223
    %v1225 = vpop.f32.mrb[0].mxu0
    %v1226 = vpop.f32.mrb[0].mxu0
    %v1227 = vpop.f32.mrb[0].mxu0
    %1228 = vdwg.mxu0
    %v1229 = vxor.u32 %v1144, 2147483648
    %v1230 = vxor.u32 %v1183, 2147483648
    %v1231 = vmul.f32 %v1229, 1.442695
    %v1232 = vpow.pop %v1231
    %v1233 = vmul.f32 %v1230, 1.442695
    %v1234 = vpow.pop %v1233
    %v1235 = vadd.f32 %v1232, 1.0
    %v1236 = vadd.f32 %v1234, 1.0
    %v1237 = vrcp.pop %v1235
    %v1238 = vmul.f32 1.0, %v1237
    %v1239 = vrcp.pop %v1236
    %v1240 = vmul.f32 1.0, %v1239
    %v1241 = vmul.f32 %v1238, %v1224
    %v1242 = vadd.f32 %v1185, %v1241
    %v1243 = vtanh.pop %v1242
    %v1244 = vsub.f32 1.0, %v1240
    %v1245 = vmul.f32 %v1244, %v1243
    %v1246 = vmul.f32 %v1240, 0.0
    %v1247 = vadd.f32 %v1245, %v1246
    %v1248 = vld [vmem:[#allocation2 + $0x18] sm:$0xff]
    %v1249 = vld [vmem:[#allocation2 + $0x20] sm:$0xff]
    %v1250 = vld [vmem:[#allocation2 + $0x28] sm:$0xff]
    %v1251 = vadd.f32 %v1248, %v1101
    %v1252 = vadd.f32 %v1249, %v1103
    %v1253 = vxor.u32 %v1251, 2147483648
    %v1254 = vxor.u32 %v1252, 2147483648
    %v1255 = vmul.f32 %v1253, 1.442695
    %v1256 = vpow.pop %v1255
    %v1257 = vmul.f32 %v1254, 1.442695
    %v1258 = vpow.pop %v1257
    %v1259 = vadd.f32 %v1256, 1.0
    %v1260 = vadd.f32 %v1258, 1.0
    %v1261 = vrcp.pop %v1259
    %v1262 = vmul.f32 1.0, %v1261
    %v1263 = vrcp.pop %v1260
    %v1264 = vmul.f32 1.0, %v1263
    %v1265 = vmul.f32 %v1262, %v1142
    %v1266 = vadd.f32 %v1250, %v1265
    %v1267 = vtanh.pop %v1266
    %v1268 = vsub.f32 1.0, %v1264
    %v1269 = vmul.f32 %v1268, %v1267
    %v1270 = vmul.f32 %v1264, %v339
    %v1271 = vadd.f32 %v1269, %v1270
    %v1272 = vpack.c.bf16 %v1271, %v1271
    %v1273 = vpack.c.bf16 %v1247, %v1247
    %1274 = vmatprep.subr.bf16.mxu0 %v843
    %1275 = vmatpush1.bf16.msra.mxu0 %v842
    %1276 = vmatprep.subr.bf16.mxu0 %v850
    %1277 = vmatpush1.bf16.msra.mxu0 %v849
    %1278 = vmatprep.subr.bf16.mxu0 %v857
    %1279 = vmatpush1.bf16.msra.mxu0 %v856
    %1280 = vmatprep.subr.bf16.mxu0 %v864
    %1281 = vmatpush1.bf16.msra.mxu0 %v863
    %1282 = vmatprep.subr.bf16.mxu0 %v871
    %1283 = vmatpush1.bf16.msra.mxu0 %v870
    %1284 = vmatprep.subr.bf16.mxu0 %v878
    %1285 = vmatpush1.bf16.msra.mxu0 %v877
    %1286 = vmatprep.subr.bf16.mxu0 %v885
    %1287 = vmatpush1.bf16.msra.mxu0 %v884
    %1288 = vmatprep.subr.bf16.mxu0 %v892
    %1289 = vmatpush1.bf16.msra.mxu0 %v891
    %1290 = vmatprep.subr.bf16.mxu0 %v899
    %1291 = vmatpush1.bf16.msra.mxu0 %v898
    %1292 = vmatprep.subr.bf16.mxu0 %v906
    %1293 = vmatpush1.bf16.msra.mxu0 %v905
    %1294 = vmatprep.subr.bf16.mxu0 %v913
    %1295 = vmatpush1.bf16.msra.mxu0 %v912
    %1296 = vmatprep.subr.bf16.mxu0 %v920
    %1297 = vmatpush1.bf16.msra.mxu0 %v919
    %1298 = vmatprep.subr.bf16.mxu0 %v927
    %1299 = vmatpush1.bf16.msra.mxu0 %v926
    %1300 = vmatprep.subr.bf16.mxu0 %v934
    %1301 = vmatpush1.bf16.msra.mxu0 %v933
    %1302 = vmatprep.subr.bf16.mxu0 %v941
    %1303 = vmatpush1.bf16.msra.mxu0 %v940
    %1304 = vmatprep.subr.bf16.mxu0 %v948
    %1305 = vmatpush1.bf16.msra.mxu0 %v947
    %1306 = vmatprep.mubr.bf16.mxu0 %v1273
    %1307 = vmatmul.mubr.bf16.gmra.mrb[0].mxu0 %v1272
    %v1308 = vpop.f32.mrb[0].mxu0
    %v1309 = vadd.f32 %v301, %v1308
    %v1310 = vpop.f32.mrb[0].mxu0
    %v1311 = vadd.f32 %v305, %v1310
    %v1312 = vpop.f32.mrb[0].mxu0
    %v1313 = vpop.f32.mrb[0].mxu0
    %1314 = vdwg.mxu0
    %1315 = vmatprep.subr.bf16.mxu0 %v845
    %1316 = vmatpush1.bf16.msra.mxu0 %v844
    %1317 = vmatprep.subr.bf16.mxu0 %v852
    %1318 = vmatpush1.bf16.msra.mxu0 %v851
    %1319 = vmatprep.subr.bf16.mxu0 %v859
    %1320 = vmatpush1.bf16.msra.mxu0 %v858
    %1321 = vmatprep.subr.bf16.mxu0 %v866
    %1322 = vmatpush1.bf16.msra.mxu0 %v865
    %1323 = vmatprep.subr.bf16.mxu0 %v873
    %1324 = vmatpush1.bf16.msra.mxu0 %v872
    %1325 = vmatprep.subr.bf16.mxu0 %v880
    %1326 = vmatpush1.bf16.msra.mxu0 %v879
    %1327 = vmatprep.subr.bf16.mxu0 %v887
    %1328 = vmatpush1.bf16.msra.mxu0 %v886
    %1329 = vmatprep.subr.bf16.mxu0 %v894
    %1330 = vmatpush1.bf16.msra.mxu0 %v893
    %1331 = vmatprep.subr.bf16.mxu0 %v901
    %1332 = vmatpush1.bf16.msra.mxu0 %v900
    %1333 = vmatprep.subr.bf16.mxu0 %v908
    %1334 = vmatpush1.bf16.msra.mxu0 %v907
    %1335 = vmatprep.subr.bf16.mxu0 %v915
    %1336 = vmatpush1.bf16.msra.mxu0 %v914
    %1337 = vmatprep.subr.bf16.mxu0 %v922
    %1338 = vmatpush1.bf16.msra.mxu0 %v921
    %1339 = vmatprep.subr.bf16.mxu0 %v929
    %1340 = vmatpush1.bf16.msra.mxu0 %v928
    %1341 = vmatprep.subr.bf16.mxu0 %v936
    %1342 = vmatpush1.bf16.msra.mxu0 %v935
    %1343 = vmatprep.subr.bf16.mxu0 %v943
    %1344 = vmatpush1.bf16.msra.mxu0 %v942
    %1345 = vmatprep.subr.bf16.mxu0 %v950
    %1346 = vmatpush1.bf16.msra.mxu0 %v949
    %1347 = vmatprep.mubr.bf16.mxu0 %v1273
    %1348 = vmatmul.mubr.bf16.gmra.mrb[0].mxu0 %v1272
    %v1349 = vpop.f32.mrb[0].mxu0
    %v1350 = vadd.f32 %v309, %v1349
    %v1351 = vpop.f32.mrb[0].mxu0
    %v1352 = vadd.f32 %v473, %v1351
    %v1353 = vpop.f32.mrb[0].mxu0
    %v1354 = vpop.f32.mrb[0].mxu0
    %1355 = vdwg.mxu0
    %1356 = vmatprep.subr.bf16.mxu0 %v847
    %1357 = vmatpush1.bf16.msra.mxu0 %v846
    %1358 = vmatprep.subr.bf16.mxu0 %v854
    %1359 = vmatpush1.bf16.msra.mxu0 %v853
    %1360 = vmatprep.subr.bf16.mxu0 %v861
    %1361 = vmatpush1.bf16.msra.mxu0 %v860
    %1362 = vmatprep.subr.bf16.mxu0 %v868
    %1363 = vmatpush1.bf16.msra.mxu0 %v867
    %1364 = vmatprep.subr.bf16.mxu0 %v875
    %1365 = vmatpush1.bf16.msra.mxu0 %v874
    %1366 = vmatprep.subr.bf16.mxu0 %v882
    %1367 = vmatpush1.bf16.msra.mxu0 %v881
    %1368 = vmatprep.subr.bf16.mxu0 %v889
    %1369 = vmatpush1.bf16.msra.mxu0 %v888
    %1370 = vmatprep.subr.bf16.mxu0 %v896
    %1371 = vmatpush1.bf16.msra.mxu0 %v895
    %1372 = vmatprep.subr.bf16.mxu0 %v903
    %1373 = vmatpush1.bf16.msra.mxu0 %v902
    %1374 = vmatprep.subr.bf16.mxu0 %v910
    %1375 = vmatpush1.bf16.msra.mxu0 %v909
    %1376 = vmatprep.subr.bf16.mxu0 %v917
    %1377 = vmatpush1.bf16.msra.mxu0 %v916
    %1378 = vmatprep.subr.bf16.mxu0 %v924
    %1379 = vmatpush1.bf16.msra.mxu0 %v923
    %1380 = vmatprep.subr.bf16.mxu0 %v931
    %1381 = vmatpush1.bf16.msra.mxu0 %v930
    %1382 = vmatprep.subr.bf16.mxu0 %v938
    %1383 = vmatpush1.bf16.msra.mxu0 %v937
    %1384 = vmatprep.subr.bf16.mxu0 %v945
    %1385 = vmatpush1.bf16.msra.mxu0 %v944
    %1386 = vmatprep.subr.bf16.mxu0 %v952
    %1387 = vmatpush1.bf16.msra.mxu0 %v951
    %1388 = vmatprep.mubr.bf16.mxu0 %v1273
    %1389 = vmatmul.mubr.bf16.gmra.mrb[0].mxu0 %v1272
    %v1390 = vpop.f32.mrb[0].mxu0
    %v1391 = vadd.f32 %v477, %v1390
    %v1392 = vpop.f32.mrb[0].mxu0
    %v1393 = vadd.f32 %v481, %v1392
    %v1394 = vpop.f32.mrb[0].mxu0
    %v1395 = vpop.f32.mrb[0].mxu0
    %1396 = vdwg.mxu0
    %1397 = vmatprep.subr.bf16.mxu0 0
    %1398 = vmatpush1.bf16.msra.mxu0 %v848
    %1399 = vmatprep.subr.bf16.mxu0 0
    %1400 = vmatpush1.bf16.msra.mxu0 %v855
    %1401 = vmatprep.subr.bf16.mxu0 0
    %1402 = vmatpush1.bf16.msra.mxu0 %v862
    %1403 = vmatprep.subr.bf16.mxu0 0
    %1404 = vmatpush1.bf16.msra.mxu0 %v869
    %1405 = vmatprep.subr.bf16.mxu0 0
    %1406 = vmatpush1.bf16.msra.mxu0 %v876
    %1407 = vmatprep.subr.bf16.mxu0 0
    %1408 = vmatpush1.bf16.msra.mxu0 %v883
    %1409 = vmatprep.subr.bf16.mxu0 0
    %1410 = vmatpush1.bf16.msra.mxu0 %v890
    %1411 = vmatprep.subr.bf16.mxu0 0
    %1412 = vmatpush1.bf16.msra.mxu0 %v897
    %1413 = vmatprep.subr.bf16.mxu0 0
    %1414 = vmatpush1.bf16.msra.mxu0 %v904
    %1415 = vmatprep.subr.bf16.mxu0 0
    %1416 = vmatpush1.bf16.msra.mxu0 %v911
    %1417 = vmatprep.subr.bf16.mxu0 0
    %1418 = vmatpush1.bf16.msra.mxu0 %v918
    %1419 = vmatprep.subr.bf16.mxu0 0
    %1420 = vmatpush1.bf16.msra.mxu0 %v925
    %1421 = vmatprep.subr.bf16.mxu0 0
    %1422 = vmatpush1.bf16.msra.mxu0 %v932
    %1423 = vmatprep.subr.bf16.mxu0 0
    %1424 = vmatpush1.bf16.msra.mxu0 %v939
    %1425 = vmatprep.subr.bf16.mxu0 0
    %1426 = vmatpush1.bf16.msra.mxu0 %v946
    %1427 = vmatprep.subr.bf16.mxu0 0
    %1428 = vmatpush1.bf16.msra.mxu0 %v953
    %1429 = vmatprep.mubr.bf16.mxu0 %v1273
    %1430 = vmatmul.mubr.bf16.gmra.mrb[0].mxu0 %v1272
    %v1431 = vpop.f32.mrb[0].mxu0
    %v1432 = vadd.f32 %v485, %v1431
    %v1433 = vpop.f32.mrb[0].mxu0
    %v1434 = vpop.f32.mrb[0].mxu0
    %v1435 = vpop.f32.mrb[0].mxu0
    %1436 = vdwg.mxu0
    %v1437 = vxor.u32 %v1352, 2147483648
    %v1438 = vxor.u32 %v1391, 2147483648
    %v1439 = vmul.f32 %v1437, 1.442695
    %v1440 = vpow.pop %v1439
    %v1441 = vmul.f32 %v1438, 1.442695
    %v1442 = vpow.pop %v1441
    %v1443 = vadd.f32 %v1440, 1.0
    %v1444 = vadd.f32 %v1442, 1.0
    %v1445 = vrcp.pop %v1443
    %v1446 = vmul.f32 1.0, %v1445
    %v1447 = vrcp.pop %v1444
    %v1448 = vmul.f32 1.0, %v1447
    %v1449 = vmul.f32 %v1446, %v1432
    %v1450 = vadd.f32 %v1393, %v1449
    %v1451 = vtanh.pop %v1450
    %v1452 = vsub.f32 1.0, %v1448
    %v1453 = vmul.f32 %v1452, %v1451
    %v1454 = vmul.f32 %v1448, %v1247
    %v1455 = vadd.f32 %v1453, %v1454
    %v1456 = vld [vmem:[#allocation2 + $0x30] sm:$0xff]
    %v1457 = vld [vmem:[#allocation2 + $0x38] sm:$0xff]
    %v1458 = vld [vmem:[#allocation2 + $0x40] sm:$0xff]
    %v1459 = vadd.f32 %v1456, %v1309
    %v1460 = vadd.f32 %v1457, %v1311
    %v1461 = vxor.u32 %v1459, 2147483648
    %v1462 = vxor.u32 %v1460, 2147483648
    %v1463 = vmul.f32 %v1461, 1.442695
    %v1464 = vpow.pop %v1463
    %v1465 = vmul.f32 %v1462, 1.442695
    %v1466 = vpow.pop %v1465
    %v1467 = vadd.f32 %v1464, 1.0
    %v1468 = vadd.f32 %v1466, 1.0
    %v1469 = vrcp.pop %v1467
    %v1470 = vmul.f32 1.0, %v1469
    %v1471 = vrcp.pop %v1468
    %v1472 = vmul.f32 1.0, %v1471
    %v1473 = vmul.f32 %v1470, %v1350
    %v1474 = vadd.f32 %v1458, %v1473
    %v1475 = vtanh.pop %v1474
    %v1476 = vsub.f32 1.0, %v1472
    %v1477 = vmul.f32 %v1476, %v1475
    %v1478 = vmul.f32 %v1472, %v1271
    %v1479 = vadd.f32 %v1477, %v1478
    %v1480 = vpack.c.bf16 %v1479, %v1479
    %v1481 = vpack.c.bf16 %v1455, %v1455
    %1482 = vmatprep.subr.bf16.mxu0 %v843
    %1483 = vmatpush1.bf16.msra.mxu0 %v842
    %1484 = vmatprep.subr.bf16.mxu0 %v850
    %1485 = vmatpush1.bf16.msra.mxu0 %v849
    %1486 = vmatprep.subr.bf16.mxu0 %v857
    %1487 = vmatpush1.bf16.msra.mxu0 %v856
    %1488 = vmatprep.subr.bf16.mxu0 %v864
    %1489 = vmatpush1.bf16.msra.mxu0 %v863
    %1490 = vmatprep.subr.bf16.mxu0 %v871
    %1491 = vmatpush1.bf16.msra.mxu0 %v870
    %1492 = vmatprep.subr.bf16.mxu0 %v878
    %1493 = vmatpush1.bf16.msra.mxu0 %v877
    %1494 = vmatprep.subr.bf16.mxu0 %v885
    %1495 = vmatpush1.bf16.msra.mxu0 %v884
    %1496 = vmatprep.subr.bf16.mxu0 %v892
    %1497 = vmatpush1.bf16.msra.mxu0 %v891
    %1498 = vmatprep.subr.bf16.mxu0 %v899
    %1499 = vmatpush1.bf16.msra.mxu0 %v898
    %1500 = vmatprep.subr.bf16.mxu0 %v906
    %1501 = vmatpush1.bf16.msra.mxu0 %v905
    %1502 = vmatprep.subr.bf16.mxu0 %v913
    %1503 = vmatpush1.bf16.msra.mxu0 %v912
    %1504 = vmatprep.subr.bf16.mxu0 %v920
    %1505 = vmatpush1.bf16.msra.mxu0 %v919
    %1506 = vmatprep.subr.bf16.mxu0 %v927
    %1507 = vmatpush1.bf16.msra.mxu0 %v926
    %1508 = vmatprep.subr.bf16.mxu0 %v934
    %1509 = vmatpush1.bf16.msra.mxu0 %v933
    %1510 = vmatprep.subr.bf16.mxu0 %v941
    %1511 = vmatpush1.bf16.msra.mxu0 %v940
    %1512 = vmatprep.subr.bf16.mxu0 %v948
    %1513 = vmatpush1.bf16.msra.mxu0 %v947
    %1514 = vmatprep.mubr.bf16.mxu0 %v1481
    %1515 = vmatmul.mubr.bf16.gmra.mrb[0].mxu0 %v1480
    %v1516 = vpop.f32.mrb[0].mxu0
    %v1517 = vadd.f32 %v301, %v1516
    %v1518 = vpop.f32.mrb[0].mxu0
    %v1519 = vadd.f32 %v305, %v1518
    %v1520 = vpop.f32.mrb[0].mxu0
    %v1521 = vpop.f32.mrb[0].mxu0
    %1522 = vdwg.mxu0
    %1523 = vmatprep.subr.bf16.mxu0 %v845
    %1524 = vmatpush1.bf16.msra.mxu0 %v844
    %1525 = vmatprep.subr.bf16.mxu0 %v852
    %1526 = vmatpush1.bf16.msra.mxu0 %v851
    %1527 = vmatprep.subr.bf16.mxu0 %v859
    %1528 = vmatpush1.bf16.msra.mxu0 %v858
    %1529 = vmatprep.subr.bf16.mxu0 %v866
    %1530 = vmatpush1.bf16.msra.mxu0 %v865
    %1531 = vmatprep.subr.bf16.mxu0 %v873
    %1532 = vmatpush1.bf16.msra.mxu0 %v872
    %1533 = vmatprep.subr.bf16.mxu0 %v880
    %1534 = vmatpush1.bf16.msra.mxu0 %v879
    %1535 = vmatprep.subr.bf16.mxu0 %v887
    %1536 = vmatpush1.bf16.msra.mxu0 %v886
    %1537 = vmatprep.subr.bf16.mxu0 %v894
    %1538 = vmatpush1.bf16.msra.mxu0 %v893
    %1539 = vmatprep.subr.bf16.mxu0 %v901
    %1540 = vmatpush1.bf16.msra.mxu0 %v900
    %1541 = vmatprep.subr.bf16.mxu0 %v908
    %1542 = vmatpush1.bf16.msra.mxu0 %v907
    %1543 = vmatprep.subr.bf16.mxu0 %v915
    %1544 = vmatpush1.bf16.msra.mxu0 %v914
    %1545 = vmatprep.subr.bf16.mxu0 %v922
    %1546 = vmatpush1.bf16.msra.mxu0 %v921
    %1547 = vmatprep.subr.bf16.mxu0 %v929
    %1548 = vmatpush1.bf16.msra.mxu0 %v928
    %1549 = vmatprep.subr.bf16.mxu0 %v936
    %1550 = vmatpush1.bf16.msra.mxu0 %v935
    %1551 = vmatprep.subr.bf16.mxu0 %v943
    %1552 = vmatpush1.bf16.msra.mxu0 %v942
    %1553 = vmatprep.subr.bf16.mxu0 %v950
    %1554 = vmatpush1.bf16.msra.mxu0 %v949
    %1555 = vmatprep.mubr.bf16.mxu0 %v1481
    %1556 = vmatmul.mubr.bf16.gmra.mrb[0].mxu0 %v1480
    %v1557 = vpop.f32.mrb[0].mxu0
    %v1558 = vadd.f32 %v309, %v1557
    %v1559 = vpop.f32.mrb[0].mxu0
    %v1560 = vadd.f32 %v473, %v1559
    %v1561 = vpop.f32.mrb[0].mxu0
    %v1562 = vpop.f32.mrb[0].mxu0
    %1563 = vdwg.mxu0
    %1564 = vmatprep.subr.bf16.mxu0 %v847
    %1565 = vmatpush1.bf16.msra.mxu0 %v846
    %1566 = vmatprep.subr.bf16.mxu0 %v854
    %1567 = vmatpush1.bf16.msra.mxu0 %v853
    %1568 = vmatprep.subr.bf16.mxu0 %v861
    %1569 = vmatpush1.bf16.msra.mxu0 %v860
    %1570 = vmatprep.subr.bf16.mxu0 %v868
    %1571 = vmatpush1.bf16.msra.mxu0 %v867
    %1572 = vmatprep.subr.bf16.mxu0 %v875
    %1573 = vmatpush1.bf16.msra.mxu0 %v874
    %1574 = vmatprep.subr.bf16.mxu0 %v882
    %1575 = vmatpush1.bf16.msra.mxu0 %v881
    %1576 = vmatprep.subr.bf16.mxu0 %v889
    %1577 = vmatpush1.bf16.msra.mxu0 %v888
    %1578 = vmatprep.subr.bf16.mxu0 %v896
    %1579 = vmatpush1.bf16.msra.mxu0 %v895
    %1580 = vmatprep.subr.bf16.mxu0 %v903
    %1581 = vmatpush1.bf16.msra.mxu0 %v902
    %1582 = vmatprep.subr.bf16.mxu0 %v910
    %1583 = vmatpush1.bf16.msra.mxu0 %v909
    %1584 = vmatprep.subr.bf16.mxu0 %v917
    %1585 = vmatpush1.bf16.msra.mxu0 %v916
    %1586 = vmatprep.subr.bf16.mxu0 %v924
    %1587 = vmatpush1.bf16.msra.mxu0 %v923
    %1588 = vmatprep.subr.bf16.mxu0 %v931
    %1589 = vmatpush1.bf16.msra.mxu0 %v930
    %1590 = vmatprep.subr.bf16.mxu0 %v938
    %1591 = vmatpush1.bf16.msra.mxu0 %v937
    %1592 = vmatprep.subr.bf16.mxu0 %v945
    %1593 = vmatpush1.bf16.msra.mxu0 %v944
    %1594 = vmatprep.subr.bf16.mxu0 %v952
    %1595 = vmatpush1.bf16.msra.mxu0 %v951
    %1596 = vmatprep.mubr.bf16.mxu0 %v1481
    %1597 = vmatmul.mubr.bf16.gmra.mrb[0].mxu0 %v1480
    %v1598 = vpop.f32.mrb[0].mxu0
    %v1599 = vadd.f32 %v477, %v1598
    %v1600 = vpop.f32.mrb[0].mxu0
    %v1601 = vadd.f32 %v481, %v1600
    %v1602 = vpop.f32.mrb[0].mxu0
    %v1603 = vpop.f32.mrb[0].mxu0
    %1604 = vdwg.mxu0
    %1605 = vmatprep.subr.bf16.mxu0 0
    %1606 = vmatpush1.bf16.msra.mxu0 %v848
    %1607 = vmatprep.subr.bf16.mxu0 0
    %1608 = vmatpush1.bf16.msra.mxu0 %v855
    %1609 = vmatprep.subr.bf16.mxu0 0
    %1610 = vmatpush1.bf16.msra.mxu0 %v862
    %1611 = vmatprep.subr.bf16.mxu0 0
    %1612 = vmatpush1.bf16.msra.mxu0 %v869
    %1613 = vmatprep.subr.bf16.mxu0 0
    %1614 = vmatpush1.bf16.msra.mxu0 %v876
    %1615 = vmatprep.subr.bf16.mxu0 0
    %1616 = vmatpush1.bf16.msra.mxu0 %v883
    %1617 = vmatprep.subr.bf16.mxu0 0
    %1618 = vmatpush1.bf16.msra.mxu0 %v890
    %1619 = vmatprep.subr.bf16.mxu0 0
    %1620 = vmatpush1.bf16.msra.mxu0 %v897
    %1621 = vmatprep.subr.bf16.mxu0 0
    %1622 = vmatpush1.bf16.msra.mxu0 %v904
    %1623 = vmatprep.subr.bf16.mxu0 0
    %1624 = vmatpush1.bf16.msra.mxu0 %v911
    %1625 = vmatprep.subr.bf16.mxu0 0
    %1626 = vmatpush1.bf16.msra.mxu0 %v918
    %1627 = vmatprep.subr.bf16.mxu0 0
    %1628 = vmatpush1.bf16.msra.mxu0 %v925
    %1629 = vmatprep.subr.bf16.mxu0 0
    %1630 = vmatpush1.bf16.msra.mxu0 %v932
    %1631 = vmatprep.subr.bf16.mxu0 0
    %1632 = vmatpush1.bf16.msra.mxu0 %v939
    %1633 = vmatprep.subr.bf16.mxu0 0
    %1634 = vmatpush1.bf16.msra.mxu0 %v946
    %1635 = vmatprep.subr.bf16.mxu0 0
    %1636 = vmatpush1.bf16.msra.mxu0 %v953
    %1637 = vmatprep.mubr.bf16.mxu0 %v1481
    %1638 = vmatmul.mubr.bf16.gmra.mrb[0].mxu0 %v1480
    %v1639 = vpop.f32.mrb[0].mxu0
    %v1640 = vadd.f32 %v485, %v1639
    %v1641 = vpop.f32.mrb[0].mxu0
    %v1642 = vpop.f32.mrb[0].mxu0
    %v1643 = vpop.f32.mrb[0].mxu0
    %1644 = vdwg.mxu0
    %v1645 = vxor.u32 %v1560, 2147483648
    %v1646 = vxor.u32 %v1599, 2147483648
    %v1647 = vmul.f32 %v1645, 1.442695
    %v1648 = vpow.pop %v1647
    %v1649 = vmul.f32 %v1646, 1.442695
    %v1650 = vpow.pop %v1649
    %v1651 = vadd.f32 %v1648, 1.0
    %v1652 = vadd.f32 %v1650, 1.0
    %v1653 = vrcp.pop %v1651
    %v1654 = vmul.f32 1.0, %v1653
    %v1655 = vrcp.pop %v1652
    %v1656 = vmul.f32 1.0, %v1655
    %v1657 = vmul.f32 %v1654, %v1640
    %v1658 = vadd.f32 %v1601, %v1657
    %v1659 = vtanh.pop %v1658
    %v1660 = vsub.f32 1.0, %v1656
    %v1661 = vmul.f32 %v1660, %v1659
    %v1662 = vmul.f32 %v1656, %v1455
    %v1663 = vadd.f32 %v1661, %v1662
    %v1664 = vld [vmem:[#allocation2 + $0x48] sm:$0xff]
    %v1665 = vld [vmem:[#allocation2 + $0x50] sm:$0xff]
    %v1666 = vld [vmem:[#allocation2 + $0x58] sm:$0xff]
    %v1667 = vadd.f32 %v1664, %v1517
    %v1668 = vadd.f32 %v1665, %v1519
    %v1669 = vxor.u32 %v1667, 2147483648
    %v1670 = vxor.u32 %v1668, 2147483648
    %v1671 = vmul.f32 %v1669, 1.442695
    %v1672 = vpow.pop %v1671
    %v1673 = vmul.f32 %v1670, 1.442695
    %v1674 = vpow.pop %v1673
    %v1675 = vadd.f32 %v1672, 1.0
    %v1676 = vadd.f32 %v1674, 1.0
    %v1677 = vrcp.pop %v1675
    %v1678 = vmul.f32 1.0, %v1677
    %v1679 = vrcp.pop %v1676
    %v1680 = vmul.f32 1.0, %v1679
    %v1681 = vmul.f32 %v1678, %v1558
    %v1682 = vadd.f32 %v1666, %v1681
    %v1683 = vtanh.pop %v1682
    %v1684 = vsub.f32 1.0, %v1680
    %v1685 = vmul.f32 %v1684, %v1683
    %v1686 = vmul.f32 %v1680, %v1479
    %v1687 = vadd.f32 %v1685, %v1686
    %v1688 = vpack.c.bf16 %v1687, %v1687
    %v1689 = vpack.c.bf16 %v1663, %v1663
    %1690 = vmatprep.subr.bf16.mxu0 %v843
    %1691 = vmatpush1.bf16.msra.mxu0 %v842
    %1692 = vmatprep.subr.bf16.mxu0 %v850
    %1693 = vmatpush1.bf16.msra.mxu0 %v849
    %1694 = vmatprep.subr.bf16.mxu0 %v857
    %1695 = vmatpush1.bf16.msra.mxu0 %v856
    %1696 = vmatprep.subr.bf16.mxu0 %v864
    %1697 = vmatpush1.bf16.msra.mxu0 %v863
    %1698 = vmatprep.subr.bf16.mxu0 %v871
    %1699 = vmatpush1.bf16.msra.mxu0 %v870
    %1700 = vmatprep.subr.bf16.mxu0 %v878
    %1701 = vmatpush1.bf16.msra.mxu0 %v877
    %1702 = vmatprep.subr.bf16.mxu0 %v885
    %1703 = vmatpush1.bf16.msra.mxu0 %v884
    %1704 = vmatprep.subr.bf16.mxu0 %v892
    %1705 = vmatpush1.bf16.msra.mxu0 %v891
    %1706 = vmatprep.subr.bf16.mxu0 %v899
    %1707 = vmatpush1.bf16.msra.mxu0 %v898
    %1708 = vmatprep.subr.bf16.mxu0 %v906
    %1709 = vmatpush1.bf16.msra.mxu0 %v905
    %1710 = vmatprep.subr.bf16.mxu0 %v913
    %1711 = vmatpush1.bf16.msra.mxu0 %v912
    %1712 = vmatprep.subr.bf16.mxu0 %v920
    %1713 = vmatpush1.bf16.msra.mxu0 %v919
    %1714 = vmatprep.subr.bf16.mxu0 %v927
    %1715 = vmatpush1.bf16.msra.mxu0 %v926
    %1716 = vmatprep.subr.bf16.mxu0 %v934
    %1717 = vmatpush1.bf16.msra.mxu0 %v933
    %1718 = vmatprep.subr.bf16.mxu0 %v941
    %1719 = vmatpush1.bf16.msra.mxu0 %v940
    %1720 = vmatprep.subr.bf16.mxu0 %v948
    %1721 = vmatpush1.bf16.msra.mxu0 %v947
    %1722 = vmatprep.mubr.bf16.mxu0 %v1689
    %1723 = vmatmul.mubr.bf16.gmra.mrb[0].mxu0 %v1688
    %v1724 = vpop.f32.mrb[0].mxu0
    %v1725 = vadd.f32 %v301, %v1724
    %v1726 = vpop.f32.mrb[0].mxu0
    %v1727 = vadd.f32 %v305, %v1726
    %v1728 = vpop.f32.mrb[0].mxu0
    %v1729 = vpop.f32.mrb[0].mxu0
    %1730 = vdwg.mxu0
    %1731 = vmatprep.subr.bf16.mxu0 %v845
    %1732 = vmatpush1.bf16.msra.mxu0 %v844
    %1733 = vmatprep.subr.bf16.mxu0 %v852
    %1734 = vmatpush1.bf16.msra.mxu0 %v851
    %1735 = vmatprep.subr.bf16.mxu0 %v859
    %1736 = vmatpush1.bf16.msra.mxu0 %v858
    %1737 = vmatprep.subr.bf16.mxu0 %v866
    %1738 = vmatpush1.bf16.msra.mxu0 %v865
    %1739 = vmatprep.subr.bf16.mxu0 %v873
    %1740 = vmatpush1.bf16.msra.mxu0 %v872
    %1741 = vmatprep.subr.bf16.mxu0 %v880
    %1742 = vmatpush1.bf16.msra.mxu0 %v879
    %1743 = vmatprep.subr.bf16.mxu0 %v887
    %1744 = vmatpush1.bf16.msra.mxu0 %v886
    %1745 = vmatprep.subr.bf16.mxu0 %v894
    %1746 = vmatpush1.bf16.msra.mxu0 %v893
    %1747 = vmatprep.subr.bf16.mxu0 %v901
    %1748 = vmatpush1.bf16.msra.mxu0 %v900
    %1749 = vmatprep.subr.bf16.mxu0 %v908
    %1750 = vmatpush1.bf16.msra.mxu0 %v907
    %1751 = vmatprep.subr.bf16.mxu0 %v915
    %1752 = vmatpush1.bf16.msra.mxu0 %v914
    %1753 = vmatprep.subr.bf16.mxu0 %v922
    %1754 = vmatpush1.bf16.msra.mxu0 %v921
    %1755 = vmatprep.subr.bf16.mxu0 %v929
    %1756 = vmatpush1.bf16.msra.mxu0 %v928
    %1757 = vmatprep.subr.bf16.mxu0 %v936
    %1758 = vmatpush1.bf16.msra.mxu0 %v935
    %1759 = vmatprep.subr.bf16.mxu0 %v943
    %1760 = vmatpush1.bf16.msra.mxu0 %v942
    %1761 = vmatprep.subr.bf16.mxu0 %v950
    %1762 = vmatpush1.bf16.msra.mxu0 %v949
    %1763 = vmatprep.mubr.bf16.mxu0 %v1689
    %1764 = vmatmul.mubr.bf16.gmra.mrb[0].mxu0 %v1688
    %v1765 = vpop.f32.mrb[0].mxu0
    %v1766 = vadd.f32 %v309, %v1765
    %v1767 = vpop.f32.mrb[0].mxu0
    %v1768 = vadd.f32 %v473, %v1767
    %v1769 = vpop.f32.mrb[0].mxu0
    %v1770 = vpop.f32.mrb[0].mxu0
    %1771 = vdwg.mxu0
    %1772 = vmatprep.subr.bf16.mxu0 %v847
    %1773 = vmatpush1.bf16.msra.mxu0 %v846
    %1774 = vmatprep.subr.bf16.mxu0 %v854
    %1775 = vmatpush1.bf16.msra.mxu0 %v853
    %1776 = vmatprep.subr.bf16.mxu0 %v861
    %1777 = vmatpush1.bf16.msra.mxu0 %v860
    %1778 = vmatprep.subr.bf16.mxu0 %v868
    %1779 = vmatpush1.bf16.msra.mxu0 %v867
    %1780 = vmatprep.subr.bf16.mxu0 %v875
    %1781 = vmatpush1.bf16.msra.mxu0 %v874
    %1782 = vmatprep.subr.bf16.mxu0 %v882
    %1783 = vmatpush1.bf16.msra.mxu0 %v881
    %1784 = vmatprep.subr.bf16.mxu0 %v889
    %1785 = vmatpush1.bf16.msra.mxu0 %v888
    %1786 = vmatprep.subr.bf16.mxu0 %v896
    %1787 = vmatpush1.bf16.msra.mxu0 %v895
    %1788 = vmatprep.subr.bf16.mxu0 %v903
    %1789 = vmatpush1.bf16.msra.mxu0 %v902
    %1790 = vmatprep.subr.bf16.mxu0 %v910
    %1791 = vmatpush1.bf16.msra.mxu0 %v909
    %1792 = vmatprep.subr.bf16.mxu0 %v917
    %1793 = vmatpush1.bf16.msra.mxu0 %v916
    %1794 = vmatprep.subr.bf16.mxu0 %v924
    %1795 = vmatpush1.bf16.msra.mxu0 %v923
    %1796 = vmatprep.subr.bf16.mxu0 %v931
    %1797 = vmatpush1.bf16.msra.mxu0 %v930
    %1798 = vmatprep.subr.bf16.mxu0 %v938
    %1799 = vmatpush1.bf16.msra.mxu0 %v937
    %1800 = vmatprep.subr.bf16.mxu0 %v945
    %1801 = vmatpush1.bf16.msra.mxu0 %v944
    %1802 = vmatprep.subr.bf16.mxu0 %v952
    %1803 = vmatpush1.bf16.msra.mxu0 %v951
    %1804 = vmatprep.mubr.bf16.mxu0 %v1689
    %1805 = vmatmul.mubr.bf16.gmra.mrb[0].mxu0 %v1688
    %v1806 = vpop.f32.mrb[0].mxu0
    %v1807 = vadd.f32 %v477, %v1806
    %v1808 = vpop.f32.mrb[0].mxu0
    %v1809 = vadd.f32 %v481, %v1808
    %v1810 = vpop.f32.mrb[0].mxu0
    %v1811 = vpop.f32.mrb[0].mxu0
    %1812 = vdwg.mxu0
    %1813 = vmatprep.subr.bf16.mxu0 0
    %1814 = vmatpush1.bf16.msra.mxu0 %v848
    %1815 = vmatprep.subr.bf16.mxu0 0
    %1816 = vmatpush1.bf16.msra.mxu0 %v855
    %1817 = vmatprep.subr.bf16.mxu0 0
    %1818 = vmatpush1.bf16.msra.mxu0 %v862
    %1819 = vmatprep.subr.bf16.mxu0 0
    %1820 = vmatpush1.bf16.msra.mxu0 %v869
    %1821 = vmatprep.subr.bf16.mxu0 0
    %1822 = vmatpush1.bf16.msra.mxu0 %v876
    %1823 = vmatprep.subr.bf16.mxu0 0
    %1824 = vmatpush1.bf16.msra.mxu0 %v883
    %1825 = vmatprep.subr.bf16.mxu0 0
    %1826 = vmatpush1.bf16.msra.mxu0 %v890
    %1827 = vmatprep.subr.bf16.mxu0 0
    %1828 = vmatpush1.bf16.msra.mxu0 %v897
    %1829 = vmatprep.subr.bf16.mxu0 0
    %1830 = vmatpush1.bf16.msra.mxu0 %v904
    %1831 = vmatprep.subr.bf16.mxu0 0
    %1832 = vmatpush1.bf16.msra.mxu0 %v911
    %1833 = vmatprep.subr.bf16.mxu0 0
    %1834 = vmatpush1.bf16.msra.mxu0 %v918
    %1835 = vmatprep.subr.bf16.mxu0 0
    %1836 = vmatpush1.bf16.msra.mxu0 %v925
    %1837 = vmatprep.subr.bf16.mxu0 0
    %1838 = vmatpush1.bf16.msra.mxu0 %v932
    %1839 = vmatprep.subr.bf16.mxu0 0
    %1840 = vmatpush1.bf16.msra.mxu0 %v939
    %1841 = vmatprep.subr.bf16.mxu0 0
    %1842 = vmatpush1.bf16.msra.mxu0 %v946
    %1843 = vmatprep.subr.bf16.mxu0 0
    %1844 = vmatpush1.bf16.msra.mxu0 %v953
    %1845 = vmatprep.mubr.bf16.mxu0 %v1689
    %1846 = vmatmul.mubr.bf16.gmra.mrb[0].mxu0 %v1688
    %v1847 = vpop.f32.mrb[0].mxu0
    %v1848 = vadd.f32 %v485, %v1847
    %v1849 = vpop.f32.mrb[0].mxu0
    %v1850 = vpop.f32.mrb[0].mxu0
    %v1851 = vpop.f32.mrb[0].mxu0
    %1852 = vdwg.mxu0
    %v1853 = vxor.u32 %v1768, 2147483648
    %v1854 = vxor.u32 %v1807, 2147483648
    %v1855 = vmul.f32 %v1853, 1.442695
    %v1856 = vpow.pop %v1855
    %v1857 = vmul.f32 %v1854, 1.442695
    %v1858 = vpow.pop %v1857
    %v1859 = vadd.f32 %v1856, 1.0
    %v1860 = vadd.f32 %v1858, 1.0
    %v1861 = vrcp.pop %v1859
    %v1862 = vmul.f32 1.0, %v1861
    %v1863 = vrcp.pop %v1860
    %v1864 = vmul.f32 1.0, %v1863
    %v1865 = vmul.f32 %v1862, %v1848
    %v1866 = vadd.f32 %v1809, %v1865
    %v1867 = vtanh.pop %v1866
    %v1868 = vsub.f32 1.0, %v1864
    %v1869 = vmul.f32 %v1868, %v1867
    %v1870 = vmul.f32 %v1864, %v1663
    %v1871 = vadd.f32 %v1869, %v1870
    %v1872 = vld [vmem:[#allocation2 + $0x60] sm:$0xff]
    %v1873 = vld [vmem:[#allocation2 + $0x68] sm:$0xff]
    %v1874 = vld [vmem:[#allocation2 + $0x70] sm:$0xff]
    %v1875 = vadd.f32 %v1872, %v1725
    %v1876 = vadd.f32 %v1873, %v1727
    %v1877 = vxor.u32 %v1875, 2147483648
    %v1878 = vxor.u32 %v1876, 2147483648
    %v1879 = vmul.f32 %v1877, 1.442695
    %v1880 = vpow.pop %v1879
    %v1881 = vmul.f32 %v1878, 1.442695
    %v1882 = vpow.pop %v1881
    %v1883 = vadd.f32 %v1880, 1.0
    %v1884 = vadd.f32 %v1882, 1.0
    %v1885 = vrcp.pop %v1883
    %v1886 = vmul.f32 1.0, %v1885
    %v1887 = vrcp.pop %v1884
    %v1888 = vmul.f32 1.0, %v1887
    %v1889 = vmul.f32 %v1886, %v1766
    %v1890 = vadd.f32 %v1874, %v1889
    %v1891 = vtanh.pop %v1890
    %v1892 = vsub.f32 1.0, %v1888
    %v1893 = vmul.f32 %v1892, %v1891
    %v1894 = vmul.f32 %v1888, %v1687
    %v1895 = vadd.f32 %v1893, %v1894
    %v1896 = vpack.c.bf16 %v1895, %v1895
    %v1897 = vpack.c.bf16 %v1871, %v1871
    %1898 = vmatprep.subr.bf16.mxu0 %v843
    %1899 = vmatpush1.bf16.msra.mxu0 %v842
    %1900 = vmatprep.subr.bf16.mxu0 %v850
    %1901 = vmatpush1.bf16.msra.mxu0 %v849
    %1902 = vmatprep.subr.bf16.mxu0 %v857
    %1903 = vmatpush1.bf16.msra.mxu0 %v856
    %1904 = vmatprep.subr.bf16.mxu0 %v864
    %1905 = vmatpush1.bf16.msra.mxu0 %v863
    %1906 = vmatprep.subr.bf16.mxu0 %v871
    %1907 = vmatpush1.bf16.msra.mxu0 %v870
    %1908 = vmatprep.subr.bf16.mxu0 %v878
    %1909 = vmatpush1.bf16.msra.mxu0 %v877
    %1910 = vmatprep.subr.bf16.mxu0 %v885
    %1911 = vmatpush1.bf16.msra.mxu0 %v884
    %1912 = vmatprep.subr.bf16.mxu0 %v892
    %1913 = vmatpush1.bf16.msra.mxu0 %v891
    %1914 = vmatprep.subr.bf16.mxu0 %v899
    %1915 = vmatpush1.bf16.msra.mxu0 %v898
    %1916 = vmatprep.subr.bf16.mxu0 %v906
    %1917 = vmatpush1.bf16.msra.mxu0 %v905
    %1918 = vmatprep.subr.bf16.mxu0 %v913
    %1919 = vmatpush1.bf16.msra.mxu0 %v912
    %1920 = vmatprep.subr.bf16.mxu0 %v920
    %1921 = vmatpush1.bf16.msra.mxu0 %v919
    %1922 = vmatprep.subr.bf16.mxu0 %v927
    %1923 = vmatpush1.bf16.msra.mxu0 %v926
    %1924 = vmatprep.subr.bf16.mxu0 %v934
    %1925 = vmatpush1.bf16.msra.mxu0 %v933
    %1926 = vmatprep.subr.bf16.mxu0 %v941
    %1927 = vmatpush1.bf16.msra.mxu0 %v940
    %1928 = vmatprep.subr.bf16.mxu0 %v948
    %1929 = vmatpush1.bf16.msra.mxu0 %v947
    %1930 = vmatprep.mubr.bf16.mxu0 %v1897
    %1931 = vmatmul.mubr.bf16.gmra.mrb[0].mxu0 %v1896
    %v1932 = vpop.f32.mrb[0].mxu0
    %v1933 = vadd.f32 %v301, %v1932
    %v1934 = vpop.f32.mrb[0].mxu0
    %v1935 = vadd.f32 %v305, %v1934
    %v1936 = vpop.f32.mrb[0].mxu0
    %v1937 = vpop.f32.mrb[0].mxu0
    %1938 = vdwg.mxu0
    %1939 = vmatprep.subr.bf16.mxu0 %v845
    %1940 = vmatpush1.bf16.msra.mxu0 %v844
    %1941 = vmatprep.subr.bf16.mxu0 %v852
    %1942 = vmatpush1.bf16.msra.mxu0 %v851
    %1943 = vmatprep.subr.bf16.mxu0 %v859
    %1944 = vmatpush1.bf16.msra.mxu0 %v858
    %1945 = vmatprep.subr.bf16.mxu0 %v866
    %1946 = vmatpush1.bf16.msra.mxu0 %v865
    %1947 = vmatprep.subr.bf16.mxu0 %v873
    %1948 = vmatpush1.bf16.msra.mxu0 %v872
    %1949 = vmatprep.subr.bf16.mxu0 %v880
    %1950 = vmatpush1.bf16.msra.mxu0 %v879
    %1951 = vmatprep.subr.bf16.mxu0 %v887
    %1952 = vmatpush1.bf16.msra.mxu0 %v886
    %1953 = vmatprep.subr.bf16.mxu0 %v894
    %1954 = vmatpush1.bf16.msra.mxu0 %v893
    %1955 = vmatprep.subr.bf16.mxu0 %v901
    %1956 = vmatpush1.bf16.msra.mxu0 %v900
    %1957 = vmatprep.subr.bf16.mxu0 %v908
    %1958 = vmatpush1.bf16.msra.mxu0 %v907
    %1959 = vmatprep.subr.bf16.mxu0 %v915
    %1960 = vmatpush1.bf16.msra.mxu0 %v914
    %1961 = vmatprep.subr.bf16.mxu0 %v922
    %1962 = vmatpush1.bf16.msra.mxu0 %v921
    %1963 = vmatprep.subr.bf16.mxu0 %v929
    %1964 = vmatpush1.bf16.msra.mxu0 %v928
    %1965 = vmatprep.subr.bf16.mxu0 %v936
    %1966 = vmatpush1.bf16.msra.mxu0 %v935
    %1967 = vmatprep.subr.bf16.mxu0 %v943
    %1968 = vmatpush1.bf16.msra.mxu0 %v942
    %1969 = vmatprep.subr.bf16.mxu0 %v950
    %1970 = vmatpush1.bf16.msra.mxu0 %v949
    %1971 = vmatprep.mubr.bf16.mxu0 %v1897
    %1972 = vmatmul.mubr.bf16.gmra.mrb[0].mxu0 %v1896
    %v1973 = vpop.f32.mrb[0].mxu0
    %v1974 = vadd.f32 %v309, %v1973
    %v1975 = vpop.f32.mrb[0].mxu0
    %v1976 = vadd.f32 %v473, %v1975
    %v1977 = vpop.f32.mrb[0].mxu0
    %v1978 = vpop.f32.mrb[0].mxu0
    %1979 = vdwg.mxu0
    %1980 = vmatprep.subr.bf16.mxu0 %v847
    %1981 = vmatpush1.bf16.msra.mxu0 %v846
    %1982 = vmatprep.subr.bf16.mxu0 %v854
    %1983 = vmatpush1.bf16.msra.mxu0 %v853
    %1984 = vmatprep.subr.bf16.mxu0 %v861
    %1985 = vmatpush1.bf16.msra.mxu0 %v860
    %1986 = vmatprep.subr.bf16.mxu0 %v868
    %1987 = vmatpush1.bf16.msra.mxu0 %v867
    %1988 = vmatprep.subr.bf16.mxu0 %v875
    %1989 = vmatpush1.bf16.msra.mxu0 %v874
    %1990 = vmatprep.subr.bf16.mxu0 %v882
    %1991 = vmatpush1.bf16.msra.mxu0 %v881
    %1992 = vmatprep.subr.bf16.mxu0 %v889
    %1993 = vmatpush1.bf16.msra.mxu0 %v888
    %1994 = vmatprep.subr.bf16.mxu0 %v896
    %1995 = vmatpush1.bf16.msra.mxu0 %v895
    %1996 = vmatprep.subr.bf16.mxu0 %v903
    %1997 = vmatpush1.bf16.msra.mxu0 %v902
    %1998 = vmatprep.subr.bf16.mxu0 %v910
    %1999 = vmatpush1.bf16.msra.mxu0 %v909
    %2000 = vmatprep.subr.bf16.mxu0 %v917
    %2001 = vmatpush1.bf16.msra.mxu0 %v916
    %2002 = vmatprep.subr.bf16.mxu0 %v924
    %2003 = vmatpush1.bf16.msra.mxu0 %v923
    %2004 = vmatprep.subr.bf16.mxu0 %v931
    %2005 = vmatpush1.bf16.msra.mxu0 %v930
    %2006 = vmatprep.subr.bf16.mxu0 %v938
    %2007 = vmatpush1.bf16.msra.mxu0 %v937
    %2008 = vmatprep.subr.bf16.mxu0 %v945
    %2009 = vmatpush1.bf16.msra.mxu0 %v944
    %2010 = vmatprep.subr.bf16.mxu0 %v952
    %2011 = vmatpush1.bf16.msra.mxu0 %v951
    %2012 = vmatprep.mubr.bf16.mxu0 %v1897
    %2013 = vmatmul.mubr.bf16.gmra.mrb[0].mxu0 %v1896
    %v2014 = vpop.f32.mrb[0].mxu0
    %v2015 = vadd.f32 %v477, %v2014
    %v2016 = vpop.f32.mrb[0].mxu0
    %v2017 = vadd.f32 %v481, %v2016
    %v2018 = vpop.f32.mrb[0].mxu0
    %v2019 = vpop.f32.mrb[0].mxu0
    %2020 = vdwg.mxu0
    %2021 = vmatprep.subr.bf16.mxu0 0
    %2022 = vmatpush1.bf16.msra.mxu0 %v848
    %2023 = vmatprep.subr.bf16.mxu0 0
    %2024 = vmatpush1.bf16.msra.mxu0 %v855
    %2025 = vmatprep.subr.bf16.mxu0 0
    %2026 = vmatpush1.bf16.msra.mxu0 %v862
    %2027 = vmatprep.subr.bf16.mxu0 0
    %2028 = vmatpush1.bf16.msra.mxu0 %v869
    %2029 = vmatprep.subr.bf16.mxu0 0
    %2030 = vmatpush1.bf16.msra.mxu0 %v876
    %2031 = vmatprep.subr.bf16.mxu0 0
    %2032 = vmatpush1.bf16.msra.mxu0 %v883
    %2033 = vmatprep.subr.bf16.mxu0 0
    %2034 = vmatpush1.bf16.msra.mxu0 %v890
    %2035 = vmatprep.subr.bf16.mxu0 0
    %2036 = vmatpush1.bf16.msra.mxu0 %v897
    %2037 = vmatprep.subr.bf16.mxu0 0
    %2038 = vmatpush1.bf16.msra.mxu0 %v904
    %2039 = vmatprep.subr.bf16.mxu0 0
    %2040 = vmatpush1.bf16.msra.mxu0 %v911
    %2041 = vmatprep.subr.bf16.mxu0 0
    %2042 = vmatpush1.bf16.msra.mxu0 %v918
    %2043 = vmatprep.subr.bf16.mxu0 0
    %2044 = vmatpush1.bf16.msra.mxu0 %v925
    %2045 = vmatprep.subr.bf16.mxu0 0
    %2046 = vmatpush1.bf16.msra.mxu0 %v932
    %2047 = vmatprep.subr.bf16.mxu0 0
    %2048 = vmatpush1.bf16.msra.mxu0 %v939
    %2049 = vmatprep.subr.bf16.mxu0 0
    %2050 = vmatpush1.bf16.msra.mxu0 %v946
    %2051 = vmatprep.subr.bf16.mxu0 0
    %2052 = vmatpush1.bf16.msra.mxu0 %v953
    %2053 = vmatprep.mubr.bf16.mxu0 %v1897
    %2054 = vmatmul.mubr.bf16.gmra.mrb[0].mxu0 %v1896
    %v2055 = vpop.f32.mrb[0].mxu0
    %v2056 = vadd.f32 %v485, %v2055
    %v2057 = vpop.f32.mrb[0].mxu0
    %v2058 = vpop.f32.mrb[0].mxu0
    %v2059 = vpop.f32.mrb[0].mxu0
    %2060 = vdwg.mxu0
    %v2061 = vxor.u32 %v1976, 2147483648
    %v2062 = vxor.u32 %v2015, 2147483648
    %v2063 = vmul.f32 %v2061, 1.442695
    %v2064 = vpow.pop %v2063
    %v2065 = vmul.f32 %v2062, 1.442695
    %v2066 = vpow.pop %v2065
    %v2067 = vadd.f32 %v2064, 1.0
    %v2068 = vadd.f32 %v2066, 1.0
    %v2069 = vrcp.pop %v2067
    %v2070 = vmul.f32 1.0, %v2069
    %v2071 = vrcp.pop %v2068
    %v2072 = vmul.f32 1.0, %v2071
    %v2073 = vmul.f32 %v2070, %v2056
    %v2074 = vadd.f32 %v2017, %v2073
    %v2075 = vtanh.pop %v2074
    %v2076 = vsub.f32 1.0, %v2072
    %v2077 = vmul.f32 %v2076, %v2075
    %v2078 = vmul.f32 %v2072, %v1871
    %v2079 = vadd.f32 %v2077, %v2078
    %v2080 = vld [vmem:[#allocation2 + $0x78] sm:$0xff]
    %v2081 = vld [vmem:[#allocation2 + $0x80] sm:$0xff]
    %v2082 = vld [vmem:[#allocation2 + $0x88] sm:$0xff]
    %v2083 = vadd.f32 %v2080, %v1933
    %v2084 = vadd.f32 %v2081, %v1935
    %v2085 = vxor.u32 %v2083, 2147483648
    %v2086 = vxor.u32 %v2084, 2147483648
    %v2087 = vmul.f32 %v2085, 1.442695
    %v2088 = vpow.pop %v2087
    %v2089 = vmul.f32 %v2086, 1.442695
    %v2090 = vpow.pop %v2089
    %v2091 = vadd.f32 %v2088, 1.0
    %v2092 = vadd.f32 %v2090, 1.0
    %v2093 = vrcp.pop %v2091
    %v2094 = vmul.f32 1.0, %v2093
    %v2095 = vrcp.pop %v2092
    %v2096 = vmul.f32 1.0, %v2095
    %v2097 = vmul.f32 %v2094, %v1974
    %v2098 = vadd.f32 %v2082, %v2097
    %v2099 = vtanh.pop %v2098
    %v2100 = vsub.f32 1.0, %v2096
    %v2101 = vmul.f32 %v2100, %v2099
    %v2102 = vmul.f32 %v2096, %v1895
    %v2103 = vadd.f32 %v2101, %v2102
    %v2104 = vpack.c.bf16 %v2103, %v2103
    %v2105 = vpack.c.bf16 %v2079, %v2079
    %2106 = vmatprep.subr.bf16.mxu0 %v843
    %2107 = vmatpush1.bf16.msra.mxu0 %v842
    %2108 = vmatprep.subr.bf16.mxu0 %v850
    %2109 = vmatpush1.bf16.msra.mxu0 %v849
    %2110 = vmatprep.subr.bf16.mxu0 %v857
    %2111 = vmatpush1.bf16.msra.mxu0 %v856
    %2112 = vmatprep.subr.bf16.mxu0 %v864
    %2113 = vmatpush1.bf16.msra.mxu0 %v863
    %2114 = vmatprep.subr.bf16.mxu0 %v871
    %2115 = vmatpush1.bf16.msra.mxu0 %v870
    %2116 = vmatprep.subr.bf16.mxu0 %v878
    %2117 = vmatpush1.bf16.msra.mxu0 %v877
    %2118 = vmatprep.subr.bf16.mxu0 %v885
    %2119 = vmatpush1.bf16.msra.mxu0 %v884
    %2120 = vmatprep.subr.bf16.mxu0 %v892
    %2121 = vmatpush1.bf16.msra.mxu0 %v891
    %2122 = vmatprep.subr.bf16.mxu0 %v899
    %2123 = vmatpush1.bf16.msra.mxu0 %v898
    %2124 = vmatprep.subr.bf16.mxu0 %v906
    %2125 = vmatpush1.bf16.msra.mxu0 %v905
    %2126 = vmatprep.subr.bf16.mxu0 %v913
    %2127 = vmatpush1.bf16.msra.mxu0 %v912
    %2128 = vmatprep.subr.bf16.mxu0 %v920
    %2129 = vmatpush1.bf16.msra.mxu0 %v919
    %2130 = vmatprep.subr.bf16.mxu0 %v927
    %2131 = vmatpush1.bf16.msra.mxu0 %v926
    %2132 = vmatprep.subr.bf16.mxu0 %v934
    %2133 = vmatpush1.bf16.msra.mxu0 %v933
    %2134 = vmatprep.subr.bf16.mxu0 %v941
    %2135 = vmatpush1.bf16.msra.mxu0 %v940
    %2136 = vmatprep.subr.bf16.mxu0 %v948
    %2137 = vmatpush1.bf16.msra.mxu0 %v947
    %2138 = vmatprep.mubr.bf16.mxu0 %v2105
    %2139 = vmatmul.mubr.bf16.gmra.mrb[0].mxu0 %v2104
    %v2140 = vpop.f32.mrb[0].mxu0
    %v2141 = vadd.f32 %v301, %v2140
    %v2142 = vpop.f32.mrb[0].mxu0
    %v2143 = vadd.f32 %v305, %v2142
    %v2144 = vpop.f32.mrb[0].mxu0
    %v2145 = vpop.f32.mrb[0].mxu0
    %2146 = vdwg.mxu0
    %2147 = vmatprep.subr.bf16.mxu0 %v845
    %2148 = vmatpush1.bf16.msra.mxu0 %v844
    %2149 = vmatprep.subr.bf16.mxu0 %v852
    %2150 = vmatpush1.bf16.msra.mxu0 %v851
    %2151 = vmatprep.subr.bf16.mxu0 %v859
    %2152 = vmatpush1.bf16.msra.mxu0 %v858
    %2153 = vmatprep.subr.bf16.mxu0 %v866
    %2154 = vmatpush1.bf16.msra.mxu0 %v865
    %2155 = vmatprep.subr.bf16.mxu0 %v873
    %2156 = vmatpush1.bf16.msra.mxu0 %v872
    %2157 = vmatprep.subr.bf16.mxu0 %v880
    %2158 = vmatpush1.bf16.msra.mxu0 %v879
    %2159 = vmatprep.subr.bf16.mxu0 %v887
    %2160 = vmatpush1.bf16.msra.mxu0 %v886
    %2161 = vmatprep.subr.bf16.mxu0 %v894
    %2162 = vmatpush1.bf16.msra.mxu0 %v893
    %2163 = vmatprep.subr.bf16.mxu0 %v901
    %2164 = vmatpush1.bf16.msra.mxu0 %v900
    %2165 = vmatprep.subr.bf16.mxu0 %v908
    %2166 = vmatpush1.bf16.msra.mxu0 %v907
    %2167 = vmatprep.subr.bf16.mxu0 %v915
    %2168 = vmatpush1.bf16.msra.mxu0 %v914
    %2169 = vmatprep.subr.bf16.mxu0 %v922
    %2170 = vmatpush1.bf16.msra.mxu0 %v921
    %2171 = vmatprep.subr.bf16.mxu0 %v929
    %2172 = vmatpush1.bf16.msra.mxu0 %v928
    %2173 = vmatprep.subr.bf16.mxu0 %v936
    %2174 = vmatpush1.bf16.msra.mxu0 %v935
    %2175 = vmatprep.subr.bf16.mxu0 %v943
    %2176 = vmatpush1.bf16.msra.mxu0 %v942
    %2177 = vmatprep.subr.bf16.mxu0 %v950
    %2178 = vmatpush1.bf16.msra.mxu0 %v949
    %2179 = vmatprep.mubr.bf16.mxu0 %v2105
    %2180 = vmatmul.mubr.bf16.gmra.mrb[0].mxu0 %v2104
    %v2181 = vpop.f32.mrb[0].mxu0
    %v2182 = vadd.f32 %v309, %v2181
    %v2183 = vpop.f32.mrb[0].mxu0
    %v2184 = vadd.f32 %v473, %v2183
    %v2185 = vpop.f32.mrb[0].mxu0
    %v2186 = vpop.f32.mrb[0].mxu0
    %2187 = vdwg.mxu0
    %2188 = vmatprep.subr.bf16.mxu0 %v847
    %2189 = vmatpush1.bf16.msra.mxu0 %v846
    %2190 = vmatprep.subr.bf16.mxu0 %v854
    %2191 = vmatpush1.bf16.msra.mxu0 %v853
    %2192 = vmatprep.subr.bf16.mxu0 %v861
    %2193 = vmatpush1.bf16.msra.mxu0 %v860
    %2194 = vmatprep.subr.bf16.mxu0 %v868
    %2195 = vmatpush1.bf16.msra.mxu0 %v867
    %2196 = vmatprep.subr.bf16.mxu0 %v875
    %2197 = vmatpush1.bf16.msra.mxu0 %v874
    %2198 = vmatprep.subr.bf16.mxu0 %v882
    %2199 = vmatpush1.bf16.msra.mxu0 %v881
    %2200 = vmatprep.subr.bf16.mxu0 %v889
    %2201 = vmatpush1.bf16.msra.mxu0 %v888
    %2202 = vmatprep.subr.bf16.mxu0 %v896
    %2203 = vmatpush1.bf16.msra.mxu0 %v895
    %2204 = vmatprep.subr.bf16.mxu0 %v903
    %2205 = vmatpush1.bf16.msra.mxu0 %v902
    %2206 = vmatprep.subr.bf16.mxu0 %v910
    %2207 = vmatpush1.bf16.msra.mxu0 %v909
    %2208 = vmatprep.subr.bf16.mxu0 %v917
    %2209 = vmatpush1.bf16.msra.mxu0 %v916
    %2210 = vmatprep.subr.bf16.mxu0 %v924
    %2211 = vmatpush1.bf16.msra.mxu0 %v923
    %2212 = vmatprep.subr.bf16.mxu0 %v931
    %2213 = vmatpush1.bf16.msra.mxu0 %v930
    %2214 = vmatprep.subr.bf16.mxu0 %v938
    %2215 = vmatpush1.bf16.msra.mxu0 %v937
    %2216 = vmatprep.subr.bf16.mxu0 %v945
    %2217 = vmatpush1.bf16.msra.mxu0 %v944
    %2218 = vmatprep.subr.bf16.mxu0 %v952
    %2219 = vmatpush1.bf16.msra.mxu0 %v951
    %2220 = vmatprep.mubr.bf16.mxu0 %v2105
    %2221 = vmatmul.mubr.bf16.gmra.mrb[0].mxu0 %v2104
    %v2222 = vpop.f32.mrb[0].mxu0
    %v2223 = vadd.f32 %v477, %v2222
    %v2224 = vpop.f32.mrb[0].mxu0
    %v2225 = vadd.f32 %v481, %v2224
    %v2226 = vpop.f32.mrb[0].mxu0
    %v2227 = vpop.f32.mrb[0].mxu0
    %2228 = vdwg.mxu0
    %2229 = vmatprep.subr.bf16.mxu0 0
    %2230 = vmatpush1.bf16.msra.mxu0 %v848
    %2231 = vmatprep.subr.bf16.mxu0 0
    %2232 = vmatpush1.bf16.msra.mxu0 %v855
    %2233 = vmatprep.subr.bf16.mxu0 0
    %2234 = vmatpush1.bf16.msra.mxu0 %v862
    %2235 = vmatprep.subr.bf16.mxu0 0
    %2236 = vmatpush1.bf16.msra.mxu0 %v869
    %2237 = vmatprep.subr.bf16.mxu0 0
    %2238 = vmatpush1.bf16.msra.mxu0 %v876
    %2239 = vmatprep.subr.bf16.mxu0 0
    %2240 = vmatpush1.bf16.msra.mxu0 %v883
    %2241 = vmatprep.subr.bf16.mxu0 0
    %2242 = vmatpush1.bf16.msra.mxu0 %v890
    %2243 = vmatprep.subr.bf16.mxu0 0
    %2244 = vmatpush1.bf16.msra.mxu0 %v897
    %2245 = vmatprep.subr.bf16.mxu0 0
    %2246 = vmatpush1.bf16.msra.mxu0 %v904
    %2247 = vmatprep.subr.bf16.mxu0 0
    %2248 = vmatpush1.bf16.msra.mxu0 %v911
    %2249 = vmatprep.subr.bf16.mxu0 0
    %2250 = vmatpush1.bf16.msra.mxu0 %v918
    %2251 = vmatprep.subr.bf16.mxu0 0
    %2252 = vmatpush1.bf16.msra.mxu0 %v925
    %2253 = vmatprep.subr.bf16.mxu0 0
    %2254 = vmatpush1.bf16.msra.mxu0 %v932
    %2255 = vmatprep.subr.bf16.mxu0 0
    %2256 = vmatpush1.bf16.msra.mxu0 %v939
    %2257 = vmatprep.subr.bf16.mxu0 0
    %2258 = vmatpush1.bf16.msra.mxu0 %v946
    %2259 = vmatprep.subr.bf16.mxu0 0
    %2260 = vmatpush1.bf16.msra.mxu0 %v953
    %2261 = vmatprep.mubr.bf16.mxu0 %v2105
    %2262 = vmatmul.mubr.bf16.gmra.mrb[0].mxu0 %v2104
    %v2263 = vpop.f32.mrb[0].mxu0
    %v2264 = vadd.f32 %v485, %v2263
    %v2265 = vpop.f32.mrb[0].mxu0
    %v2266 = vpop.f32.mrb[0].mxu0
    %v2267 = vpop.f32.mrb[0].mxu0
    %2268 = vdwg.mxu0
    %v2269 = vxor.u32 %v2184, 2147483648
    %v2270 = vxor.u32 %v2223, 2147483648
    %v2271 = vmul.f32 %v2269, 1.442695
    %v2272 = vpow.pop %v2271
    %v2273 = vmul.f32 %v2270, 1.442695
    %v2274 = vpow.pop %v2273
    %v2275 = vadd.f32 %v2272, 1.0
    %v2276 = vadd.f32 %v2274, 1.0
    %v2277 = vrcp.pop %v2275
    %v2278 = vmul.f32 1.0, %v2277
    %v2279 = vrcp.pop %v2276
    %v2280 = vmul.f32 1.0, %v2279
    %v2281 = vmul.f32 %v2278, %v2264
    %v2282 = vadd.f32 %v2225, %v2281
    %v2283 = vtanh.pop %v2282
    %v2284 = vsub.f32 1.0, %v2280
    %v2285 = vmul.f32 %v2284, %v2283
    %v2286 = vmul.f32 %v2280, %v2079
    %v2287 = vadd.f32 %v2285, %v2286
    %v2288 = vld [vmem:[#allocation2 + $0x90] sm:$0xff]
    %v2289 = vld [vmem:[#allocation2 + $0x98] sm:$0xff]
    %v2290 = vld [vmem:[#allocation2 + $0xa0] sm:$0xff]
    %v2291 = vadd.f32 %v2288, %v2141
    %v2292 = vadd.f32 %v2289, %v2143
    %v2293 = vxor.u32 %v2291, 2147483648
    %v2294 = vxor.u32 %v2292, 2147483648
    %v2295 = vmul.f32 %v2293, 1.442695
    %v2296 = vpow.pop %v2295
    %v2297 = vmul.f32 %v2294, 1.442695
    %v2298 = vpow.pop %v2297
    %v2299 = vadd.f32 %v2296, 1.0
    %v2300 = vadd.f32 %v2298, 1.0
    %v2301 = vrcp.pop %v2299
    %v2302 = vmul.f32 1.0, %v2301
    %v2303 = vrcp.pop %v2300
    %v2304 = vmul.f32 1.0, %v2303
    %v2305 = vmul.f32 %v2302, %v2182
    %v2306 = vadd.f32 %v2290, %v2305
    %v2307 = vtanh.pop %v2306
    %v2308 = vsub.f32 1.0, %v2304
    %v2309 = vmul.f32 %v2308, %v2307
    %v2310 = vmul.f32 %v2304, %v2103
    %v2311 = vadd.f32 %v2309, %v2310
    %v2312 = vpack.c.bf16 %v2311, %v2311
    %v2313 = vpack.c.bf16 %v2287, %v2287
    %2314 = vmatprep.subr.bf16.mxu0 %v843
    %2315 = vmatpush1.bf16.msra.mxu0 %v842
    %2316 = vmatprep.subr.bf16.mxu0 %v850
    %2317 = vmatpush1.bf16.msra.mxu0 %v849
    %2318 = vmatprep.subr.bf16.mxu0 %v857
    %2319 = vmatpush1.bf16.msra.mxu0 %v856
    %2320 = vmatprep.subr.bf16.mxu0 %v864
    %2321 = vmatpush1.bf16.msra.mxu0 %v863
    %2322 = vmatprep.subr.bf16.mxu0 %v871
    %2323 = vmatpush1.bf16.msra.mxu0 %v870
    %2324 = vmatprep.subr.bf16.mxu0 %v878
    %2325 = vmatpush1.bf16.msra.mxu0 %v877
    %2326 = vmatprep.subr.bf16.mxu0 %v885
    %2327 = vmatpush1.bf16.msra.mxu0 %v884
    %2328 = vmatprep.subr.bf16.mxu0 %v892
    %2329 = vmatpush1.bf16.msra.mxu0 %v891
    %2330 = vmatprep.subr.bf16.mxu0 %v899
    %2331 = vmatpush1.bf16.msra.mxu0 %v898
    %2332 = vmatprep.subr.bf16.mxu0 %v906
    %2333 = vmatpush1.bf16.msra.mxu0 %v905
    %2334 = vmatprep.subr.bf16.mxu0 %v913
    %2335 = vmatpush1.bf16.msra.mxu0 %v912
    %2336 = vmatprep.subr.bf16.mxu0 %v920
    %2337 = vmatpush1.bf16.msra.mxu0 %v919
    %2338 = vmatprep.subr.bf16.mxu0 %v927
    %2339 = vmatpush1.bf16.msra.mxu0 %v926
    %2340 = vmatprep.subr.bf16.mxu0 %v934
    %2341 = vmatpush1.bf16.msra.mxu0 %v933
    %2342 = vmatprep.subr.bf16.mxu0 %v941
    %2343 = vmatpush1.bf16.msra.mxu0 %v940
    %2344 = vmatprep.subr.bf16.mxu0 %v948
    %2345 = vmatpush1.bf16.msra.mxu0 %v947
    %2346 = vmatprep.mubr.bf16.mxu0 %v2313
    %2347 = vmatmul.mubr.bf16.gmra.mrb[0].mxu0 %v2312
    %v2348 = vpop.f32.mrb[0].mxu0
    %v2349 = vadd.f32 %v301, %v2348
    %v2350 = vpop.f32.mrb[0].mxu0
    %v2351 = vadd.f32 %v305, %v2350
    %v2352 = vpop.f32.mrb[0].mxu0
    %v2353 = vpop.f32.mrb[0].mxu0
    %2354 = vdwg.mxu0
    %2355 = vmatprep.subr.bf16.mxu0 %v845
    %2356 = vmatpush1.bf16.msra.mxu0 %v844
    %2357 = vmatprep.subr.bf16.mxu0 %v852
    %2358 = vmatpush1.bf16.msra.mxu0 %v851
    %2359 = vmatprep.subr.bf16.mxu0 %v859
    %2360 = vmatpush1.bf16.msra.mxu0 %v858
    %2361 = vmatprep.subr.bf16.mxu0 %v866
    %2362 = vmatpush1.bf16.msra.mxu0 %v865
    %2363 = vmatprep.subr.bf16.mxu0 %v873
    %2364 = vmatpush1.bf16.msra.mxu0 %v872
    %2365 = vmatprep.subr.bf16.mxu0 %v880
    %2366 = vmatpush1.bf16.msra.mxu0 %v879
    %2367 = vmatprep.subr.bf16.mxu0 %v887
    %2368 = vmatpush1.bf16.msra.mxu0 %v886
    %2369 = vmatprep.subr.bf16.mxu0 %v894
    %2370 = vmatpush1.bf16.msra.mxu0 %v893
    %2371 = vmatprep.subr.bf16.mxu0 %v901
    %2372 = vmatpush1.bf16.msra.mxu0 %v900
    %2373 = vmatprep.subr.bf16.mxu0 %v908
    %2374 = vmatpush1.bf16.msra.mxu0 %v907
    %2375 = vmatprep.subr.bf16.mxu0 %v915
    %2376 = vmatpush1.bf16.msra.mxu0 %v914
    %2377 = vmatprep.subr.bf16.mxu0 %v922
    %2378 = vmatpush1.bf16.msra.mxu0 %v921
    %2379 = vmatprep.subr.bf16.mxu0 %v929
    %2380 = vmatpush1.bf16.msra.mxu0 %v928
    %2381 = vmatprep.subr.bf16.mxu0 %v936
    %2382 = vmatpush1.bf16.msra.mxu0 %v935
    %2383 = vmatprep.subr.bf16.mxu0 %v943
    %2384 = vmatpush1.bf16.msra.mxu0 %v942
    %2385 = vmatprep.subr.bf16.mxu0 %v950
    %2386 = vmatpush1.bf16.msra.mxu0 %v949
    %2387 = vmatprep.mubr.bf16.mxu0 %v2313
    %2388 = vmatmul.mubr.bf16.gmra.mrb[0].mxu0 %v2312
    %v2389 = vpop.f32.mrb[0].mxu0
    %v2390 = vadd.f32 %v309, %v2389
    %v2391 = vpop.f32.mrb[0].mxu0
    %v2392 = vadd.f32 %v473, %v2391
    %v2393 = vpop.f32.mrb[0].mxu0
    %v2394 = vpop.f32.mrb[0].mxu0
    %2395 = vdwg.mxu0
    %2396 = vmatprep.subr.bf16.mxu0 %v847
    %2397 = vmatpush1.bf16.msra.mxu0 %v846
    %2398 = vmatprep.subr.bf16.mxu0 %v854
    %2399 = vmatpush1.bf16.msra.mxu0 %v853
    %2400 = vmatprep.subr.bf16.mxu0 %v861
    %2401 = vmatpush1.bf16.msra.mxu0 %v860
    %2402 = vmatprep.subr.bf16.mxu0 %v868
    %2403 = vmatpush1.bf16.msra.mxu0 %v867
    %2404 = vmatprep.subr.bf16.mxu0 %v875
    %2405 = vmatpush1.bf16.msra.mxu0 %v874
    %2406 = vmatprep.subr.bf16.mxu0 %v882
    %2407 = vmatpush1.bf16.msra.mxu0 %v881
    %2408 = vmatprep.subr.bf16.mxu0 %v889
    %2409 = vmatpush1.bf16.msra.mxu0 %v888
    %2410 = vmatprep.subr.bf16.mxu0 %v896
    %2411 = vmatpush1.bf16.msra.mxu0 %v895
    %2412 = vmatprep.subr.bf16.mxu0 %v903
    %2413 = vmatpush1.bf16.msra.mxu0 %v902
    %2414 = vmatprep.subr.bf16.mxu0 %v910
    %2415 = vmatpush1.bf16.msra.mxu0 %v909
    %2416 = vmatprep.subr.bf16.mxu0 %v917
    %2417 = vmatpush1.bf16.msra.mxu0 %v916
    %2418 = vmatprep.subr.bf16.mxu0 %v924
    %2419 = vmatpush1.bf16.msra.mxu0 %v923
    %2420 = vmatprep.subr.bf16.mxu0 %v931
    %2421 = vmatpush1.bf16.msra.mxu0 %v930
    %2422 = vmatprep.subr.bf16.mxu0 %v938
    %2423 = vmatpush1.bf16.msra.mxu0 %v937
    %2424 = vmatprep.subr.bf16.mxu0 %v945
    %2425 = vmatpush1.bf16.msra.mxu0 %v944
    %2426 = vmatprep.subr.bf16.mxu0 %v952
    %2427 = vmatpush1.bf16.msra.mxu0 %v951
    %2428 = vmatprep.mubr.bf16.mxu0 %v2313
    %2429 = vmatmul.mubr.bf16.gmra.mrb[0].mxu0 %v2312
    %v2430 = vpop.f32.mrb[0].mxu0
    %v2431 = vadd.f32 %v477, %v2430
    %v2432 = vpop.f32.mrb[0].mxu0
    %v2433 = vadd.f32 %v481, %v2432
    %v2434 = vpop.f32.mrb[0].mxu0
    %v2435 = vpop.f32.mrb[0].mxu0
    %2436 = vdwg.mxu0
    %2437 = vmatprep.subr.bf16.mxu0 0
    %2438 = vmatpush1.bf16.msra.mxu0 %v848
    %2439 = vmatprep.subr.bf16.mxu0 0
    %2440 = vmatpush1.bf16.msra.mxu0 %v855
    %2441 = vmatprep.subr.bf16.mxu0 0
    %2442 = vmatpush1.bf16.msra.mxu0 %v862
    %2443 = vmatprep.subr.bf16.mxu0 0
    %2444 = vmatpush1.bf16.msra.mxu0 %v869
    %2445 = vmatprep.subr.bf16.mxu0 0
    %2446 = vmatpush1.bf16.msra.mxu0 %v876
    %2447 = vmatprep.subr.bf16.mxu0 0
    %2448 = vmatpush1.bf16.msra.mxu0 %v883
    %2449 = vmatprep.subr.bf16.mxu0 0
    %2450 = vmatpush1.bf16.msra.mxu0 %v890
    %2451 = vmatprep.subr.bf16.mxu0 0
    %2452 = vmatpush1.bf16.msra.mxu0 %v897
    %2453 = vmatprep.subr.bf16.mxu0 0
    %2454 = vmatpush1.bf16.msra.mxu0 %v904
    %2455 = vmatprep.subr.bf16.mxu0 0
    %2456 = vmatpush1.bf16.msra.mxu0 %v911
    %2457 = vmatprep.subr.bf16.mxu0 0
    %2458 = vmatpush1.bf16.msra.mxu0 %v918
    %2459 = vmatprep.subr.bf16.mxu0 0
    %2460 = vmatpush1.bf16.msra.mxu0 %v925
    %2461 = vmatprep.subr.bf16.mxu0 0
    %2462 = vmatpush1.bf16.msra.mxu0 %v932
    %2463 = vmatprep.subr.bf16.mxu0 0
    %2464 = vmatpush1.bf16.msra.mxu0 %v939
    %2465 = vmatprep.subr.bf16.mxu0 0
    %2466 = vmatpush1.bf16.msra.mxu0 %v946
    %2467 = vmatprep.subr.bf16.mxu0 0
    %2468 = vmatpush1.bf16.msra.mxu0 %v953
    %2469 = vmatprep.mubr.bf16.mxu0 %v2313
    %2470 = vmatmul.mubr.bf16.gmra.mrb[0].mxu0 %v2312
    %v2471 = vpop.f32.mrb[0].mxu0
    %v2472 = vadd.f32 %v485, %v2471
    %v2473 = vpop.f32.mrb[0].mxu0
    %v2474 = vpop.f32.mrb[0].mxu0
    %v2475 = vpop.f32.mrb[0].mxu0
    %2476 = vdwg.mxu0
    %v2477 = vxor.u32 %v2392, 2147483648
    %v2478 = vxor.u32 %v2431, 2147483648
    %v2479 = vmul.f32 %v2477, 1.442695
    %v2480 = vpow.pop %v2479
    %v2481 = vmul.f32 %v2478, 1.442695
    %v2482 = vpow.pop %v2481
    %v2483 = vadd.f32 %v2480, 1.0
    %v2484 = vadd.f32 %v2482, 1.0
    %v2485 = vrcp.pop %v2483
    %v2486 = vmul.f32 1.0, %v2485
    %v2487 = vrcp.pop %v2484
    %v2488 = vmul.f32 1.0, %v2487
    %v2489 = vmul.f32 %v2486, %v2472
    %v2490 = vadd.f32 %v2433, %v2489
    %v2491 = vtanh.pop %v2490
    %v2492 = vsub.f32 1.0, %v2488
    %v2493 = vmul.f32 %v2492, %v2491
    %v2494 = vmul.f32 %v2488, %v2287
    %v2495 = vadd.f32 %v2493, %v2494
    %v2496 = vld [vmem:[#allocation2 + $0xa8] sm:$0xff]
    %v2497 = vld [vmem:[#allocation2 + $0xb0] sm:$0xff]
    %v2498 = vld [vmem:[#allocation2 + $0xb8] sm:$0xff]
    %v2499 = vadd.f32 %v2496, %v2349
    %v2500 = vadd.f32 %v2497, %v2351
    %v2501 = vxor.u32 %v2499, 2147483648
    %v2502 = vxor.u32 %v2500, 2147483648
    %v2503 = vmul.f32 %v2501, 1.442695
    %v2504 = vpow.pop %v2503
    %v2505 = vmul.f32 %v2502, 1.442695
    %v2506 = vpow.pop %v2505
    %v2507 = vadd.f32 %v2504, 1.0
    %v2508 = vadd.f32 %v2506, 1.0
    %v2509 = vrcp.pop %v2507
    %v2510 = vmul.f32 1.0, %v2509
    %v2511 = vrcp.pop %v2508
    %v2512 = vmul.f32 1.0, %v2511
    %v2513 = vmul.f32 %v2510, %v2390
    %v2514 = vadd.f32 %v2498, %v2513
    %v2515 = vtanh.pop %v2514
    %v2516 = vsub.f32 1.0, %v2512
    %v2517 = vmul.f32 %v2516, %v2515
    %v2518 = vmul.f32 %v2512, %v2311
    %v2519 = vadd.f32 %v2517, %v2518
    %v2520 = vpack.c.bf16 %v2519, %v2519
    %v2521 = vpack.c.bf16 %v2495, %v2495
    %2522 = vmatprep.subr.bf16.mxu0 %v845
    %2523 = vmatpush1.bf16.msra.mxu0 %v844
    %2524 = vmatprep.subr.bf16.mxu0 %v852
    %2525 = vmatpush1.bf16.msra.mxu0 %v851
    %2526 = vmatprep.subr.bf16.mxu0 %v859
    %2527 = vmatpush1.bf16.msra.mxu0 %v858
    %2528 = vmatprep.subr.bf16.mxu0 %v866
    %2529 = vmatpush1.bf16.msra.mxu0 %v865
    %2530 = vmatprep.subr.bf16.mxu0 %v873
    %2531 = vmatpush1.bf16.msra.mxu0 %v872
    %2532 = vmatprep.subr.bf16.mxu0 %v880
    %2533 = vmatpush1.bf16.msra.mxu0 %v879
    %2534 = vmatprep.subr.bf16.mxu0 %v887
    %2535 = vmatpush1.bf16.msra.mxu0 %v886
    %2536 = vmatprep.subr.bf16.mxu0 %v894
    %2537 = vmatpush1.bf16.msra.mxu0 %v893
    %2538 = vmatprep.subr.bf16.mxu0 %v901
    %2539 = vmatpush1.bf16.msra.mxu0 %v900
    %2540 = vmatprep.subr.bf16.mxu0 %v908
    %2541 = vmatpush1.bf16.msra.mxu0 %v907
    %2542 = vmatprep.subr.bf16.mxu0 %v915
    %2543 = vmatpush1.bf16.msra.mxu0 %v914
    %2544 = vmatprep.subr.bf16.mxu0 %v922
    %2545 = vmatpush1.bf16.msra.mxu0 %v921
    %2546 = vmatprep.subr.bf16.mxu0 %v929
    %2547 = vmatpush1.bf16.msra.mxu0 %v928
    %2548 = vmatprep.subr.bf16.mxu0 %v936
    %2549 = vmatpush1.bf16.msra.mxu0 %v935
    %2550 = vmatprep.subr.bf16.mxu0 %v943
    %2551 = vmatpush1.bf16.msra.mxu0 %v942
    %2552 = vmatprep.subr.bf16.mxu0 %v950
    %2553 = vmatpush1.bf16.msra.mxu0 %v949
    %2554 = vmatprep.mubr.bf16.mxu0 %v2521
    %2555 = vmatmul.mubr.bf16.gmra.mrb[0].mxu0 %v2520
    %v2556 = vpop.f32.mrb[0].mxu0
    %v2557 = vpop.f32.mrb[0].mxu0
    %v2558 = vadd.f32 %v473, %v2557
    %v2559 = vpop.f32.mrb[0].mxu0
    %v2560 = vpop.f32.mrb[0].mxu0
    %2561 = vdwg.mxu0
    %2562 = vmatprep.subr.bf16.mxu0 %v847
    %2563 = vmatpush1.bf16.msra.mxu0 %v846
    %2564 = vmatprep.subr.bf16.mxu0 %v854
    %2565 = vmatpush1.bf16.msra.mxu0 %v853
    %2566 = vmatprep.subr.bf16.mxu0 %v861
    %2567 = vmatpush1.bf16.msra.mxu0 %v860
    %2568 = vmatprep.subr.bf16.mxu0 %v868
    %2569 = vmatpush1.bf16.msra.mxu0 %v867
    %2570 = vmatprep.subr.bf16.mxu0 %v875
    %2571 = vmatpush1.bf16.msra.mxu0 %v874
    %2572 = vmatprep.subr.bf16.mxu0 %v882
    %2573 = vmatpush1.bf16.msra.mxu0 %v881
    %2574 = vmatprep.subr.bf16.mxu0 %v889
    %2575 = vmatpush1.bf16.msra.mxu0 %v888
    %2576 = vmatprep.subr.bf16.mxu0 %v896
    %2577 = vmatpush1.bf16.msra.mxu0 %v895
    %2578 = vmatprep.subr.bf16.mxu0 %v903
    %2579 = vmatpush1.bf16.msra.mxu0 %v902
    %2580 = vmatprep.subr.bf16.mxu0 %v910
    %2581 = vmatpush1.bf16.msra.mxu0 %v909
    %2582 = vmatprep.subr.bf16.mxu0 %v917
    %2583 = vmatpush1.bf16.msra.mxu0 %v916
    %2584 = vmatprep.subr.bf16.mxu0 %v924
    %2585 = vmatpush1.bf16.msra.mxu0 %v923
    %2586 = vmatprep.subr.bf16.mxu0 %v931
    %2587 = vmatpush1.bf16.msra.mxu0 %v930
    %2588 = vmatprep.subr.bf16.mxu0 %v938
    %2589 = vmatpush1.bf16.msra.mxu0 %v937
    %2590 = vmatprep.subr.bf16.mxu0 %v945
    %2591 = vmatpush1.bf16.msra.mxu0 %v944
    %2592 = vmatprep.subr.bf16.mxu0 %v952
    %2593 = vmatpush1.bf16.msra.mxu0 %v951
    %2594 = vmatprep.mubr.bf16.mxu0 %v2521
    %2595 = vmatmul.mubr.bf16.gmra.mrb[0].mxu0 %v2520
    %v2596 = vpop.f32.mrb[0].mxu0
    %v2597 = vadd.f32 %v477, %v2596
    %v2598 = vpop.f32.mrb[0].mxu0
    %v2599 = vadd.f32 %v481, %v2598
    %v2600 = vpop.f32.mrb[0].mxu0
    %v2601 = vpop.f32.mrb[0].mxu0
    %2602 = vdwg.mxu0
    %2603 = vmatprep.subr.bf16.mxu0 0
    %2604 = vmatpush1.bf16.msra.mxu0 %v848
    %2605 = vmatprep.subr.bf16.mxu0 0
    %2606 = vmatpush1.bf16.msra.mxu0 %v855
    %2607 = vmatprep.subr.bf16.mxu0 0
    %2608 = vmatpush1.bf16.msra.mxu0 %v862
    %2609 = vmatprep.subr.bf16.mxu0 0
    %2610 = vmatpush1.bf16.msra.mxu0 %v869
    %2611 = vmatprep.subr.bf16.mxu0 0
    %2612 = vmatpush1.bf16.msra.mxu0 %v876
    %2613 = vmatprep.subr.bf16.mxu0 0
    %2614 = vmatpush1.bf16.msra.mxu0 %v883
    %2615 = vmatprep.subr.bf16.mxu0 0
    %2616 = vmatpush1.bf16.msra.mxu0 %v890
    %2617 = vmatprep.subr.bf16.mxu0 0
    %2618 = vmatpush1.bf16.msra.mxu0 %v897
    %2619 = vmatprep.subr.bf16.mxu0 0
    %2620 = vmatpush1.bf16.msra.mxu0 %v904
    %2621 = vmatprep.subr.bf16.mxu0 0
    %2622 = vmatpush1.bf16.msra.mxu0 %v911
    %2623 = vmatprep.subr.bf16.mxu0 0
    %2624 = vmatpush1.bf16.msra.mxu0 %v918
    %2625 = vmatprep.subr.bf16.mxu0 0
    %2626 = vmatpush1.bf16.msra.mxu0 %v925
    %2627 = vmatprep.subr.bf16.mxu0 0
    %2628 = vmatpush1.bf16.msra.mxu0 %v932
    %2629 = vmatprep.subr.bf16.mxu0 0
    %2630 = vmatpush1.bf16.msra.mxu0 %v939
    %2631 = vmatprep.subr.bf16.mxu0 0
    %2632 = vmatpush1.bf16.msra.mxu0 %v946
    %2633 = vmatprep.subr.bf16.mxu0 0
    %2634 = vmatpush1.bf16.msra.mxu0 %v953
    %2635 = vmatprep.mubr.bf16.mxu0 %v2521
    %2636 = vmatmul.mubr.bf16.gmra.mrb[0].mxu0 %v2520
    %v2637 = vpop.f32.mrb[0].mxu0
    %v2638 = vadd.f32 %v485, %v2637
    %v2639 = vpop.f32.mrb[0].mxu0
    %v2640 = vpop.f32.mrb[0].mxu0
    %v2641 = vpop.f32.mrb[0].mxu0
    %2642 = vdwg.mxu0
    %v2643 = vxor.u32 %v2558, 2147483648
    %v2644 = vxor.u32 %v2597, 2147483648
    %v2645 = vmul.f32 %v2643, 1.442695
    %v2646 = vpow.pop %v2645
    %v2647 = vmul.f32 %v2644, 1.442695
    %v2648 = vpow.pop %v2647
    %v2649 = vadd.f32 %v2646, 1.0
    %v2650 = vadd.f32 %v2648, 1.0
    %v2651 = vrcp.pop %v2649
    %v2652 = vmul.f32 1.0, %v2651
    %v2653 = vrcp.pop %v2650
    %v2654 = vmul.f32 1.0, %v2653
    %v2655 = vmul.f32 %v2652, %v2638
    %v2656 = vadd.f32 %v2599, %v2655
    %v2657 = vtanh.pop %v2656
    %v2658 = vsub.f32 1.0, %v2654
    %v2659 = vmul.f32 %v2658, %v2657
    %v2660 = vmul.f32 %v2654, %v2495
    %v2661 = vadd.f32 %v2659, %v2660
    %v2662 = vpack.c.bf16 %v2661, %v2661
    %v2663 = vld [vmem:[#allocation6] sm:$0xf]
    %v2664 = vld [vmem:[#allocation6 + $0x4] sm:$0xf]
    %v2665 = vld [vmem:[#allocation6 + $0x8] sm:$0xf]
    %v2666 = vld [vmem:[#allocation6 + $0xc] sm:$0xf]
    %v2667 = vld [vmem:[#allocation6 + $0x10] sm:$0xf]
    %v2668 = vld [vmem:[#allocation6 + $0x14] sm:$0xf]
    %v2669 = vld [vmem:[#allocation6 + $0x18] sm:$0xf]
    %v2670 = vld [vmem:[#allocation6 + $0x1c] sm:$0xf]
    %v2671 = vld [vmem:[#allocation6 + $0x20] sm:$0xf]
    %v2672 = vld [vmem:[#allocation6 + $0x24] sm:$0xf]
    %v2673 = vld [vmem:[#allocation6 + $0x28] sm:$0xf]
    %v2674 = vld [vmem:[#allocation6 + $0x2c] sm:$0xf]
    %v2675 = vld [vmem:[#allocation6 + $0x30] sm:$0xf]
    %v2676 = vld [vmem:[#allocation6 + $0x34] sm:$0xf]
    %v2677 = vld [vmem:[#allocation6 + $0x38] sm:$0xf]
    %v2678 = vld [vmem:[#allocation6 + $0x3c] sm:$0xf]
    %v2679 = vld [vmem:[%s6] sm:$0x1]
    %v2681 = vlaneseq
    %v2682 = vshrl.u32 %v2681, 7
    %v2683 = vsub.s32 0, %v2682
    %v2684 = vrot.slane %v2679, %v2683
    %v2702 = vunpack.c.l.b16 %v2663
    %v2703 = vunpack.c.l.b16 %v2664
    %v2704 = vunpack.c.l.b16 %v2665
    %v2705 = vunpack.c.l.b16 %v2666
    %v2706 = vunpack.c.l.b16 %v2667
    %v2707 = vunpack.c.l.b16 %v2668
    %v2708 = vunpack.c.l.b16 %v2669
    %v2709 = vunpack.c.l.b16 %v2670
    %v2710 = vunpack.c.l.b16 %v2671
    %v2711 = vunpack.c.l.b16 %v2672
    %v2712 = vunpack.c.l.b16 %v2673
    %v2713 = vunpack.c.l.b16 %v2674
    %v2714 = vunpack.c.l.b16 %v2675
    %v2715 = vunpack.c.l.b16 %v2676
    %v2716 = vunpack.c.l.b16 %v2677
    %v2717 = vunpack.c.l.b16 %v2678
    %v2718 = vpack.c.b16 %v2703, %v2702
    %v2719 = vpack.c.b16 %v2705, %v2704
    %v2720 = vpack.c.b16 %v2707, %v2706
    %v2721 = vpack.c.b16 %v2709, %v2708
    %v2722 = vpack.c.b16 %v2711, %v2710
    %v2723 = vpack.c.b16 %v2713, %v2712
    %v2724 = vpack.c.b16 %v2715, %v2714
    %v2725 = vpack.c.b16 %v2717, %v2716
    %2734 = vmatprep.subr.bf16.mxu0 0
    %2735 = vmatpush1.bf16.msra.mxu0 %v2718
    %2736 = vmatprep.subr.bf16.mxu0 0
    %2737 = vmatpush1.bf16.msra.mxu0 %v2719
    %2738 = vmatprep.subr.bf16.mxu0 0
    %2739 = vmatpush1.bf16.msra.mxu0 %v2720
    %2740 = vmatprep.subr.bf16.mxu0 0
    %2741 = vmatpush1.bf16.msra.mxu0 %v2721
    %2742 = vmatprep.subr.bf16.mxu0 0
    %2743 = vmatpush1.bf16.msra.mxu0 %v2722
    %2744 = vmatprep.subr.bf16.mxu0 0
    %2745 = vmatpush1.bf16.msra.mxu0 %v2723
    %2746 = vmatprep.subr.bf16.mxu0 0
    %2747 = vmatpush1.bf16.msra.mxu0 %v2724
    %2748 = vmatprep.subr.bf16.mxu0 0
    %2749 = vmatpush1.bf16.msra.mxu0 %v2725
    %2750 = vmatprep.subr.bf16.mxu0 0
    %2751 = vmatpush1.bf16.msra.mxu0 0
    %2752 = vmatprep.subr.bf16.mxu0 0
    %2753 = vmatpush1.bf16.msra.mxu0 0
    %2754 = vmatprep.subr.bf16.mxu0 0
    %2755 = vmatpush1.bf16.msra.mxu0 0
    %2756 = vmatprep.subr.bf16.mxu0 0
    %2757 = vmatpush1.bf16.msra.mxu0 0
    %2758 = vmatprep.subr.bf16.mxu0 0
    %2759 = vmatpush1.bf16.msra.mxu0 0
    %2760 = vmatprep.subr.bf16.mxu0 0
    %2761 = vmatpush1.bf16.msra.mxu0 0
    %2762 = vmatprep.subr.bf16.mxu0 0
    %2763 = vmatpush1.bf16.msra.mxu0 0
    %2764 = vmatprep.subr.bf16.mxu0 0
    %2765 = vmatpush1.bf16.msra.mxu0 0
    %2766 = vmatprep.mubr.bf16.mxu0 0
    %2767 = vmatmul.mubr.bf16.gmra.mrb[0].mxu0 %v2662
    %v2768 = vpop.f32.mrb[0].mxu0
    %v2769 = vadd.f32 %v2684, %v2768
    %v2770 = vpop.f32.mrb[0].mxu0
    %v2771 = vpop.f32.mrb[0].mxu0
    %v2772 = vpop.f32.mrb[0].mxu0
    %2773 = vdwg.mxu0
    %2774 = vst [vmem:[#allocation8] sm:$0xff] %v2769
    // Predicated region
    $region38: #{tpu_custom_call.1} parent=1 // pred_check
      _
    $region39: #{tpu_custom_call.1} parent=1 // pred_check_branch
      %2776 = sbr.rel (0) target = $region41
    $region40: #{tpu_custom_call.1} parent=1 // pred_region
      %s2778 = ssub.s32 128, 128
      %2779 = vsyncadd [#allocation5], %s2778
      %s2781 = sshll.u32 [#allocation8], 4
      %s2782 = int_to_ptr.vmem [resolvable:$true] %s2781
      %2784 = dma.vmem_to_hbm [thread:$0]  %s2782, 128, %s7, [#allocation5]
    $region41: #{tpu_custom_call.1} parent=1 // pred_fallthru
      _
    // Predicated region
    $region42: #{tpu_custom_call.1} parent=1 // pred_check
      _
    $region43: #{tpu_custom_call.1} parent=1 // pred_check_branch
      %2786 = sbr.rel (0) target = $region45
    $region44: #{tpu_custom_call.1} parent=1 // pred_region
      %2787 = dma.done [#allocation5], 128
    $region45: #{tpu_custom_call.1} parent=1 // pred_fallthru
      _
    %2788 = vsyncpa [#allocation4], 1
    %2789 = vsyncpa [#allocation7], 1
    %2790 = vsyncpa [#allocation5], 1

</llo_original>
